<compile_context>
chip_gen: v7x
topology: tpu7x:2x2x1
jax: 0.10.0
libtpu: 0.0.40
codegen_flags: <defaults>
</compile_context>

<pallas_src>
import jax
import jax.numpy as jnp
from jax import lax
from jax.experimental import pallas as pl
from jax.experimental.pallas import tpu as pltpu

CLIP = 20.0                      # ClippedReLU(clip=20)
NEG_INF = -1e30                  # bias for padded FC lanes (exp() underflows to 0)


# ---------------------------------------------------------------------------
# Helpers: chip query, single-buffer probe, tiling choices
# ---------------------------------------------------------------------------

_VMEM_LIMIT = None


def _vmem_limit_bytes():
    """Per-chip scoped-VMEM budget with headroom (~112 MiB on v5e/v6e, ~56 MiB
    on v7x); falls back to a conservative 56 MiB if the query fails."""
    global _VMEM_LIMIT
    if _VMEM_LIMIT is None:
        cap = 64 * 1024 * 1024
        try:
            cap = int(pltpu.get_tpu_info().vmem_capacity_bytes)
        except Exception:
            pass
        _VMEM_LIMIT = max(32 * 1024 * 1024,
                          min(cap - 8 * 1024 * 1024, 112 * 1024 * 1024))
    return _VMEM_LIMIT


def _cparams(semantics):
    return pltpu.CompilerParams(dimension_semantics=semantics,
                                vmem_limit_bytes=_vmem_limit_bytes())


_SINGLE_BUF = None


def _probe_single_buffer():
    """Eagerly check whether pipeline_mode=pl.Buffered(1) is supported so
    grid-invariant weights can be single-buffered (halves resident VMEM)."""
    global _SINGLE_BUF
    if _SINGLE_BUF is not None:
        return _SINGLE_BUF
    try:
        def k(x_ref, w_ref, o_ref):
            o_ref[...] = x_ref[...] + w_ref[...]

        out = pl.pallas_call(
            k,
            out_shape=jax.ShapeDtypeStruct((16, 128), jnp.float32),
            grid=(2,),
            in_specs=[pl.BlockSpec((8, 128), lambda i: (i, 0)),
                      pl.BlockSpec((8, 128), lambda i: (0, 0),
                                   pipeline_mode=pl.Buffered(1))],
            out_specs=pl.BlockSpec((8, 128), lambda i: (i, 0)),
        )(jnp.zeros((16, 128), jnp.float32), jnp.ones((8, 128), jnp.float32))
        jax.block_until_ready(out)
        _SINGLE_BUF = bool(jnp.all(out == 1.0))
    except Exception:
        _SINGLE_BUF = False
    return _SINGLE_BUF


def _spec(shape, index_map, *, single=False):
    """BlockSpec; grid-invariant weight/bias blocks get single-buffering when
    supported (graceful fallback to the default double-buffered path)."""
    if single and _SINGLE_BUF:
        return pl.BlockSpec(shape, index_map, pipeline_mode=pl.Buffered(1))
    return pl.BlockSpec(shape, index_map)


def _round_up(n, m):
    return ((n + m - 1) // m) * m


def _pick_chunk(s, target=32):
    """Balanced time chunk: never collapses for prime S; padding < one chunk."""
    nc = max(1, -(-s // target))
    ts = -(-s // nc)
    return ts, ts * nc


def _pick_tm(b_pad, s_pad, target=512):
    """Row tile for the (S_pad*B_pad)-row GEMM kernels: b_pad * d, d the
    largest divisor of s_pad keeping the tile <= target rows (tm | N, tm%8==0)."""
    best = 1
    for d in range(1, s_pad + 1):
        if s_pad % d == 0 and b_pad * d <= target:
            best = d
    return b_pad * best


# ---------------------------------------------------------------------------
# Kernel 1: fused initial MLP (N linears + clipped ReLU), row-tiled,
#           all weights VMEM-resident.
# ---------------------------------------------------------------------------

def _make_mlp_kernel(n_layers):
    def kernel(*refs):
        x_ref = refs[0]
        w_refs = refs[1:1 + n_layers]
        b_refs = refs[1 + n_layers:1 + 2 * n_layers]
        o_ref = refs[-1]
        h = x_ref[...]                                        # bf16 (tm, d_in)
        for w_ref, b_ref in zip(w_refs, b_refs):
            a = jnp.dot(h, w_ref[...],
                        preferred_element_type=jnp.float32) + b_ref[...]
            h = jnp.clip(a, 0.0, CLIP).astype(jnp.bfloat16)
        o_ref[...] = h
    return kernel


def initial_mlp(x, layers, tm):
    """x: (N, d_in) bf16, N % tm == 0; layers: [(W bf16 (d, H), b f32 (1, H))]."""
    n, d_in = x.shape
    h = layers[-1][0].shape[1]
    in_specs = [pl.BlockSpec((tm, d_in), lambda i: (i, 0))]
    args = [x]
    for w, _ in layers:
        in_specs.append(_spec(w.shape, lambda i: (0, 0), single=True))
        args.append(w)
    for _, b in layers:
        in_specs.append(_spec(b.shape, lambda i: (0, 0), single=True))
        args.append(b)
    return pl.pallas_call(
        _make_mlp_kernel(len(layers)),
        out_shape=jax.ShapeDtypeStruct((n, h), jnp.bfloat16),
        grid=(n // tm,),
        in_specs=in_specs,
        out_specs=pl.BlockSpec((tm, h), lambda i: (i, 0)),
        compiler_params=_cparams(("parallel",)),
    )(*args)


# ---------------------------------------------------------------------------
# Kernel 2: RNN input projection for both directions in one pass.
#           Input is the stacked (P, N, F) activation of the previous layer
#           (P=1 after the MLP, P=2 [fwd, bwd] after a BiRNN layer) so the
#           bidirectional features are never concatenated.
# ---------------------------------------------------------------------------

def _make_preact_kernel(n_parts):
    def kernel(x_ref, wf_ref, wb_ref, bf_ref, bb_ref, o_ref):
        pf = bf_ref[...]                                      # (1, H) f32
        pb = bb_ref[...]
        for p in range(n_parts):                              # static unroll
            xb = x_ref[p]                                     # (tm, F) bf16
            pf = pf + jnp.dot(xb, wf_ref[p], preferred_element_type=jnp.float32)
            pb = pb + jnp.dot(xb, wb_ref[p], preferred_element_type=jnp.float32)
        o_ref[0] = pf.astype(o_ref.dtype)
        o_ref[1] = pb.astype(o_ref.dtype)
    return kernel


def rnn_preact(x, wf, wb, bf, bb, tm):
    """x: (P, N, F) bf16; wf/wb: (P, F, H) bf16; bf/bb: (1, H) f32 (b_ih+b_hh).
    Returns stacked pre-activations (2, N, H) bf16 ([0]=fwd, [1]=bwd)."""
    p_, n, f = x.shape
    h = wf.shape[2]
    in_specs = [
        pl.BlockSpec((p_, tm, f), lambda i: (0, i, 0)),
        _spec(wf.shape, lambda i: (0, 0, 0), single=True),
        _spec(wb.shape, lambda i: (0, 0, 0), single=True),
        _spec(bf.shape, lambda i: (0, 0), single=True),
        _spec(bb.shape, lambda i: (0, 0), single=True),
    ]
    return pl.pallas_call(
        _make_preact_kernel(p_),
        out_shape=jax.ShapeDtypeStruct((2, n, h), jnp.bfloat16),
        grid=(n // tm,),
        in_specs=in_specs,
        out_specs=pl.BlockSpec((2, tm, h), lambda i: (0, i, 0)),
        compiler_params=_cparams(("parallel",)),
    )(x, wf, wb, bf, bb)


# ---------------------------------------------------------------------------
# Kernel 3: bidirectional recurrence.  Grid = (direction, time-chunk) with
#           ("parallel", "arbitrary"): on v7x each TensorCore runs one
#           direction; on single-core chips the directions run back-to-back.
#           Hidden state lives in f32 VMEM scratch; the streamed
#           pre-activations / outputs are bf16.  The backward direction reads
#           the mirrored chunk and walks it in reverse; carry updates at padded
#           timesteps are masked so its state enters the real sequence as zero.
# ---------------------------------------------------------------------------

def _make_birnn_kernel(ts, nc, s_real):
    s_pad = ts * nc

    def kernel(p_ref, whh_ref, o_ref, h_ref):
        d = pl.program_id(0)                  # 0 = forward, 1 = backward
        c = pl.program_id(1)
        c_time = c + d * (nc - 1 - 2 * c)     # time-chunk this block covers

        @pl.when(c == 0)
        def _():
            h_ref[...] = jnp.zeros_like(h_ref)

        def step(i, h):
            j = i + d * (ts - 1 - 2 * i)      # fwd walks up, bwd walks down
            h_new = jnp.tanh(
                p_ref[j].astype(jnp.float32)
                + jnp.dot(h.astype(jnp.bfloat16), whh_ref[...],
                          preferred_element_type=jnp.float32))
            if s_pad > s_real:                # mask carry at padded timesteps
                t = c_time * ts + j
                h_new = jnp.where(t < s_real, h_new, h)
            o_ref[j] = h_new.astype(o_ref.dtype)
            return h_new

        # TODO(synk): audit vreg pressure for very large H and switch to a
        # partial unroll if the bundle dump shows spills.
        h_ref[...] = lax.fori_loop(0, ts, step, h_ref[...], unroll=True)

    return kernel


def birnn_recurrence(p_all, whh_all, s_real, ts):
    """p_all: (2, S_pad, B, H) bf16 pre-activations (biases folded);
    whh_all: (2, H, H) bf16.  Returns (2, S_pad, B, H) bf16 hidden states."""
    _, s_pad, b, h = p_all.shape
    nc = s_pad // ts

    def time_map(d, c):
        return (d, c + d * (nc - 1 - 2 * c), 0, 0)

    return pl.pallas_call(
        _make_birnn_kernel(ts, nc, s_real),
        out_shape=jax.ShapeDtypeStruct((2, s_pad, b, h), jnp.bfloat16),
        grid=(2, nc),
        in_specs=[pl.BlockSpec((None, ts, b, h), time_map),
                  pl.BlockSpec((None, h, h), lambda d, c: (d, 0, 0))],
        out_specs=pl.BlockSpec((None, ts, b, h), time_map),
        scratch_shapes=[pltpu.VMEM((b, h), jnp.float32)],
        compiler_params=_cparams(("parallel", "arbitrary")),
    )(p_all, whh_all)


# ---------------------------------------------------------------------------
# Kernel 4: final FC + log_softmax, row-tiled.  Consumes the stacked (2, N, H)
#           BiRNN output directly (row-split weights, no concat); output dim
#           is lane-dense (padded to a multiple of 128).
# ---------------------------------------------------------------------------

def _fc_logsoftmax_kernel(x_ref, w_ref, b_ref, o_ref):
    logits = (b_ref[...]
              + jnp.dot(x_ref[0], w_ref[0], preferred_element_type=jnp.float32)
              + jnp.dot(x_ref[1], w_ref[1], preferred_element_type=jnp.float32))
    m = jnp.max(logits, axis=-1, keepdims=True)
    sh = logits - m
    lse = jnp.log(jnp.sum(jnp.exp(sh), axis=-1, keepdims=True))
    o_ref[...] = sh - lse


def fc_logsoftmax(x, w, b, tm):
    """x: (2, N, H) bf16; w: (2, H, O_pad) bf16; b: (1, O_pad) f32."""
    _, n, h = x.shape
    o_pad = w.shape[2]
    return pl.pallas_call(
        _fc_logsoftmax_kernel,
        out_shape=jax.ShapeDtypeStruct((n, o_pad), jnp.float32),
        grid=(n // tm,),
        in_specs=[pl.BlockSpec((2, tm, h), lambda i: (0, i, 0)),
                  _spec(w.shape, lambda i: (0, 0, 0), single=True),
                  _spec(b.shape, lambda i: (0, 0), single=True)],
        out_specs=pl.BlockSpec((tm, o_pad), lambda i: (i, 0)),
        compiler_params=_cparams(("parallel",)),
    )(x, w, b)


# ---------------------------------------------------------------------------
# Model glue: context expansion, parameter init/prep, forward pass
# ---------------------------------------------------------------------------

def context_expand(x, context):
    """Replicate-pad along seq and build context windows, CONTEXT-major /
    FEATURE-minor (the first MLP weight's rows are permuted to match)."""
    b, s, f = x.shape
    pad_l = context // 2
    pad_r = context - 1 - pad_l
    xp = jnp.pad(x, ((0, 0), (pad_l, pad_r), (0, 0)), mode="edge")
    idx = jnp.arange(s)[:, None] + jnp.arange(context)[None, :]    # (S, c)
    xw = xp[:, idx, :]                                             # (B, S, c, F)
    # TODO(synk): replace this materialized context*F blow-up with `context`
    # shifted GEMMs against per-offset (F, H) weight slices inside the first
    # MLP kernel to cut input-stage HBM traffic ~9x.
    return xw.reshape(b, s, context * f)


def init_params(key, input_dim, hidden_dim, output_dim,
                num_rnn_layers=3, context=9, num_initial_layers=3):
    """Torch-layout parameters: Linear weights stored as (in, out) = W.T."""
    params = {"initial": [], "rnns": []}
    scale = 0.1
    d_in = input_dim * context
    for _ in range(num_initial_layers):
        key, k1, k2 = jax.random.split(key, 3)
        params["initial"].append((
            scale * jax.random.normal(k1, (d_in, hidden_dim), jnp.float32),
            scale * jax.random.normal(k2, (hidden_dim,), jnp.float32),
        ))
        d_in = hidden_dim
    for i in range(num_rnn_layers):
        rnn_in = hidden_dim if i == 0 else hidden_dim * 2
        keys = jax.random.split(key, 9)
        key = keys[0]
        params["rnns"].append({
            "wih_f": scale * jax.random.normal(keys[1], (rnn_in, hidden_dim), jnp.float32),
            "bih_f": scale * jax.random.normal(keys[2], (hidden_dim,), jnp.float32),
            "whh_f": scale * jax.random.normal(keys[3], (hidden_dim, hidden_dim), jnp.float32),
            "bhh_f": scale * jax.random.normal(keys[4], (hidden_dim,), jnp.float32),
            "wih_b": scale * jax.random.normal(keys[5], (rnn_in, hidden_dim), jnp.float32),
            "bih_b": scale * jax.random.normal(keys[6], (hidden_dim,), jnp.float32),
            "whh_b": scale * jax.random.normal(keys[7], (hidden_dim, hidden_dim), jnp.float32),
            "bhh_b": scale * jax.random.normal(keys[8], (hidden_dim,), jnp.float32),
        })
    key, k1, k2 = jax.random.split(key, 3)
    params["fc_w"] = scale * jax.random.normal(k1, (hidden_dim * 2, output_dim), jnp.float32)
    params["fc_b"] = scale * jax.random.normal(k2, (output_dim,), jnp.float32)
    return params


def prepare_params(params, input_dim, context):
    """One-time layout/dtype prep: bf16 matmul weights, folded RNN biases,
    permuted first-layer rows (context-major), stacked per-direction weights,
    lane-padded FC."""
    _probe_single_buffer()
    prep = {"initial": [], "rnns": []}
    for li, (w, b) in enumerate(params["initial"]):
        if li == 0:
            h = w.shape[1]
            # torch feature order is (feature, context); our windows are
            # (context, feature) -> permute the rows once.
            w = w.reshape(input_dim, context, h).transpose(1, 0, 2)
            w = w.reshape(context * input_dim, h)
        prep["initial"].append((w.astype(jnp.bfloat16),
                                b.reshape(1, -1).astype(jnp.float32)))
    for i, p in enumerate(params["rnns"]):
        hh = p["whh_f"].shape[0]
        if i == 0:
            wf = p["wih_f"][None]
            wb = p["wih_b"][None]
        else:   # input features are [fwd(0:H), bwd(H:2H)] -> split per direction
            wf = jnp.stack([p["wih_f"][:hh], p["wih_f"][hh:]])
            wb = jnp.stack([p["wih_b"][:hh], p["wih_b"][hh:]])
        prep["rnns"].append({
            "wf": wf.astype(jnp.bfloat16),
            "wb": wb.astype(jnp.bfloat16),
            "bf": (p["bih_f"] + p["bhh_f"]).reshape(1, hh).astype(jnp.float32),
            "bb": (p["bih_b"] + p["bhh_b"]).reshape(1, hh).astype(jnp.float32),
            "whh": jnp.stack([p["whh_f"], p["whh_b"]]).astype(jnp.bfloat16),
        })
    h2 = params["fc_w"].shape[0] // 2
    o = params["fc_w"].shape[1]
    o_pad = _round_up(o, 128)
    fc_w = jnp.stack([params["fc_w"][:h2], params["fc_w"][h2:]])      # (2, H, O)
    fc_w = jnp.pad(fc_w, ((0, 0), (0, 0), (0, o_pad - o)))            # zero cols
    fc_b = jnp.pad(params["fc_b"], (0, o_pad - o), constant_values=NEG_INF)
    prep["fc_w"] = fc_w.astype(jnp.bfloat16)
    prep["fc_b"] = fc_b.reshape(1, o_pad).astype(jnp.float32)
    return prep


def deepspeech_forward(prep, x, input_lengths, context=9, output_dim=None):
    # input_lengths is unused by the reference forward pass (kept for parity).
    del input_lengths
    B, S, _ = x.shape
    H = prep["initial"][-1][0].shape[1]

    # --- one layout pad, kept through the whole stack -----------------------
    ts, s_pad = _pick_chunk(S)
    b_pad = _round_up(B, 8)
    tm = _pick_tm(b_pad, s_pad)
    n = s_pad * b_pad
    xp = x
    if s_pad != S:                       # edge values == torch replicate pad
        xp = jnp.pad(xp, ((0, 0), (0, s_pad - S), (0, 0)), mode="edge")
    if b_pad != B:
        xp = jnp.pad(xp, ((0, b_pad - B), (0, 0), (0, 0)))

    xw = context_expand(xp.astype(jnp.bfloat16), context)   # (B_pad, S_pad, c*F)
    xw = jnp.transpose(xw, (1, 0, 2))                        # time-major, once

    act = initial_mlp(xw.reshape(n, -1), prep["initial"], tm)      # (N, H) bf16
    act = act.reshape(1, n, H)                                      # single part

    for p in prep["rnns"]:
        pre = rnn_preact(act, p["wf"], p["wb"], p["bf"], p["bb"], tm)   # (2,N,H)
        hid = birnn_recurrence(pre.reshape(2, s_pad, b_pad, H),
                               p["whh"], S, ts)               # (2,S_pad,B_pad,H)
        act = hid.reshape(2, n, H)                            # no concat

    logp = fc_logsoftmax(act, prep["fc_w"], prep["fc_b"], tm)   # (N, O_pad) f32
    o_pad = logp.shape[1]
    o_real = o_pad if output_dim is None else output_dim
    logp = jnp.transpose(logp.reshape(s_pad, b_pad, o_pad), (1, 0, 2))
    return logp[:B, :S, :o_real]                                # (B, S, O)


deepspeech_forward_jit = jax.jit(deepspeech_forward,
                                 static_argnames=("context", "output_dim"))


if __name__ == "__main__":
    # Small shapes consistent with the module's forward.
    B, S, F = 2, 8, 8
    HIDDEN, OUT, CONTEXT = 32, 16, 9

    key = jax.random.PRNGKey(0)
    key, kx = jax.random.split(key)
    x = jax.random.normal(kx, (B, S, F), jnp.float32)
    input_lengths = jnp.full((B,), S, jnp.int32)

    params = init_params(key, F, HIDDEN, OUT, num_rnn_layers=3,
                         context=CONTEXT, num_initial_layers=3)
    prep = prepare_params(params, F, CONTEXT)

    log_probs = deepspeech_forward_jit(prep, x, input_lengths,
                                       context=CONTEXT, output_dim=OUT)
    log_probs = jax.block_until_ready(log_probs)

    assert log_probs.shape == (B, S, OUT)
    # log_softmax rows must exponentiate-sum to ~1
    row_sums = jnp.sum(jnp.exp(log_probs), axis=-1)
    assert bool(jnp.all(jnp.abs(row_sums - 1.0) < 1e-4))
    assert bool(jnp.all(jnp.isfinite(log_probs)))
    print("KERNEL_OK")
</pallas_src>

<mosaic_0001>
module attributes {stable_mosaic.version = 11 : i64} {
  func.func @k(%arg0: i32, %arg1: memref<8x128xf32, #tpu.memory_space<vmem>>, %arg2: memref<8x128xf32, #tpu.memory_space<vmem>>, %arg3: memref<8x128xf32, #tpu.memory_space<vmem>>) attributes {dimension_semantics = [#tpu.dimension_semantics<arbitrary>], iteration_bounds = array<i64: 2>, scalar_prefetch = 0 : i64, scratch_operands = 0 : i64, tpu.core_type = #tpu.core_type<tc>, window_params = [{transform_indices = @transform_0, window_bounds = array<i64: 8, 128>}, {pipeline_mode = #tpu.pipeline_mode<synchronous>, transform_indices = @transform_1, window_bounds = array<i64: 8, 128>}, {transform_indices = @transform_2, window_bounds = array<i64: 8, 128>}]} {
    %c0 = arith.constant 0 : index
    %c0_0 = arith.constant 0 : index
    %0 = vector.load %arg1[%c0, %c0_0] : memref<8x128xf32, #tpu.memory_space<vmem>>, vector<8x128xf32>
    %c0_1 = arith.constant 0 : index
    %c0_2 = arith.constant 0 : index
    %1 = vector.load %arg2[%c0_1, %c0_2] : memref<8x128xf32, #tpu.memory_space<vmem>>, vector<8x128xf32>
    %2 = arith.addf %0, %1 : vector<8x128xf32>
    %c0_3 = arith.constant 0 : index
    %c0_4 = arith.constant 0 : index
    %3 = vector.load %arg3[%c0_3, %c0_4] : memref<8x128xf32, #tpu.memory_space<vmem>>, vector<8x128xf32>
    tpu.vector_store %arg3[%c0_3, %c0_4], %2 {strides = array<i32>} : memref<8x128xf32, #tpu.memory_space<vmem>>, vector<8x128xf32>,
    return
  }
  func.func @transform_0(%arg0: i32) -> (i32, i32) {
    %c0_i32 = arith.constant 0 : i32
    %c0_i32_0 = arith.constant 0 : i32
    return %arg0, %c0_i32 : i32, i32
  }
  func.func @transform_1(%arg0: i32) -> (i32, i32) {
    %c0_i32 = arith.constant 0 : i32
    %c0_i32_0 = arith.constant 0 : i32
    %c0_i32_1 = arith.constant 0 : i32
    return %c0_i32, %c0_i32_0 : i32, i32
  }
  func.func @transform_2(%arg0: i32) -> (i32, i32) {
    %c0_i32 = arith.constant 0 : i32
    %c0_i32_0 = arith.constant 0 : i32
    return %arg0, %c0_i32 : i32, i32
  }
}

module attributes {stable_mosaic.version = 11 : i64} {
  func.func @kernel(%arg0: i32, %arg1: memref<1x64x32xbf16, #tpu.memory_space<vmem>>, %arg2: memref<1x32x32xbf16, #tpu.memory_space<vmem>>, %arg3: memref<1x32x32xbf16, #tpu.memory_space<vmem>>, %arg4: memref<1x32xf32, #tpu.memory_space<vmem>>, %arg5: memref<1x32xf32, #tpu.memory_space<vmem>>, %arg6: memref<2x64x32xbf16, #tpu.memory_space<vmem>>) attributes {dimension_semantics = [#tpu.dimension_semantics<parallel>], iteration_bounds = array<i64: 1>, scalar_prefetch = 0 : i64, scratch_operands = 0 : i64, tpu.core_type = #tpu.core_type<tc>, window_params = [{transform_indices = @transform_0, window_bounds = array<i64: 1, 64, 32>}, {pipeline_mode = #tpu.pipeline_mode<synchronous>, transform_indices = @transform_1, window_bounds = array<i64: 1, 32, 32>}, {pipeline_mode = #tpu.pipeline_mode<synchronous>, transform_indices = @transform_2, window_bounds = array<i64: 1, 32, 32>}, {pipeline_mode = #tpu.pipeline_mode<synchronous>, transform_indices = @transform_3, window_bounds = array<i64: 1, 32>}, {pipeline_mode = #tpu.pipeline_mode<synchronous>, transform_indices = @transform_4, window_bounds = array<i64: 1, 32>}, {transform_indices = @transform_5, window_bounds = array<i64: 2, 64, 32>}]} {
    %c0 = arith.constant 0 : index
    %c0_0 = arith.constant 0 : index
    %0 = vector.load %arg4[%c0, %c0_0] : memref<1x32xf32, #tpu.memory_space<vmem>>, vector<1x32xf32>
    %c0_1 = arith.constant 0 : index
    %c0_2 = arith.constant 0 : index
    %1 = vector.load %arg5[%c0_1, %c0_2] : memref<1x32xf32, #tpu.memory_space<vmem>>, vector<1x32xf32>
    %c0_3 = arith.constant 0 : index
    %c0_4 = arith.constant 0 : index
    %c0_5 = arith.constant 0 : index
    %2 = vector.load %arg1[%c0_3, %c0_4, %c0_5] : memref<1x64x32xbf16, #tpu.memory_space<vmem>>, vector<1x64x32xbf16>
    %3 = vector.shape_cast %2 : vector<1x64x32xbf16> to vector<64x32xbf16>
    %c0_6 = arith.constant 0 : index
    %c0_7 = arith.constant 0 : index
    %c0_8 = arith.constant 0 : index
    %4 = vector.load %arg2[%c0_6, %c0_7, %c0_8] : memref<1x32x32xbf16, #tpu.memory_space<vmem>>, vector<1x32x32xbf16>
    %5 = vector.shape_cast %4 : vector<1x32x32xbf16> to vector<32x32xbf16>
    %cst = arith.constant dense<0.000000e+00> : vector<64x32xf32>
    %6 = tpu.matmul %3, %5, %cst {dimension_numbers = #tpu.dot_dimension_numbers<[1], [0], [0], [1], [0, 0, 1, 1], [], []>} : vector<64x32xbf16>, vector<32x32xbf16>, vector<64x32xf32> -> vector<64x32xf32>
    %7 = vector.broadcast %0 : vector<1x32xf32> to vector<64x32xf32>
    %8 = arith.addf %7, %6 : vector<64x32xf32>
    %c0_9 = arith.constant 0 : index
    %c0_10 = arith.constant 0 : index
    %c0_11 = arith.constant 0 : index
    %9 = vector.load %arg3[%c0_9, %c0_10, %c0_11] : memref<1x32x32xbf16, #tpu.memory_space<vmem>>, vector<1x32x32xbf16>
    %10 = vector.shape_cast %9 : vector<1x32x32xbf16> to vector<32x32xbf16>
    %cst_12 = arith.constant dense<0.000000e+00> : vector<64x32xf32>
    %11 = tpu.matmul %3, %10, %cst_12 {dimension_numbers = #tpu.dot_dimension_numbers<[1], [0], [0], [1], [0, 0, 1, 1], [], []>} : vector<64x32xbf16>, vector<32x32xbf16>, vector<64x32xf32> -> vector<64x32xf32>
    %12 = vector.broadcast %1 : vector<1x32xf32> to vector<64x32xf32>
    %13 = arith.addf %12, %11 : vector<64x32xf32>
    %14 = arith.truncf %8 : vector<64x32xf32> to vector<64x32xbf16>
    %c0_13 = arith.constant 0 : index
    %c0_14 = arith.constant 0 : index
    %c0_15 = arith.constant 0 : index
    %15 = vector.load %arg6[%c0_13, %c0_14, %c0_15] : memref<2x64x32xbf16, #tpu.memory_space<vmem>>, vector<1x64x32xbf16>
    %16 = vector.shape_cast %15 : vector<1x64x32xbf16> to vector<64x32xbf16>
    %17 = vector.shape_cast %14 : vector<64x32xbf16> to vector<1x64x32xbf16>
    tpu.vector_store %arg6[%c0_13, %c0_14, %c0_15], %17 {strides = array<i32>} : memref<2x64x32xbf16, #tpu.memory_space<vmem>>, vector<1x64x32xbf16>,
    %18 = arith.truncf %13 : vector<64x32xf32> to vector<64x32xbf16>
    %c1 = arith.constant 1 : index
    %c0_16 = arith.constant 0 : index
    %c0_17 = arith.constant 0 : index
    %19 = vector.load %arg6[%c1, %c0_16, %c0_17] : memref<2x64x32xbf16, #tpu.memory_space<vmem>>, vector<1x64x32xbf16>
    %20 = vector.shape_cast %19 : vector<1x64x32xbf16> to vector<64x32xbf16>
    %21 = vector.shape_cast %18 : vector<64x32xbf16> to vector<1x64x32xbf16>
    tpu.vector_store %arg6[%c1, %c0_16, %c0_17], %21 {strides = array<i32>} : memref<2x64x32xbf16, #tpu.memory_space<vmem>>, vector<1x64x32xbf16>,
    return
  }
  func.func @transform_0(%arg0: i32) -> (i32, i32, i32) {
    %c0_i32 = arith.constant 0 : i32
    %c0_i32_0 = arith.constant 0 : i32
    %c0_i32_1 = arith.constant 0 : i32
    return %c0_i32, %arg0, %c0_i32_0 : i32, i32, i32
  }
  func.func @transform_1(%arg0: i32) -> (i32, i32, i32) {
    %c0_i32 = arith.constant 0 : i32
    %c0_i32_0 = arith.constant 0 : i32
    %c0_i32_1 = arith.constant 0 : i32
    %c0_i32_2 = arith.constant 0 : i32
    return %c0_i32, %c0_i32_0, %c0_i32_1 : i32, i32, i32
  }
  func.func @transform_2(%arg0: i32) -> (i32, i32, i32) {
    %c0_i32 = arith.constant 0 : i32
    %c0_i32_0 = arith.constant 0 : i32
    %c0_i32_1 = arith.constant 0 : i32
    %c0_i32_2 = arith.constant 0 : i32
    return %c0_i32, %c0_i32_0, %c0_i32_1 : i32, i32, i32
  }
  func.func @transform_3(%arg0: i32) -> (i32, i32) {
    %c0_i32 = arith.constant 0 : i32
    %c0_i32_0 = arith.constant 0 : i32
    %c0_i32_1 = arith.constant 0 : i32
    return %c0_i32, %c0_i32_0 : i32, i32
  }
  func.func @transform_4(%arg0: i32) -> (i32, i32) {
    %c0_i32 = arith.constant 0 : i32
    %c0_i32_0 = arith.constant 0 : i32
    %c0_i32_1 = arith.constant 0 : i32
    return %c0_i32, %c0_i32_0 : i32, i32
  }
  func.func @transform_5(%arg0: i32) -> (i32, i32, i32) {
    %c0_i32 = arith.constant 0 : i32
    %c0_i32_0 = arith.constant 0 : i32
    %c0_i32_1 = arith.constant 0 : i32
    return %c0_i32, %arg0, %c0_i32_0 : i32, i32, i32
  }
}

module attributes {stable_mosaic.version = 11 : i64} {
  func.func @kernel(%arg0: i32, %arg1: memref<64x72xbf16, #tpu.memory_space<vmem>>, %arg2: memref<72x32xbf16, #tpu.memory_space<vmem>>, %arg3: memref<32x32xbf16, #tpu.memory_space<vmem>>, %arg4: memref<32x32xbf16, #tpu.memory_space<vmem>>, %arg5: memref<1x32xf32, #tpu.memory_space<vmem>>, %arg6: memref<1x32xf32, #tpu.memory_space<vmem>>, %arg7: memref<1x32xf32, #tpu.memory_space<vmem>>, %arg8: memref<64x32xbf16, #tpu.memory_space<vmem>>) attributes {dimension_semantics = [#tpu.dimension_semantics<parallel>], iteration_bounds = array<i64: 1>, scalar_prefetch = 0 : i64, scratch_operands = 0 : i64, tpu.core_type = #tpu.core_type<tc>, window_params = [{transform_indices = @transform_0, window_bounds = array<i64: 64, 72>}, {pipeline_mode = #tpu.pipeline_mode<synchronous>, transform_indices = @transform_1, window_bounds = array<i64: 72, 32>}, {pipeline_mode = #tpu.pipeline_mode<synchronous>, transform_indices = @transform_2, window_bounds = array<i64: 32, 32>}, {pipeline_mode = #tpu.pipeline_mode<synchronous>, transform_indices = @transform_3, window_bounds = array<i64: 32, 32>}, {pipeline_mode = #tpu.pipeline_mode<synchronous>, transform_indices = @transform_4, window_bounds = array<i64: 1, 32>}, {pipeline_mode = #tpu.pipeline_mode<synchronous>, transform_indices = @transform_5, window_bounds = array<i64: 1, 32>}, {pipeline_mode = #tpu.pipeline_mode<synchronous>, transform_indices = @transform_6, window_bounds = array<i64: 1, 32>}, {transform_indices = @transform_7, window_bounds = array<i64: 64, 32>}]} {
    %c0 = arith.constant 0 : index
    %c0_0 = arith.constant 0 : index
    %0 = vector.load %arg1[%c0, %c0_0] : memref<64x72xbf16, #tpu.memory_space<vmem>>, vector<64x72xbf16>
    %c0_1 = arith.constant 0 : index
    %c0_2 = arith.constant 0 : index
    %1 = vector.load %arg2[%c0_1, %c0_2] : memref<72x32xbf16, #tpu.memory_space<vmem>>, vector<72x32xbf16>
    %cst = arith.constant dense<0.000000e+00> : vector<64x32xf32>
    %2 = tpu.matmul %0, %1, %cst {dimension_numbers = #tpu.dot_dimension_numbers<[1], [0], [0], [1], [0, 0, 1, 1], [], []>} : vector<64x72xbf16>, vector<72x32xbf16>, vector<64x32xf32> -> vector<64x32xf32>
    %c0_3 = arith.constant 0 : index
    %c0_4 = arith.constant 0 : index
    %3 = vector.load %arg5[%c0_3, %c0_4] : memref<1x32xf32, #tpu.memory_space<vmem>>, vector<1x32xf32>
    %4 = vector.broadcast %3 : vector<1x32xf32> to vector<64x32xf32>
    %5 = arith.addf %2, %4 : vector<64x32xf32>
    %cst_5 = arith.constant 0.000000e+00 : f32
    %cst_6 = arith.constant 2.000000e+01 : f32
    %6 = vector.broadcast %cst_5 : f32 to vector<64x32xf32>
    %7 = arith.maximumf %6, %5 : vector<64x32xf32>
    %8 = vector.broadcast %cst_6 : f32 to vector<64x32xf32>
    %9 = arith.minimumf %8, %7 : vector<64x32xf32>
    %10 = arith.truncf %9 : vector<64x32xf32> to vector<64x32xbf16>
    %c0_7 = arith.constant 0 : index
    %c0_8 = arith.constant 0 : index
    %11 = vector.load %arg3[%c0_7, %c0_8] : memref<32x32xbf16, #tpu.memory_space<vmem>>, vector<32x32xbf16>
    %cst_9 = arith.constant dense<0.000000e+00> : vector<64x32xf32>
    %12 = tpu.matmul %10, %11, %cst_9 {dimension_numbers = #tpu.dot_dimension_numbers<[1], [0], [0], [1], [0, 0, 1, 1], [], []>} : vector<64x32xbf16>, vector<32x32xbf16>, vector<64x32xf32> -> vector<64x32xf32>
    %c0_10 = arith.constant 0 : index
    %c0_11 = arith.constant 0 : index
    %13 = vector.load %arg6[%c0_10, %c0_11] : memref<1x32xf32, #tpu.memory_space<vmem>>, vector<1x32xf32>
    %14 = vector.broadcast %13 : vector<1x32xf32> to vector<64x32xf32>
    %15 = arith.addf %12, %14 : vector<64x32xf32>
    %cst_12 = arith.constant 0.000000e+00 : f32
    %cst_13 = arith.constant 2.000000e+01 : f32
    %16 = vector.broadcast %cst_12 : f32 to vector<64x32xf32>
    %17 = arith.maximumf %16, %15 : vector<64x32xf32>
    %18 = vector.broadcast %cst_13 : f32 to vector<64x32xf32>
    %19 = arith.minimumf %18, %17 : vector<64x32xf32>
    %20 = arith.truncf %19 : vector<64x32xf32> to vector<64x32xbf16>
    %c0_14 = arith.constant 0 : index
    %c0_15 = arith.constant 0 : index
    %21 = vector.load %arg4[%c0_14, %c0_15] : memref<32x32xbf16, #tpu.memory_space<vmem>>, vector<32x32xbf16>
    %cst_16 = arith.constant dense<0.000000e+00> : vector<64x32xf32>
    %22 = tpu.matmul %20, %21, %cst_16 {dimension_numbers = #tpu.dot_dimension_numbers<[1], [0], [0], [1], [0, 0, 1, 1], [], []>} : vector<64x32xbf16>, vector<32x32xbf16>, vector<64x32xf32> -> vector<64x32xf32>
    %c0_17 = arith.constant 0 : index
    %c0_18 = arith.constant 0 : index
    %23 = vector.load %arg7[%c0_17, %c0_18] : memref<1x32xf32, #tpu.memory_space<vmem>>, vector<1x32xf32>
    %24 = vector.broadcast %23 : vector<1x32xf32> to vector<64x32xf32>
    %25 = arith.addf %22, %24 : vector<64x32xf32>
    %cst_19 = arith.constant 0.000000e+00 : f32
    %cst_20 = arith.constant 2.000000e+01 : f32
    %26 = vector.broadcast %cst_19 : f32 to vector<64x32xf32>
    %27 = arith.maximumf %26, %25 : vector<64x32xf32>
    %28 = vector.broadcast %cst_20 : f32 to vector<64x32xf32>
    %29 = arith.minimumf %28, %27 : vector<64x32xf32>
    %30 = arith.truncf %29 : vector<64x32xf32> to vector<64x32xbf16>
    %c0_21 = arith.constant 0 : index
    %c0_22 = arith.constant 0 : index
    %31 = vector.load %arg8[%c0_21, %c0_22] : memref<64x32xbf16, #tpu.memory_space<vmem>>, vector<64x32xbf16>
    tpu.vector_store %arg8[%c0_21, %c0_22], %30 {strides = array<i32>} : memref<64x32xbf16, #tpu.memory_space<vmem>>, vector<64x32xbf16>,
    return
  }
  func.func @transform_0(%arg0: i32) -> (i32, i32) {
    %c0_i32 = arith.constant 0 : i32
    %c0_i32_0 = arith.constant 0 : i32
    return %arg0, %c0_i32 : i32, i32
  }
  func.func @transform_1(%arg0: i32) -> (i32, i32) {
    %c0_i32 = arith.constant 0 : i32
    %c0_i32_0 = arith.constant 0 : i32
    %c0_i32_1 = arith.constant 0 : i32
    return %c0_i32, %c0_i32_0 : i32, i32
  }
  func.func @transform_2(%arg0: i32) -> (i32, i32) {
    %c0_i32 = arith.constant 0 : i32
    %c0_i32_0 = arith.constant 0 : i32
    %c0_i32_1 = arith.constant 0 : i32
    return %c0_i32, %c0_i32_0 : i32, i32
  }
  func.func @transform_3(%arg0: i32) -> (i32, i32) {
    %c0_i32 = arith.constant 0 : i32
    %c0_i32_0 = arith.constant 0 : i32
    %c0_i32_1 = arith.constant 0 : i32
    return %c0_i32, %c0_i32_0 : i32, i32
  }
  func.func @transform_4(%arg0: i32) -> (i32, i32) {
    %c0_i32 = arith.constant 0 : i32
    %c0_i32_0 = arith.constant 0 : i32
    %c0_i32_1 = arith.constant 0 : i32
    return %c0_i32, %c0_i32_0 : i32, i32
  }
  func.func @transform_5(%arg0: i32) -> (i32, i32) {
    %c0_i32 = arith.constant 0 : i32
    %c0_i32_0 = arith.constant 0 : i32
    %c0_i32_1 = arith.constant 0 : i32
    return %c0_i32, %c0_i32_0 : i32, i32
  }
  func.func @transform_6(%arg0: i32) -> (i32, i32) {
    %c0_i32 = arith.constant 0 : i32
    %c0_i32_0 = arith.constant 0 : i32
    %c0_i32_1 = arith.constant 0 : i32
    return %c0_i32, %c0_i32_0 : i32, i32
  }
  func.func @transform_7(%arg0: i32) -> (i32, i32) {
    %c0_i32 = arith.constant 0 : i32
    %c0_i32_0 = arith.constant 0 : i32
    return %arg0, %c0_i32 : i32, i32
  }
}

module attributes {stable_mosaic.version = 11 : i64} {
  func.func @kernel(%arg0: i32, %arg1: i32, %arg2: memref<1x8x8x32xbf16, #tpu.memory_space<vmem>>, %arg3: memref<1x32x32xbf16, #tpu.memory_space<vmem>>, %arg4: memref<1x8x8x32xbf16, #tpu.memory_space<vmem>>, %arg5: memref<8x32xf32, #tpu.memory_space<vmem>>) attributes {dimension_semantics = [#tpu.dimension_semantics<parallel>, #tpu.dimension_semantics<arbitrary>], iteration_bounds = array<i64: 2, 1>, scalar_prefetch = 0 : i64, scratch_operands = 1 : i64, tpu.core_type = #tpu.core_type<tc>, window_params = [{transform_indices = @transform_0, window_bounds = array<i64: 1, 8, 8, 32>}, {transform_indices = @transform_1, window_bounds = array<i64: 1, 32, 32>}, {transform_indices = @transform_2, window_bounds = array<i64: 1, 8, 8, 32>}]} {
    %c0_i32 = arith.constant 0 : i32
    %0 = arith.cmpi eq, %arg1, %c0_i32 : i32
    %1 = arith.extui %0 : i1 to i32
    %c0_i32_0 = arith.constant 0 : i32
    %2 = arith.cmpi ne, %1, %c0_i32_0 : i32
    scf.if %2 {
      %cst_100 = arith.constant 0.000000e+00 : f32
      %157 = vector.broadcast %cst_100 : f32 to vector<8x32xf32>
      %c0_101 = arith.constant 0 : index
      %c0_102 = arith.constant 0 : index
      %158 = vector.load %arg5[%c0_101, %c0_102] : memref<8x32xf32, #tpu.memory_space<vmem>>, vector<8x32xf32>
      tpu.vector_store %arg5[%c0_101, %c0_102], %157 {strides = array<i32>} : memref<8x32xf32, #tpu.memory_space<vmem>>, vector<8x32xf32>,
    } else {
    }
    %c0 = arith.constant 0 : index
    %c0_1 = arith.constant 0 : index
    %3 = vector.load %arg5[%c0, %c0_1] : memref<8x32xf32, #tpu.memory_space<vmem>>, vector<8x32xf32>
    %c0_i32_2 = arith.constant 0 : i32
    %c2_i32 = arith.constant 2 : i32
    %4 = arith.muli %c2_i32, %c0_i32_2 : i32
    %c7_i32 = arith.constant 7 : i32
    %5 = arith.subi %c7_i32, %4 : i32
    %6 = arith.muli %arg0, %5 : i32
    %7 = arith.addi %c0_i32_2, %6 : i32
    %c0_3 = arith.constant 0 : index
    %8 = arith.index_cast %7 : i32 to index
    %c0_4 = arith.constant 0 : index
    %c0_5 = arith.constant 0 : index
    %9 = vector.load %arg2[%c0_3, %8, %c0_4, %c0_5] : memref<1x8x8x32xbf16, #tpu.memory_space<vmem>>, vector<1x1x8x32xbf16>
    %10 = vector.shape_cast %9 : vector<1x1x8x32xbf16> to vector<8x32xbf16>
    %11 = arith.extf %10 : vector<8x32xbf16> to vector<8x32xf32>
    %12 = arith.truncf %3 : vector<8x32xf32> to vector<8x32xbf16>
    %c0_6 = arith.constant 0 : index
    %c0_7 = arith.constant 0 : index
    %c0_8 = arith.constant 0 : index
    %13 = vector.load %arg3[%c0_6, %c0_7, %c0_8] : memref<1x32x32xbf16, #tpu.memory_space<vmem>>, vector<1x32x32xbf16>
    %14 = vector.shape_cast %13 : vector<1x32x32xbf16> to vector<32x32xbf16>
    %cst = arith.constant dense<0.000000e+00> : vector<8x32xf32>
    %15 = tpu.matmul %12, %14, %cst {dimension_numbers = #tpu.dot_dimension_numbers<[1], [0], [0], [1], [0, 0, 1, 1], [], []>} : vector<8x32xbf16>, vector<32x32xbf16>, vector<8x32xf32> -> vector<8x32xf32>
    %16 = arith.addf %11, %15 : vector<8x32xf32>
    %17 = math.tanh %16 : vector<8x32xf32>
    %18 = arith.truncf %17 : vector<8x32xf32> to vector<8x32xbf16>
    %c0_9 = arith.constant 0 : index
    %19 = arith.index_cast %7 : i32 to index
    %c0_10 = arith.constant 0 : index
    %c0_11 = arith.constant 0 : index
    %20 = vector.load %arg4[%c0_9, %19, %c0_10, %c0_11] : memref<1x8x8x32xbf16, #tpu.memory_space<vmem>>, vector<1x1x8x32xbf16>
    %21 = vector.shape_cast %20 : vector<1x1x8x32xbf16> to vector<8x32xbf16>
    %22 = vector.shape_cast %18 : vector<8x32xbf16> to vector<1x1x8x32xbf16>
    tpu.vector_store %arg4[%c0_9, %19, %c0_10, %c0_11], %22 {strides = array<i32>} : memref<1x8x8x32xbf16, #tpu.memory_space<vmem>>, vector<1x1x8x32xbf16>,
    %c1_i32 = arith.constant 1 : i32
    %c2_i32_12 = arith.constant 2 : i32
    %23 = arith.muli %c2_i32_12, %c1_i32 : i32
    %c7_i32_13 = arith.constant 7 : i32
    %24 = arith.subi %c7_i32_13, %23 : i32
    %25 = arith.muli %arg0, %24 : i32
    %26 = arith.addi %c1_i32, %25 : i32
    %c0_14 = arith.constant 0 : index
    %27 = arith.index_cast %26 : i32 to index
    %c0_15 = arith.constant 0 : index
    %c0_16 = arith.constant 0 : index
    %28 = vector.load %arg2[%c0_14, %27, %c0_15, %c0_16] : memref<1x8x8x32xbf16, #tpu.memory_space<vmem>>, vector<1x1x8x32xbf16>
    %29 = vector.shape_cast %28 : vector<1x1x8x32xbf16> to vector<8x32xbf16>
    %30 = arith.extf %29 : vector<8x32xbf16> to vector<8x32xf32>
    %31 = arith.truncf %17 : vector<8x32xf32> to vector<8x32xbf16>
    %c0_17 = arith.constant 0 : index
    %c0_18 = arith.constant 0 : index
    %c0_19 = arith.constant 0 : index
    %32 = vector.load %arg3[%c0_17, %c0_18, %c0_19] : memref<1x32x32xbf16, #tpu.memory_space<vmem>>, vector<1x32x32xbf16>
    %33 = vector.shape_cast %32 : vector<1x32x32xbf16> to vector<32x32xbf16>
    %cst_20 = arith.constant dense<0.000000e+00> : vector<8x32xf32>
    %34 = tpu.matmul %31, %33, %cst_20 {dimension_numbers = #tpu.dot_dimension_numbers<[1], [0], [0], [1], [0, 0, 1, 1], [], []>} : vector<8x32xbf16>, vector<32x32xbf16>, vector<8x32xf32> -> vector<8x32xf32>
    %35 = arith.addf %30, %34 : vector<8x32xf32>
    %36 = math.tanh %35 : vector<8x32xf32>
    %37 = arith.truncf %36 : vector<8x32xf32> to vector<8x32xbf16>
    %c0_21 = arith.constant 0 : index
    %38 = arith.index_cast %26 : i32 to index
    %c0_22 = arith.constant 0 : index
    %c0_23 = arith.constant 0 : index
    %39 = vector.load %arg4[%c0_21, %38, %c0_22, %c0_23] : memref<1x8x8x32xbf16, #tpu.memory_space<vmem>>, vector<1x1x8x32xbf16>
    %40 = vector.shape_cast %39 : vector<1x1x8x32xbf16> to vector<8x32xbf16>
    %41 = vector.shape_cast %37 : vector<8x32xbf16> to vector<1x1x8x32xbf16>
    tpu.vector_store %arg4[%c0_21, %38, %c0_22, %c0_23], %41 {strides = array<i32>} : memref<1x8x8x32xbf16, #tpu.memory_space<vmem>>, vector<1x1x8x32xbf16>,
    %c2_i32_24 = arith.constant 2 : i32
    %c2_i32_25 = arith.constant 2 : i32
    %42 = arith.muli %c2_i32_25, %c2_i32_24 : i32
    %c7_i32_26 = arith.constant 7 : i32
    %43 = arith.subi %c7_i32_26, %42 : i32
    %44 = arith.muli %arg0, %43 : i32
    %45 = arith.addi %c2_i32_24, %44 : i32
    %c0_27 = arith.constant 0 : index
    %46 = arith.index_cast %45 : i32 to index
    %c0_28 = arith.constant 0 : index
    %c0_29 = arith.constant 0 : index
    %47 = vector.load %arg2[%c0_27, %46, %c0_28, %c0_29] : memref<1x8x8x32xbf16, #tpu.memory_space<vmem>>, vector<1x1x8x32xbf16>
    %48 = vector.shape_cast %47 : vector<1x1x8x32xbf16> to vector<8x32xbf16>
    %49 = arith.extf %48 : vector<8x32xbf16> to vector<8x32xf32>
    %50 = arith.truncf %36 : vector<8x32xf32> to vector<8x32xbf16>
    %c0_30 = arith.constant 0 : index
    %c0_31 = arith.constant 0 : index
    %c0_32 = arith.constant 0 : index
    %51 = vector.load %arg3[%c0_30, %c0_31, %c0_32] : memref<1x32x32xbf16, #tpu.memory_space<vmem>>, vector<1x32x32xbf16>
    %52 = vector.shape_cast %51 : vector<1x32x32xbf16> to vector<32x32xbf16>
    %cst_33 = arith.constant dense<0.000000e+00> : vector<8x32xf32>
    %53 = tpu.matmul %50, %52, %cst_33 {dimension_numbers = #tpu.dot_dimension_numbers<[1], [0], [0], [1], [0, 0, 1, 1], [], []>} : vector<8x32xbf16>, vector<32x32xbf16>, vector<8x32xf32> -> vector<8x32xf32>
    %54 = arith.addf %49, %53 : vector<8x32xf32>
    %55 = math.tanh %54 : vector<8x32xf32>
    %56 = arith.truncf %55 : vector<8x32xf32> to vector<8x32xbf16>
    %c0_34 = arith.constant 0 : index
    %57 = arith.index_cast %45 : i32 to index
    %c0_35 = arith.constant 0 : index
    %c0_36 = arith.constant 0 : index
    %58 = vector.load %arg4[%c0_34, %57, %c0_35, %c0_36] : memref<1x8x8x32xbf16, #tpu.memory_space<vmem>>, vector<1x1x8x32xbf16>
    %59 = vector.shape_cast %58 : vector<1x1x8x32xbf16> to vector<8x32xbf16>
    %60 = vector.shape_cast %56 : vector<8x32xbf16> to vector<1x1x8x32xbf16>
    tpu.vector_store %arg4[%c0_34, %57, %c0_35, %c0_36], %60 {strides = array<i32>} : memref<1x8x8x32xbf16, #tpu.memory_space<vmem>>, vector<1x1x8x32xbf16>,
    %c3_i32 = arith.constant 3 : i32
    %c2_i32_37 = arith.constant 2 : i32
    %61 = arith.muli %c2_i32_37, %c3_i32 : i32
    %c7_i32_38 = arith.constant 7 : i32
    %62 = arith.subi %c7_i32_38, %61 : i32
    %63 = arith.muli %arg0, %62 : i32
    %64 = arith.addi %c3_i32, %63 : i32
    %c0_39 = arith.constant 0 : index
    %65 = arith.index_cast %64 : i32 to index
    %c0_40 = arith.constant 0 : index
    %c0_41 = arith.constant 0 : index
    %66 = vector.load %arg2[%c0_39, %65, %c0_40, %c0_41] : memref<1x8x8x32xbf16, #tpu.memory_space<vmem>>, vector<1x1x8x32xbf16>
    %67 = vector.shape_cast %66 : vector<1x1x8x32xbf16> to vector<8x32xbf16>
    %68 = arith.extf %67 : vector<8x32xbf16> to vector<8x32xf32>
    %69 = arith.truncf %55 : vector<8x32xf32> to vector<8x32xbf16>
    %c0_42 = arith.constant 0 : index
    %c0_43 = arith.constant 0 : index
    %c0_44 = arith.constant 0 : index
    %70 = vector.load %arg3[%c0_42, %c0_43, %c0_44] : memref<1x32x32xbf16, #tpu.memory_space<vmem>>, vector<1x32x32xbf16>
    %71 = vector.shape_cast %70 : vector<1x32x32xbf16> to vector<32x32xbf16>
    %cst_45 = arith.constant dense<0.000000e+00> : vector<8x32xf32>
    %72 = tpu.matmul %69, %71, %cst_45 {dimension_numbers = #tpu.dot_dimension_numbers<[1], [0], [0], [1], [0, 0, 1, 1], [], []>} : vector<8x32xbf16>, vector<32x32xbf16>, vector<8x32xf32> -> vector<8x32xf32>
    %73 = arith.addf %68, %72 : vector<8x32xf32>
    %74 = math.tanh %73 : vector<8x32xf32>
    %75 = arith.truncf %74 : vector<8x32xf32> to vector<8x32xbf16>
    %c0_46 = arith.constant 0 : index
    %76 = arith.index_cast %64 : i32 to index
    %c0_47 = arith.constant 0 : index
    %c0_48 = arith.constant 0 : index
    %77 = vector.load %arg4[%c0_46, %76, %c0_47, %c0_48] : memref<1x8x8x32xbf16, #tpu.memory_space<vmem>>, vector<1x1x8x32xbf16>
    %78 = vector.shape_cast %77 : vector<1x1x8x32xbf16> to vector<8x32xbf16>
    %79 = vector.shape_cast %75 : vector<8x32xbf16> to vector<1x1x8x32xbf16>
    tpu.vector_store %arg4[%c0_46, %76, %c0_47, %c0_48], %79 {strides = array<i32>} : memref<1x8x8x32xbf16, #tpu.memory_space<vmem>>, vector<1x1x8x32xbf16>,
    %c4_i32 = arith.constant 4 : i32
    %c2_i32_49 = arith.constant 2 : i32
    %80 = arith.muli %c2_i32_49, %c4_i32 : i32
    %c7_i32_50 = arith.constant 7 : i32
    %81 = arith.subi %c7_i32_50, %80 : i32
    %82 = arith.muli %arg0, %81 : i32
    %83 = arith.addi %c4_i32, %82 : i32
    %c0_51 = arith.constant 0 : index
    %84 = arith.index_cast %83 : i32 to index
    %c0_52 = arith.constant 0 : index
    %c0_53 = arith.constant 0 : index
    %85 = vector.load %arg2[%c0_51, %84, %c0_52, %c0_53] : memref<1x8x8x32xbf16, #tpu.memory_space<vmem>>, vector<1x1x8x32xbf16>
    %86 = vector.shape_cast %85 : vector<1x1x8x32xbf16> to vector<8x32xbf16>
    %87 = arith.extf %86 : vector<8x32xbf16> to vector<8x32xf32>
    %88 = arith.truncf %74 : vector<8x32xf32> to vector<8x32xbf16>
    %c0_54 = arith.constant 0 : index
    %c0_55 = arith.constant 0 : index
    %c0_56 = arith.constant 0 : index
    %89 = vector.load %arg3[%c0_54, %c0_55, %c0_56] : memref<1x32x32xbf16, #tpu.memory_space<vmem>>, vector<1x32x32xbf16>
    %90 = vector.shape_cast %89 : vector<1x32x32xbf16> to vector<32x32xbf16>
    %cst_57 = arith.constant dense<0.000000e+00> : vector<8x32xf32>
    %91 = tpu.matmul %88, %90, %cst_57 {dimension_numbers = #tpu.dot_dimension_numbers<[1], [0], [0], [1], [0, 0, 1, 1], [], []>} : vector<8x32xbf16>, vector<32x32xbf16>, vector<8x32xf32> -> vector<8x32xf32>
    %92 = arith.addf %87, %91 : vector<8x32xf32>
    %93 = math.tanh %92 : vector<8x32xf32>
    %94 = arith.truncf %93 : vector<8x32xf32> to vector<8x32xbf16>
    %c0_58 = arith.constant 0 : index
    %95 = arith.index_cast %83 : i32 to index
    %c0_59 = arith.constant 0 : index
    %c0_60 = arith.constant 0 : index
    %96 = vector.load %arg4[%c0_58, %95, %c0_59, %c0_60] : memref<1x8x8x32xbf16, #tpu.memory_space<vmem>>, vector<1x1x8x32xbf16>
    %97 = vector.shape_cast %96 : vector<1x1x8x32xbf16> to vector<8x32xbf16>
    %98 = vector.shape_cast %94 : vector<8x32xbf16> to vector<1x1x8x32xbf16>
    tpu.vector_store %arg4[%c0_58, %95, %c0_59, %c0_60], %98 {strides = array<i32>} : memref<1x8x8x32xbf16, #tpu.memory_space<vmem>>, vector<1x1x8x32xbf16>,
    %c5_i32 = arith.constant 5 : i32
    %c2_i32_61 = arith.constant 2 : i32
    %99 = arith.muli %c2_i32_61, %c5_i32 : i32
    %c7_i32_62 = arith.constant 7 : i32
    %100 = arith.subi %c7_i32_62, %99 : i32
    %101 = arith.muli %arg0, %100 : i32
    %102 = arith.addi %c5_i32, %101 : i32
    %c0_63 = arith.constant 0 : index
    %103 = arith.index_cast %102 : i32 to index
    %c0_64 = arith.constant 0 : index
    %c0_65 = arith.constant 0 : index
    %104 = vector.load %arg2[%c0_63, %103, %c0_64, %c0_65] : memref<1x8x8x32xbf16, #tpu.memory_space<vmem>>, vector<1x1x8x32xbf16>
    %105 = vector.shape_cast %104 : vector<1x1x8x32xbf16> to vector<8x32xbf16>
    %106 = arith.extf %105 : vector<8x32xbf16> to vector<8x32xf32>
    %107 = arith.truncf %93 : vector<8x32xf32> to vector<8x32xbf16>
    %c0_66 = arith.constant 0 : index
    %c0_67 = arith.constant 0 : index
    %c0_68 = arith.constant 0 : index
    %108 = vector.load %arg3[%c0_66, %c0_67, %c0_68] : memref<1x32x32xbf16, #tpu.memory_space<vmem>>, vector<1x32x32xbf16>
    %109 = vector.shape_cast %108 : vector<1x32x32xbf16> to vector<32x32xbf16>
    %cst_69 = arith.constant dense<0.000000e+00> : vector<8x32xf32>
    %110 = tpu.matmul %107, %109, %cst_69 {dimension_numbers = #tpu.dot_dimension_numbers<[1], [0], [0], [1], [0, 0, 1, 1], [], []>} : vector<8x32xbf16>, vector<32x32xbf16>, vector<8x32xf32> -> vector<8x32xf32>
    %111 = arith.addf %106, %110 : vector<8x32xf32>
    %112 = math.tanh %111 : vector<8x32xf32>
    %113 = arith.truncf %112 : vector<8x32xf32> to vector<8x32xbf16>
    %c0_70 = arith.constant 0 : index
    %114 = arith.index_cast %102 : i32 to index
    %c0_71 = arith.constant 0 : index
    %c0_72 = arith.constant 0 : index
    %115 = vector.load %arg4[%c0_70, %114, %c0_71, %c0_72] : memref<1x8x8x32xbf16, #tpu.memory_space<vmem>>, vector<1x1x8x32xbf16>
    %116 = vector.shape_cast %115 : vector<1x1x8x32xbf16> to vector<8x32xbf16>
    %117 = vector.shape_cast %113 : vector<8x32xbf16> to vector<1x1x8x32xbf16>
    tpu.vector_store %arg4[%c0_70, %114, %c0_71, %c0_72], %117 {strides = array<i32>} : memref<1x8x8x32xbf16, #tpu.memory_space<vmem>>, vector<1x1x8x32xbf16>,
    %c6_i32 = arith.constant 6 : i32
    %c2_i32_73 = arith.constant 2 : i32
    %118 = arith.muli %c2_i32_73, %c6_i32 : i32
    %c7_i32_74 = arith.constant 7 : i32
    %119 = arith.subi %c7_i32_74, %118 : i32
    %120 = arith.muli %arg0, %119 : i32
    %121 = arith.addi %c6_i32, %120 : i32
    %c0_75 = arith.constant 0 : index
    %122 = arith.index_cast %121 : i32 to index
    %c0_76 = arith.constant 0 : index
    %c0_77 = arith.constant 0 : index
    %123 = vector.load %arg2[%c0_75, %122, %c0_76, %c0_77] : memref<1x8x8x32xbf16, #tpu.memory_space<vmem>>, vector<1x1x8x32xbf16>
    %124 = vector.shape_cast %123 : vector<1x1x8x32xbf16> to vector<8x32xbf16>
    %125 = arith.extf %124 : vector<8x32xbf16> to vector<8x32xf32>
    %126 = arith.truncf %112 : vector<8x32xf32> to vector<8x32xbf16>
    %c0_78 = arith.constant 0 : index
    %c0_79 = arith.constant 0 : index
    %c0_80 = arith.constant 0 : index
    %127 = vector.load %arg3[%c0_78, %c0_79, %c0_80] : memref<1x32x32xbf16, #tpu.memory_space<vmem>>, vector<1x32x32xbf16>
    %128 = vector.shape_cast %127 : vector<1x32x32xbf16> to vector<32x32xbf16>
    %cst_81 = arith.constant dense<0.000000e+00> : vector<8x32xf32>
    %129 = tpu.matmul %126, %128, %cst_81 {dimension_numbers = #tpu.dot_dimension_numbers<[1], [0], [0], [1], [0, 0, 1, 1], [], []>} : vector<8x32xbf16>, vector<32x32xbf16>, vector<8x32xf32> -> vector<8x32xf32>
    %130 = arith.addf %125, %129 : vector<8x32xf32>
    %131 = math.tanh %130 : vector<8x32xf32>
    %132 = arith.truncf %131 : vector<8x32xf32> to vector<8x32xbf16>
    %c0_82 = arith.constant 0 : index
    %133 = arith.index_cast %121 : i32 to index
    %c0_83 = arith.constant 0 : index
    %c0_84 = arith.constant 0 : index
    %134 = vector.load %arg4[%c0_82, %133, %c0_83, %c0_84] : memref<1x8x8x32xbf16, #tpu.memory_space<vmem>>, vector<1x1x8x32xbf16>
    %135 = vector.shape_cast %134 : vector<1x1x8x32xbf16> to vector<8x32xbf16>
    %136 = vector.shape_cast %132 : vector<8x32xbf16> to vector<1x1x8x32xbf16>
    tpu.vector_store %arg4[%c0_82, %133, %c0_83, %c0_84], %136 {strides = array<i32>} : memref<1x8x8x32xbf16, #tpu.memory_space<vmem>>, vector<1x1x8x32xbf16>,
    %c7_i32_85 = arith.constant 7 : i32
    %c2_i32_86 = arith.constant 2 : i32
    %137 = arith.muli %c2_i32_86, %c7_i32_85 : i32
    %c7_i32_87 = arith.constant 7 : i32
    %138 = arith.subi %c7_i32_87, %137 : i32
    %139 = arith.muli %arg0, %138 : i32
    %140 = arith.addi %c7_i32_85, %139 : i32
    %c0_88 = arith.constant 0 : index
    %141 = arith.index_cast %140 : i32 to index
    %c0_89 = arith.constant 0 : index
    %c0_90 = arith.constant 0 : index
    %142 = vector.load %arg2[%c0_88, %141, %c0_89, %c0_90] : memref<1x8x8x32xbf16, #tpu.memory_space<vmem>>, vector<1x1x8x32xbf16>
    %143 = vector.shape_cast %142 : vector<1x1x8x32xbf16> to vector<8x32xbf16>
    %144 = arith.extf %143 : vector<8x32xbf16> to vector<8x32xf32>
    %145 = arith.truncf %131 : vector<8x32xf32> to vector<8x32xbf16>
    %c0_91 = arith.constant 0 : index
    %c0_92 = arith.constant 0 : index
    %c0_93 = arith.constant 0 : index
    %146 = vector.load %arg3[%c0_91, %c0_92, %c0_93] : memref<1x32x32xbf16, #tpu.memory_space<vmem>>, vector<1x32x32xbf16>
    %147 = vector.shape_cast %146 : vector<1x32x32xbf16> to vector<32x32xbf16>
    %cst_94 = arith.constant dense<0.000000e+00> : vector<8x32xf32>
    %148 = tpu.matmul %145, %147, %cst_94 {dimension_numbers = #tpu.dot_dimension_numbers<[1], [0], [0], [1], [0, 0, 1, 1], [], []>} : vector<8x32xbf16>, vector<32x32xbf16>, vector<8x32xf32> -> vector<8x32xf32>
    %149 = arith.addf %144, %148 : vector<8x32xf32>
    %150 = math.tanh %149 : vector<8x32xf32>
    %151 = arith.truncf %150 : vector<8x32xf32> to vector<8x32xbf16>
    %c0_95 = arith.constant 0 : index
    %152 = arith.index_cast %140 : i32 to index
    %c0_96 = arith.constant 0 : index
    %c0_97 = arith.constant 0 : index
    %153 = vector.load %arg4[%c0_95, %152, %c0_96, %c0_97] : memref<1x8x8x32xbf16, #tpu.memory_space<vmem>>, vector<1x1x8x32xbf16>
    %154 = vector.shape_cast %153 : vector<1x1x8x32xbf16> to vector<8x32xbf16>
    %155 = vector.shape_cast %151 : vector<8x32xbf16> to vector<1x1x8x32xbf16>
    tpu.vector_store %arg4[%c0_95, %152, %c0_96, %c0_97], %155 {strides = array<i32>} : memref<1x8x8x32xbf16, #tpu.memory_space<vmem>>, vector<1x1x8x32xbf16>,
    %c8_i32 = arith.constant 8 : i32
    %c0_98 = arith.constant 0 : index
    %c0_99 = arith.constant 0 : index
    %156 = vector.load %arg5[%c0_98, %c0_99] : memref<8x32xf32, #tpu.memory_space<vmem>>, vector<8x32xf32>
    tpu.vector_store %arg5[%c0_98, %c0_99], %150 {strides = array<i32>} : memref<8x32xf32, #tpu.memory_space<vmem>>, vector<8x32xf32>,
    return
  }
  func.func @transform_0(%arg0: i32, %arg1: i32) -> (i32, i32, i32, i32) {
    %c2_i32 = arith.constant 2 : i32
    %0 = arith.muli %c2_i32, %arg1 : i32
    %c0_i32 = arith.constant 0 : i32
    %1 = arith.subi %c0_i32, %0 : i32
    %2 = arith.muli %arg0, %1 : i32
    %3 = arith.addi %arg1, %2 : i32
    %c0_i32_0 = arith.constant 0 : i32
    %c0_i32_1 = arith.constant 0 : i32
    %c0_i32_2 = arith.constant 0 : i32
    return %arg0, %3, %c0_i32_0, %c0_i32_1 : i32, i32, i32, i32
  }
  func.func @transform_1(%arg0: i32, %arg1: i32) -> (i32, i32, i32) {
    %c0_i32 = arith.constant 0 : i32
    %c0_i32_0 = arith.constant 0 : i32
    %c0_i32_1 = arith.constant 0 : i32
    return %arg0, %c0_i32, %c0_i32_0 : i32, i32, i32
  }
  func.func @transform_2(%arg0: i32, %arg1: i32) -> (i32, i32, i32, i32) {
    %c2_i32 = arith.constant 2 : i32
    %0 = arith.muli %c2_i32, %arg1 : i32
    %c0_i32 = arith.constant 0 : i32
    %1 = arith.subi %c0_i32, %0 : i32
    %2 = arith.muli %arg0, %1 : i32
    %3 = arith.addi %arg1, %2 : i32
    %c0_i32_0 = arith.constant 0 : i32
    %c0_i32_1 = arith.constant 0 : i32
    %c0_i32_2 = arith.constant 0 : i32
    return %arg0, %3, %c0_i32_0, %c0_i32_1 : i32, i32, i32, i32
  }
}

module attributes {stable_mosaic.version = 11 : i64} {
  func.func @kernel(%arg0: i32, %arg1: memref<2x64x32xbf16, #tpu.memory_space<vmem>>, %arg2: memref<2x32x32xbf16, #tpu.memory_space<vmem>>, %arg3: memref<2x32x32xbf16, #tpu.memory_space<vmem>>, %arg4: memref<1x32xf32, #tpu.memory_space<vmem>>, %arg5: memref<1x32xf32, #tpu.memory_space<vmem>>, %arg6: memref<2x64x32xbf16, #tpu.memory_space<vmem>>) attributes {dimension_semantics = [#tpu.dimension_semantics<parallel>], iteration_bounds = array<i64: 1>, scalar_prefetch = 0 : i64, scratch_operands = 0 : i64, tpu.core_type = #tpu.core_type<tc>, window_params = [{transform_indices = @transform_0, window_bounds = array<i64: 2, 64, 32>}, {pipeline_mode = #tpu.pipeline_mode<synchronous>, transform_indices = @transform_1, window_bounds = array<i64: 2, 32, 32>}, {pipeline_mode = #tpu.pipeline_mode<synchronous>, transform_indices = @transform_2, window_bounds = array<i64: 2, 32, 32>}, {pipeline_mode = #tpu.pipeline_mode<synchronous>, transform_indices = @transform_3, window_bounds = array<i64: 1, 32>}, {pipeline_mode = #tpu.pipeline_mode<synchronous>, transform_indices = @transform_4, window_bounds = array<i64: 1, 32>}, {transform_indices = @transform_5, window_bounds = array<i64: 2, 64, 32>}]} {
    %c0 = arith.constant 0 : index
    %c0_0 = arith.constant 0 : index
    %0 = vector.load %arg4[%c0, %c0_0] : memref<1x32xf32, #tpu.memory_space<vmem>>, vector<1x32xf32>
    %c0_1 = arith.constant 0 : index
    %c0_2 = arith.constant 0 : index
    %1 = vector.load %arg5[%c0_1, %c0_2] : memref<1x32xf32, #tpu.memory_space<vmem>>, vector<1x32xf32>
    %c0_3 = arith.constant 0 : index
    %c0_4 = arith.constant 0 : index
    %c0_5 = arith.constant 0 : index
    %2 = vector.load %arg1[%c0_3, %c0_4, %c0_5] : memref<2x64x32xbf16, #tpu.memory_space<vmem>>, vector<1x64x32xbf16>
    %3 = vector.shape_cast %2 : vector<1x64x32xbf16> to vector<64x32xbf16>
    %c0_6 = arith.constant 0 : index
    %c0_7 = arith.constant 0 : index
    %c0_8 = arith.constant 0 : index
    %4 = vector.load %arg2[%c0_6, %c0_7, %c0_8] : memref<2x32x32xbf16, #tpu.memory_space<vmem>>, vector<1x32x32xbf16>
    %5 = vector.shape_cast %4 : vector<1x32x32xbf16> to vector<32x32xbf16>
    %cst = arith.constant dense<0.000000e+00> : vector<64x32xf32>
    %6 = tpu.matmul %3, %5, %cst {dimension_numbers = #tpu.dot_dimension_numbers<[1], [0], [0], [1], [0, 0, 1, 1], [], []>} : vector<64x32xbf16>, vector<32x32xbf16>, vector<64x32xf32> -> vector<64x32xf32>
    %7 = vector.broadcast %0 : vector<1x32xf32> to vector<64x32xf32>
    %8 = arith.addf %7, %6 : vector<64x32xf32>
    %c0_9 = arith.constant 0 : index
    %c0_10 = arith.constant 0 : index
    %c0_11 = arith.constant 0 : index
    %9 = vector.load %arg3[%c0_9, %c0_10, %c0_11] : memref<2x32x32xbf16, #tpu.memory_space<vmem>>, vector<1x32x32xbf16>
    %10 = vector.shape_cast %9 : vector<1x32x32xbf16> to vector<32x32xbf16>
    %cst_12 = arith.constant dense<0.000000e+00> : vector<64x32xf32>
    %11 = tpu.matmul %3, %10, %cst_12 {dimension_numbers = #tpu.dot_dimension_numbers<[1], [0], [0], [1], [0, 0, 1, 1], [], []>} : vector<64x32xbf16>, vector<32x32xbf16>, vector<64x32xf32> -> vector<64x32xf32>
    %12 = vector.broadcast %1 : vector<1x32xf32> to vector<64x32xf32>
    %13 = arith.addf %12, %11 : vector<64x32xf32>
    %c1 = arith.constant 1 : index
    %c0_13 = arith.constant 0 : index
    %c0_14 = arith.constant 0 : index
    %14 = vector.load %arg1[%c1, %c0_13, %c0_14] : memref<2x64x32xbf16, #tpu.memory_space<vmem>>, vector<1x64x32xbf16>
    %15 = vector.shape_cast %14 : vector<1x64x32xbf16> to vector<64x32xbf16>
    %c1_15 = arith.constant 1 : index
    %c0_16 = arith.constant 0 : index
    %c0_17 = arith.constant 0 : index
    %16 = vector.load %arg2[%c1_15, %c0_16, %c0_17] : memref<2x32x32xbf16, #tpu.memory_space<vmem>>, vector<1x32x32xbf16>
    %17 = vector.shape_cast %16 : vector<1x32x32xbf16> to vector<32x32xbf16>
    %cst_18 = arith.constant dense<0.000000e+00> : vector<64x32xf32>
    %18 = tpu.matmul %15, %17, %cst_18 {dimension_numbers = #tpu.dot_dimension_numbers<[1], [0], [0], [1], [0, 0, 1, 1], [], []>} : vector<64x32xbf16>, vector<32x32xbf16>, vector<64x32xf32> -> vector<64x32xf32>
    %19 = arith.addf %8, %18 : vector<64x32xf32>
    %c1_19 = arith.constant 1 : index
    %c0_20 = arith.constant 0 : index
    %c0_21 = arith.constant 0 : index
    %20 = vector.load %arg3[%c1_19, %c0_20, %c0_21] : memref<2x32x32xbf16, #tpu.memory_space<vmem>>, vector<1x32x32xbf16>
    %21 = vector.shape_cast %20 : vector<1x32x32xbf16> to vector<32x32xbf16>
    %cst_22 = arith.constant dense<0.000000e+00> : vector<64x32xf32>
    %22 = tpu.matmul %15, %21, %cst_22 {dimension_numbers = #tpu.dot_dimension_numbers<[1], [0], [0], [1], [0, 0, 1, 1], [], []>} : vector<64x32xbf16>, vector<32x32xbf16>, vector<64x32xf32> -> vector<64x32xf32>
    %23 = arith.addf %13, %22 : vector<64x32xf32>
    %24 = arith.truncf %19 : vector<64x32xf32> to vector<64x32xbf16>
    %c0_23 = arith.constant 0 : index
    %c0_24 = arith.constant 0 : index
    %c0_25 = arith.constant 0 : index
    %25 = vector.load %arg6[%c0_23, %c0_24, %c0_25] : memref<2x64x32xbf16, #tpu.memory_space<vmem>>, vector<1x64x32xbf16>
    %26 = vector.shape_cast %25 : vector<1x64x32xbf16> to vector<64x32xbf16>
    %27 = vector.shape_cast %24 : vector<64x32xbf16> to vector<1x64x32xbf16>
    tpu.vector_store %arg6[%c0_23, %c0_24, %c0_25], %27 {strides = array<i32>} : memref<2x64x32xbf16, #tpu.memory_space<vmem>>, vector<1x64x32xbf16>,
    %28 = arith.truncf %23 : vector<64x32xf32> to vector<64x32xbf16>
    %c1_26 = arith.constant 1 : index
    %c0_27 = arith.constant 0 : index
    %c0_28 = arith.constant 0 : index
    %29 = vector.load %arg6[%c1_26, %c0_27, %c0_28] : memref<2x64x32xbf16, #tpu.memory_space<vmem>>, vector<1x64x32xbf16>
    %30 = vector.shape_cast %29 : vector<1x64x32xbf16> to vector<64x32xbf16>
    %31 = vector.shape_cast %28 : vector<64x32xbf16> to vector<1x64x32xbf16>
    tpu.vector_store %arg6[%c1_26, %c0_27, %c0_28], %31 {strides = array<i32>} : memref<2x64x32xbf16, #tpu.memory_space<vmem>>, vector<1x64x32xbf16>,
    return
  }
  func.func @transform_0(%arg0: i32) -> (i32, i32, i32) {
    %c0_i32 = arith.constant 0 : i32
    %c0_i32_0 = arith.constant 0 : i32
    %c0_i32_1 = arith.constant 0 : i32
    return %c0_i32, %arg0, %c0_i32_0 : i32, i32, i32
  }
  func.func @transform_1(%arg0: i32) -> (i32, i32, i32) {
    %c0_i32 = arith.constant 0 : i32
    %c0_i32_0 = arith.constant 0 : i32
    %c0_i32_1 = arith.constant 0 : i32
    %c0_i32_2 = arith.constant 0 : i32
    return %c0_i32, %c0_i32_0, %c0_i32_1 : i32, i32, i32
  }
  func.func @transform_2(%arg0: i32) -> (i32, i32, i32) {
    %c0_i32 = arith.constant 0 : i32
    %c0_i32_0 = arith.constant 0 : i32
    %c0_i32_1 = arith.constant 0 : i32
    %c0_i32_2 = arith.constant 0 : i32
    return %c0_i32, %c0_i32_0, %c0_i32_1 : i32, i32, i32
  }
  func.func @transform_3(%arg0: i32) -> (i32, i32) {
    %c0_i32 = arith.constant 0 : i32
    %c0_i32_0 = arith.constant 0 : i32
    %c0_i32_1 = arith.constant 0 : i32
    return %c0_i32, %c0_i32_0 : i32, i32
  }
  func.func @transform_4(%arg0: i32) -> (i32, i32) {
    %c0_i32 = arith.constant 0 : i32
    %c0_i32_0 = arith.constant 0 : i32
    %c0_i32_1 = arith.constant 0 : i32
    return %c0_i32, %c0_i32_0 : i32, i32
  }
  func.func @transform_5(%arg0: i32) -> (i32, i32, i32) {
    %c0_i32 = arith.constant 0 : i32
    %c0_i32_0 = arith.constant 0 : i32
    %c0_i32_1 = arith.constant 0 : i32
    return %c0_i32, %arg0, %c0_i32_0 : i32, i32, i32
  }
}

module attributes {stable_mosaic.version = 11 : i64} {
  func.func @_fc_logsoftmax_kernel(%arg0: i32, %arg1: memref<2x64x32xbf16, #tpu.memory_space<vmem>>, %arg2: memref<2x32x128xbf16, #tpu.memory_space<vmem>>, %arg3: memref<1x128xf32, #tpu.memory_space<vmem>>, %arg4: memref<64x128xf32, #tpu.memory_space<vmem>>) attributes {dimension_semantics = [#tpu.dimension_semantics<parallel>], iteration_bounds = array<i64: 1>, scalar_prefetch = 0 : i64, scratch_operands = 0 : i64, tpu.core_type = #tpu.core_type<tc>, window_params = [{transform_indices = @transform_0, window_bounds = array<i64: 2, 64, 32>}, {pipeline_mode = #tpu.pipeline_mode<synchronous>, transform_indices = @transform_1, window_bounds = array<i64: 2, 32, 128>}, {pipeline_mode = #tpu.pipeline_mode<synchronous>, transform_indices = @transform_2, window_bounds = array<i64: 1, 128>}, {transform_indices = @transform_3, window_bounds = array<i64: 64, 128>}]} {
    %c0 = arith.constant 0 : index
    %c0_0 = arith.constant 0 : index
    %0 = vector.load %arg3[%c0, %c0_0] : memref<1x128xf32, #tpu.memory_space<vmem>>, vector<1x128xf32>
    %c0_1 = arith.constant 0 : index
    %c0_2 = arith.constant 0 : index
    %c0_3 = arith.constant 0 : index
    %1 = vector.load %arg1[%c0_1, %c0_2, %c0_3] : memref<2x64x32xbf16, #tpu.memory_space<vmem>>, vector<1x64x32xbf16>
    %2 = vector.shape_cast %1 : vector<1x64x32xbf16> to vector<64x32xbf16>
    %c0_4 = arith.constant 0 : index
    %c0_5 = arith.constant 0 : index
    %c0_6 = arith.constant 0 : index
    %3 = vector.load %arg2[%c0_4, %c0_5, %c0_6] : memref<2x32x128xbf16, #tpu.memory_space<vmem>>, vector<1x32x128xbf16>
    %4 = vector.shape_cast %3 : vector<1x32x128xbf16> to vector<32x128xbf16>
    %cst = arith.constant dense<0.000000e+00> : vector<64x128xf32>
    %5 = tpu.matmul %2, %4, %cst {dimension_numbers = #tpu.dot_dimension_numbers<[1], [0], [0], [1], [0, 0, 1, 1], [], []>} : vector<64x32xbf16>, vector<32x128xbf16>, vector<64x128xf32> -> vector<64x128xf32>
    %6 = vector.broadcast %0 : vector<1x128xf32> to vector<64x128xf32>
    %7 = arith.addf %6, %5 : vector<64x128xf32>
    %c1 = arith.constant 1 : index
    %c0_7 = arith.constant 0 : index
    %c0_8 = arith.constant 0 : index
    %8 = vector.load %arg1[%c1, %c0_7, %c0_8] : memref<2x64x32xbf16, #tpu.memory_space<vmem>>, vector<1x64x32xbf16>
    %9 = vector.shape_cast %8 : vector<1x64x32xbf16> to vector<64x32xbf16>
    %c1_9 = arith.constant 1 : index
    %c0_10 = arith.constant 0 : index
    %c0_11 = arith.constant 0 : index
    %10 = vector.load %arg2[%c1_9, %c0_10, %c0_11] : memref<2x32x128xbf16, #tpu.memory_space<vmem>>, vector<1x32x128xbf16>
    %11 = vector.shape_cast %10 : vector<1x32x128xbf16> to vector<32x128xbf16>
    %cst_12 = arith.constant dense<0.000000e+00> : vector<64x128xf32>
    %12 = tpu.matmul %9, %11, %cst_12 {dimension_numbers = #tpu.dot_dimension_numbers<[1], [0], [0], [1], [0, 0, 1, 1], [], []>} : vector<64x32xbf16>, vector<32x128xbf16>, vector<64x128xf32> -> vector<64x128xf32>
    %13 = arith.addf %7, %12 : vector<64x128xf32>
    %cst_13 = arith.constant dense<0xFF800000> : vector<64xf32>
    %14 = vector.multi_reduction <maximumf>, %13, %cst_13 [1] : vector<64x128xf32> to vector<64xf32>
    %15 = vector.shape_cast %14 : vector<64xf32> to vector<64x1xf32>
    %16 = vector.broadcast %15 : vector<64x1xf32> to vector<64x128xf32>
    %17 = arith.subf %13, %16 : vector<64x128xf32>
    %18 = math.exp %17 : vector<64x128xf32>
    %cst_14 = arith.constant dense<0.000000e+00> : vector<64xf32>
    %19 = vector.multi_reduction <add>, %18, %cst_14 [1] : vector<64x128xf32> to vector<64xf32>
    %20 = vector.shape_cast %19 : vector<64xf32> to vector<64x1xf32>
    %21 = math.log %20 : vector<64x1xf32>
    %22 = vector.broadcast %21 : vector<64x1xf32> to vector<64x128xf32>
    %23 = arith.subf %17, %22 : vector<64x128xf32>
    %c0_15 = arith.constant 0 : index
    %c0_16 = arith.constant 0 : index
    %24 = vector.load %arg4[%c0_15, %c0_16] : memref<64x128xf32, #tpu.memory_space<vmem>>, vector<64x128xf32>
    tpu.vector_store %arg4[%c0_15, %c0_16], %23 {strides = array<i32>} : memref<64x128xf32, #tpu.memory_space<vmem>>, vector<64x128xf32>,
    return
  }
  func.func @transform_0(%arg0: i32) -> (i32, i32, i32) {
    %c0_i32 = arith.constant 0 : i32
    %c0_i32_0 = arith.constant 0 : i32
    %c0_i32_1 = arith.constant 0 : i32
    return %c0_i32, %arg0, %c0_i32_0 : i32, i32, i32
  }
  func.func @transform_1(%arg0: i32) -> (i32, i32, i32) {
    %c0_i32 = arith.constant 0 : i32
    %c0_i32_0 = arith.constant 0 : i32
    %c0_i32_1 = arith.constant 0 : i32
    %c0_i32_2 = arith.constant 0 : i32
    return %c0_i32, %c0_i32_0, %c0_i32_1 : i32, i32, i32
  }
  func.func @transform_2(%arg0: i32) -> (i32, i32) {
    %c0_i32 = arith.constant 0 : i32
    %c0_i32_0 = arith.constant 0 : i32
    %c0_i32_1 = arith.constant 0 : i32
    return %c0_i32, %c0_i32_0 : i32, i32
  }
  func.func @transform_3(%arg0: i32) -> (i32, i32) {
    %c0_i32 = arith.constant 0 : i32
    %c0_i32_0 = arith.constant 0 : i32
    return %arg0, %c0_i32 : i32, i32
  }
}

</mosaic_0001>

<llo_original>
// kernel: tpu_custom_call.1
$region0: #{tpu_custom_call.1}
  #allocation0 [shape = 'u32[]', space=smem, size = 0x4, offset = 0x4, fixed_abs, tag = 'smem constant byte address 0x4 - core index']
  #allocation1 [shape = 'u32[144,128]{1,0:T(1,128)}', space=vmem, size = 0x12000, scoped, tag = 'internal scratch']
  %s0 = inlined_call_operand.hbm [shape: f32[16,128], index: 0, kind: input, shape index: {}]
  %s1 = inlined_call_operand.hbm [shape: f32[8,128], index: 1, kind: input, shape index: {}]
  %s2 = inlined_call_operand.hbm [shape: f32[16,128], index: 2, kind: output, shape index: {}]
  %s3 = sld [smem:[#allocation0]]
  $region49: #{tpu_custom_call.1} parent=0
    _
  %s5 = ssub.s32 1, %s3
  %s6 = scalar_select 0, %s5, %s3
  $region1: #{tpu_custom_call.1} parent=0
    #allocation2 [shape = 'u8[8192]{0}', space=vmem, size = 0x2000, scoped, tag = 'input window, operand 0']
    #allocation3 [shape = 's32[2]{0}', space=sflag, size = 0x8, scoped, tag = 'scoped memory for tpu_custom_call.1']
    #allocation4 [shape = 's32[2]{0}', space=sflag, size = 0x8, scoped, tag = 'scoped memory for tpu_custom_call.1']
    #allocation5 [shape = 'u8[4096]{0}', space=vmem, size = 0x1000, scoped, tag = 'input window, operand 1, single buffered']
    #allocation6 [shape = 's32[1]{0}', space=sflag, size = 0x4, scoped, tag = 'scoped memory for tpu_custom_call.1']
    #allocation7 [shape = 'u8[8192]{0}', space=vmem, size = 0x2000, scoped, tag = 'output window, operand 0']
    %7 = vsyncpa [#allocation3], 0
    %s8 = scalar_lea.sflag [#allocation3], 1
    %9 = vsyncpa %s8, 0
    %10 = vsyncpa [#allocation6], 0
    %11 = vsyncpa [#allocation4], 0
    %s12 = scalar_lea.sflag [#allocation4], 1
    %13 = vsyncpa %s12, 0
    loop: start=0, step=1, limit=4
    $region2: #{tpu_custom_call.1} parent=1 // loop_pre_header
      _
    $region3: #{tpu_custom_call.1} parent=1 // loop_header
      %s15 = sphi 0, %s19
      %p16 = scmp.ge.s32.totalorder %s15, 4
      %s25 = sphi 0, %s27
      %s28 = sphi 0, %s25
      %s29 = sphi 0, %s28
      %s45 = sphi 0, %s29
      %s49 = sphi 0, %s49
      %s51 = sphi 0, %s49
      %s52 = sphi 0, %s51
      %s66 = sphi 0, %s52
      %s72 = sphi 0, %s74
      %s75 = sphi 0, %s72
      %s76 = sphi 0, %s75
      %s92 = sphi 0, %s76
    $region4: #{tpu_custom_call.1} parent=1 // loop_header_branch
      %18 = sbr.rel (%p16) target = $region8
    $region5: #{tpu_custom_call.1} parent=1 // loop_body
      %s20 = ssub.s32 %s15, 1
      %s21 = ssub.s32 %s15, 2
      %s22 = sadd.s32 %s15, 1
      %s23 = ssub.s32 %s15, %s22
      %p24 = scmp.eq.s32.totalorder %s23, 0
      %s26 = sadd.s32 %s25, 1
      %s27 = scalar_select %p24, %s25, %s26
      %p30 = pneg %p24
      %p31 = scmp.eq.s32.totalorder %s15, 1
      %p32 = por %p30, %p31
      %p33 = scmp.ne.s32.totalorder %s25, %s28
      %p34 = scmp.eq.s32.totalorder %s15, 0
      %p35 = por %p33, %p34
      %p36 = scmp.ne.s32.totalorder %s25, %s28
      %p37 = scmp.eq.s32.totalorder %s20, 1
      %p38 = por %p36, %p37
      %p39 = scmp.ne.s32.totalorder %s28, %s29
      %p40 = scmp.eq.s32.totalorder %s20, 0
      %p41 = por %p39, %p40
      %p42 = scmp.ne.s32.totalorder %s28, %s29
      %p43 = scmp.eq.s32.totalorder %s21, 1
      %p44 = por %p42, %p43
      %p46 = scmp.ne.s32.totalorder %s29, %s45
      %p47 = scmp.eq.s32.totalorder %s21, 0
      %p48 = por %p46, %p47
      %s50 = sadd.s32 %s49, 1
      %p53 = scmp.eq.s32.totalorder %s15, 1
      %p54 = scmp.ne.s32.totalorder %s49, %s51
      %p55 = scmp.eq.s32.totalorder %s15, 0
      %p56 = por %p54, %p55
      %p57 = scmp.ne.s32.totalorder %s49, %s51
      %p58 = scmp.eq.s32.totalorder %s20, 1
      %p59 = por %p57, %p58
      %p60 = scmp.ne.s32.totalorder %s51, %s52
      %p61 = scmp.eq.s32.totalorder %s20, 0
      %p62 = por %p60, %p61
      %p63 = scmp.ne.s32.totalorder %s51, %s52
      %p64 = scmp.eq.s32.totalorder %s21, 1
      %p65 = por %p63, %p64
      %p67 = scmp.ne.s32.totalorder %s52, %s66
      %p68 = scmp.eq.s32.totalorder %s21, 0
      %p69 = por %p67, %p68
      %s70 = ssub.s32 %s15, %s22
      %p71 = scmp.eq.s32.totalorder %s70, 0
      %s73 = sadd.s32 %s72, 1
      %s74 = scalar_select %p71, %s72, %s73
      %p77 = pneg %p71
      %p78 = scmp.eq.s32.totalorder %s15, 1
      %p79 = por %p77, %p78
      %p80 = scmp.ne.s32.totalorder %s72, %s75
      %p81 = scmp.eq.s32.totalorder %s15, 0
      %p82 = por %p80, %p81
      %p83 = scmp.ne.s32.totalorder %s72, %s75
      %p84 = scmp.eq.s32.totalorder %s20, 1
      %p85 = por %p83, %p84
      %p86 = scmp.ne.s32.totalorder %s75, %s76
      %p87 = scmp.eq.s32.totalorder %s20, 0
      %p88 = por %p86, %p87
      %p89 = scmp.ne.s32.totalorder %s75, %s76
      %p90 = scmp.eq.s32.totalorder %s21, 1
      %p91 = por %p89, %p90
      %p93 = scmp.ne.s32.totalorder %s76, %s92
      %p94 = scmp.eq.s32.totalorder %s21, 0
      %p95 = por %p93, %p94
      %p96 = scmp.le.s32.totalorder 1, %s15
      %p97 = scmp.lt.s32.totalorder %s15, 3
      %p98 = pnand %p96, %p97
      %p99 = pneg %p98
      // Predicated region
      $region9: #{tpu_custom_call.1} parent=5 // pred_check
        _
      $region10: #{tpu_custom_call.1} parent=5 // pred_check_branch
        %101 = sbr.rel (%p98) target = $region12
      $region11: #{tpu_custom_call.1} parent=5 // pred_region
        %s102 = ssub.s32 %s15, 1
        // Predicated region
        $region13: #{tpu_custom_call.1} parent=11 // pred_check
          %p103 = pneg %p62
        $region14: #{tpu_custom_call.1} parent=11 // pred_check_branch
          %105 = sbr.rel (%p103) target = $region16
        $region15: #{tpu_custom_call.1} parent=11 // pred_region
          %s107 = ssub.s32 128, 128
          %108 = vsyncadd [#allocation6], %s107
          %s110 = sshll.u32 [#allocation5], 4
          %s111 = int_to_ptr.vmem [resolvable:$true] %s110
          %113 = dma.hbm_to_vmem [thread:$0]  %s1, 128, %s111, [#allocation6]
        $region16: #{tpu_custom_call.1} parent=11 // pred_fallthru
          _
      $region12: #{tpu_custom_call.1} parent=5 // pred_fallthru
        _
      %p114 = scmp.lt.s32.totalorder %s15, 2
      // Predicated region
      $region17: #{tpu_custom_call.1} parent=5 // pred_check
        %p115 = pneg %p114
      $region18: #{tpu_custom_call.1} parent=5 // pred_check_branch
        %117 = sbr.rel (%p115) target = $region20
      $region19: #{tpu_custom_call.1} parent=5 // pred_region
        // Predicated region
        $region21: #{tpu_custom_call.1} parent=19 // pred_check
          %p118 = pneg %p35
        $region22: #{tpu_custom_call.1} parent=19 // pred_check_branch
          %120 = sbr.rel (%p118) target = $region24
        $region23: #{tpu_custom_call.1} parent=19 // pred_region
          %s121 = sand.u32 %s25, 1
          %s122 = scalar_lea.sflag [#allocation3], %s121
          %s123 = sand.u32 %s25, 1
          %s124 = smul.addr %s123, 8
          %s125 = scalar_lea.vmem [#allocation2], %s124
          %s127 = ssub.s32 128, 128
          %128 = vsyncadd %s122, %s127
          %s129 = smul.addr %s15, 128
          %s130 = scalar_lea.hbm %s0, %s129
          %s132 = sshll.u32 %s125, 4
          %s133 = int_to_ptr.vmem [resolvable:$true] %s132
          %135 = dma.hbm_to_vmem [thread:$0]  %s130, 128, %s133, %s122
        $region24: #{tpu_custom_call.1} parent=19 // pred_fallthru
          _
      $region20: #{tpu_custom_call.1} parent=5 // pred_fallthru
        _
      %p136 = scmp.le.s32.totalorder 1, %s15
      %p137 = scmp.lt.s32.totalorder %s15, 3
      %p138 = pnand %p136, %p137
      %p139 = pneg %p138
      // Predicated region
      $region25: #{tpu_custom_call.1} parent=5 // pred_check
        _
      $region26: #{tpu_custom_call.1} parent=5 // pred_check_branch
        %141 = sbr.rel (%p138) target = $region28
      $region27: #{tpu_custom_call.1} parent=5 // pred_region
        %s142 = ssub.s32 %s15, 1
        %s143 = sand.u32 %s28, 1
        %s144 = scalar_lea.sflag [#allocation3], %s143
        %s145 = sand.u32 %s28, 1
        %s146 = smul.addr %s145, 8
        %s147 = scalar_lea.vmem [#allocation2], %s146
        // Predicated region
        $region29: #{tpu_custom_call.1} parent=27 // pred_check
          %p148 = pneg %p41
        $region30: #{tpu_custom_call.1} parent=27 // pred_check_branch
          %150 = sbr.rel (%p148) target = $region32
        $region31: #{tpu_custom_call.1} parent=27 // pred_region
          %151 = dma.done %s144, 128
        $region32: #{tpu_custom_call.1} parent=27 // pred_fallthru
          _
        // Predicated region
        $region33: #{tpu_custom_call.1} parent=27 // pred_check
          %p152 = pneg %p62
        $region34: #{tpu_custom_call.1} parent=27 // pred_check_branch
          %154 = sbr.rel (%p152) target = $region36
        $region35: #{tpu_custom_call.1} parent=27 // pred_region
          %155 = dma.done [#allocation6], 128
        $region36: #{tpu_custom_call.1} parent=27 // pred_fallthru
          _
        %s156 = sand.u32 %s28, 1
        %s157 = scalar_lea.sflag [#allocation3], %s156
        %s158 = sand.u32 %s28, 1
        %s159 = smul.addr %s158, 8
        %s160 = scalar_lea.vmem [#allocation2], %s159
        %p161 = pneg %p41
        %p162 = pneg %p38
        %p163 = pneg %p62
        %p164 = pneg %p59
        %p165 = pneg %p88
        %p166 = pneg %p85
        %s167 = sand.u32 %s75, 1
        %s168 = scalar_lea.sflag [#allocation4], %s167
        %s169 = sand.u32 %s75, 1
        %s170 = smul.addr %s169, 8
        %s171 = scalar_lea.vmem [#allocation7], %s170
        %v172 = vld [vmem:[%s147] sm:$0xff]
        %v173 = vld [vmem:[#allocation5] sm:$0xff]
        %v174 = vadd.f32 %v172, %v173
        %175 = vst [vmem:[%s171] sm:$0xff] %v174
        %s176 = sand.u32 %s75, 1
        %s177 = scalar_lea.sflag [#allocation4], %s176
        %s178 = sand.u32 %s75, 1
        %s179 = smul.addr %s178, 8
        %s180 = scalar_lea.vmem [#allocation7], %s179
        // Predicated region
        $region37: #{tpu_custom_call.1} parent=27 // pred_check
          %p181 = pneg %p85
        $region38: #{tpu_custom_call.1} parent=27 // pred_check_branch
          %183 = sbr.rel (%p181) target = $region40
        $region39: #{tpu_custom_call.1} parent=27 // pred_region
          %s185 = ssub.s32 128, 128
          %186 = vsyncadd %s177, %s185
          %s187 = smul.addr %s20, 128
          %s188 = scalar_lea.hbm %s2, %s187
          %s190 = sshll.u32 %s180, 4
          %s191 = int_to_ptr.vmem [resolvable:$true] %s190
          %193 = dma.vmem_to_hbm [thread:$0]  %s191, 128, %s188, %s177
        $region40: #{tpu_custom_call.1} parent=27 // pred_fallthru
          _
      $region28: #{tpu_custom_call.1} parent=5 // pred_fallthru
        _
      %p194 = scmp.le.s32.totalorder 2, %s15
      // Predicated region
      $region41: #{tpu_custom_call.1} parent=5 // pred_check
        %p195 = pneg %p194
      $region42: #{tpu_custom_call.1} parent=5 // pred_check_branch
        %197 = sbr.rel (%p195) target = $region44
      $region43: #{tpu_custom_call.1} parent=5 // pred_region
        %s198 = ssub.s32 %s15, 2
        // Predicated region
        $region45: #{tpu_custom_call.1} parent=43 // pred_check
          %p199 = pneg %p91
        $region46: #{tpu_custom_call.1} parent=43 // pred_check_branch
          %201 = sbr.rel (%p199) target = $region48
        $region47: #{tpu_custom_call.1} parent=43 // pred_region
          %s202 = sand.u32 %s76, 1
          %s203 = scalar_lea.sflag [#allocation4], %s202
          %s204 = sand.u32 %s76, 1
          %s205 = smul.addr %s204, 8
          %s206 = scalar_lea.vmem [#allocation7], %s205
          %207 = dma.done %s203, 128
        $region48: #{tpu_custom_call.1} parent=43 // pred_fallthru
          _
      $region44: #{tpu_custom_call.1} parent=5 // pred_fallthru
        _
    $region6: #{tpu_custom_call.1} parent=1 // loop_footer
      %s19 = sadd.s32 1, %s15
    $region7: #{tpu_custom_call.1} parent=1 // loop_footer_branch
      %14 = sbr.rel target = $region3
    $region8: #{tpu_custom_call.1} parent=1 // loop_exit
      _
    %208 = vsyncpa [#allocation3], 1
    %s209 = scalar_lea.sflag [#allocation3], 1
    %210 = vsyncpa %s209, 1
    %211 = vsyncpa [#allocation6], 1
    %212 = vsyncpa [#allocation4], 1
    %s213 = scalar_lea.sflag [#allocation4], 1
    %214 = vsyncpa %s213, 1

// kernel: deepspeech_forward.9
$region0: #{deepspeech_forward.9}
  #allocation0 [shape = 'u32[]', space=smem, size = 0x4, offset = 0x4, fixed_abs, tag = 'smem constant byte address 0x4 - core index']
  #allocation1 [shape = 'u32[144,128]{1,0:T(1,128)}', space=vmem, size = 0x12000, scoped, tag = 'internal scratch']
  %s0 = inlined_call_operand.vmem [shape: bf16[1,64,32], index: 0, kind: input, shape index: {}]
  %s1 = inlined_call_operand.vmem [shape: bf16[1,32,32], index: 1, kind: input, shape index: {}]
  %s2 = inlined_call_operand.vmem [shape: bf16[1,32,32], index: 2, kind: input, shape index: {}]
  %s3 = inlined_call_operand.vmem [shape: f32[1,32], index: 3, kind: input, shape index: {}]
  %s4 = inlined_call_operand.vmem [shape: f32[1,32], index: 4, kind: input, shape index: {}]
  %s5 = inlined_call_operand.vmem [shape: bf16[2,64,32], index: 5, kind: output, shape index: {}]
  %s6 = sld [smem:[#allocation0]]
  $region30: #{deepspeech_forward.9} parent=0
    _
  %s8 = ssub.s32 1, %s6
  %s9 = scalar_select 0, %s8, %s6
  // Predicated region
  $region2: #{deepspeech_forward.9} parent=0 // pred_check
    _
  $region3: #{deepspeech_forward.9} parent=0 // pred_check_branch
    %11 = sbr.rel (0) target = $region5
  $region4: #{deepspeech_forward.9} parent=0 // pred_region
    _
  $region5: #{deepspeech_forward.9} parent=0 // pred_fallthru
    _
  // Predicated region
  $region6: #{deepspeech_forward.9} parent=0 // pred_check
    _
  $region7: #{deepspeech_forward.9} parent=0 // pred_check_branch
    %13 = sbr.rel (0) target = $region9
  $region8: #{deepspeech_forward.9} parent=0 // pred_region
    _
  $region9: #{deepspeech_forward.9} parent=0 // pred_fallthru
    _
  // Predicated region
  $region10: #{deepspeech_forward.9} parent=0 // pred_check
    _
  $region11: #{deepspeech_forward.9} parent=0 // pred_check_branch
    %15 = sbr.rel (0) target = $region13
  $region12: #{deepspeech_forward.9} parent=0 // pred_region
    _
  $region13: #{deepspeech_forward.9} parent=0 // pred_fallthru
    _
  // Predicated region
  $region14: #{deepspeech_forward.9} parent=0 // pred_check
    _
  $region15: #{deepspeech_forward.9} parent=0 // pred_check_branch
    %17 = sbr.rel (0) target = $region17
  $region16: #{deepspeech_forward.9} parent=0 // pred_region
    _
  $region17: #{deepspeech_forward.9} parent=0 // pred_fallthru
    _
  // Predicated region
  $region18: #{deepspeech_forward.9} parent=0 // pred_check
    _
  $region19: #{deepspeech_forward.9} parent=0 // pred_check_branch
    %19 = sbr.rel (0) target = $region21
  $region20: #{deepspeech_forward.9} parent=0 // pred_region
    _
  $region21: #{deepspeech_forward.9} parent=0 // pred_fallthru
    _
  %v21 = vld [vmem:[%s3] sm:$0x1]
  %v22 = vld [vmem:[%s4] sm:$0x1]
  %v23 = vld [vmem:[%s0] sm:$0xf]
  %v24 = vld [vmem:[%s0 + $0x4] sm:$0xf]
  %v25 = vld [vmem:[%s0 + $0x8] sm:$0xf]
  %v26 = vld [vmem:[%s0 + $0xc] sm:$0xf]
  %v27 = vld [vmem:[%s0 + $0x10] sm:$0xf]
  %v28 = vld [vmem:[%s0 + $0x14] sm:$0xf]
  %v29 = vld [vmem:[%s0 + $0x18] sm:$0xf]
  %v30 = vld [vmem:[%s0 + $0x1c] sm:$0xf]
  %v31 = vld [vmem:[%s1] sm:$0xf]
  %v32 = vld [vmem:[%s1 + $0x4] sm:$0xf]
  %v33 = vld [vmem:[%s1 + $0x8] sm:$0xf]
  %v34 = vld [vmem:[%s1 + $0xc] sm:$0xf]
  %v43 = vunpack.c.l.b16 %v23
  %v44 = vunpack.c.l.b16 %v24
  %v45 = vunpack.c.l.b16 %v25
  %v46 = vunpack.c.l.b16 %v26
  %v47 = vunpack.c.l.b16 %v27
  %v48 = vunpack.c.l.b16 %v28
  %v49 = vunpack.c.l.b16 %v29
  %v50 = vunpack.c.l.b16 %v30
  %v51 = vpack.c.b16 %v44, %v43
  %v52 = vpack.c.b16 %v46, %v45
  %v53 = vpack.c.b16 %v48, %v47
  %v54 = vpack.c.b16 %v50, %v49
  %v59 = vunpack.c.l.b16 %v31
  %v60 = vunpack.c.l.b16 %v32
  %v61 = vunpack.c.l.b16 %v33
  %v62 = vunpack.c.l.b16 %v34
  %v63 = vpack.c.b16 %v60, %v59
  %v64 = vpack.c.b16 %v62, %v61
  %vm67 = vcmask 261120
  %v69 = vsel %vm67, %v51, 0
  %v72 = vsel %vm67, %v52, 0
  %v75 = vsel %vm67, %v53, 0
  %v78 = vsel %vm67, %v54, 0
  %80 = vmatprep.subr.bf16.mxu0 0
  %81 = vmatpush1.bf16.msra.mxu0 %v63
  %82 = vmatprep.subr.bf16.mxu0 0
  %83 = vmatpush1.bf16.msra.mxu0 %v64
  %84 = vmatprep.subr.bf16.mxu0 0
  %85 = vmatpush1.bf16.msra.mxu0 0
  %86 = vmatprep.subr.bf16.mxu0 0
  %87 = vmatpush1.bf16.msra.mxu0 0
  %88 = vmatprep.subr.bf16.mxu0 0
  %89 = vmatpush1.bf16.msra.mxu0 0
  %90 = vmatprep.subr.bf16.mxu0 0
  %91 = vmatpush1.bf16.msra.mxu0 0
  %92 = vmatprep.subr.bf16.mxu0 0
  %93 = vmatpush1.bf16.msra.mxu0 0
  %94 = vmatprep.subr.bf16.mxu0 0
  %95 = vmatpush1.bf16.msra.mxu0 0
  %96 = vmatprep.subr.bf16.mxu0 0
  %97 = vmatpush1.bf16.msra.mxu0 0
  %98 = vmatprep.subr.bf16.mxu0 0
  %99 = vmatpush1.bf16.msra.mxu0 0
  %100 = vmatprep.subr.bf16.mxu0 0
  %101 = vmatpush1.bf16.msra.mxu0 0
  %102 = vmatprep.subr.bf16.mxu0 0
  %103 = vmatpush1.bf16.msra.mxu0 0
  %104 = vmatprep.subr.bf16.mxu0 0
  %105 = vmatpush1.bf16.msra.mxu0 0
  %106 = vmatprep.subr.bf16.mxu0 0
  %107 = vmatpush1.bf16.msra.mxu0 0
  %108 = vmatprep.subr.bf16.mxu0 0
  %109 = vmatpush1.bf16.msra.mxu0 0
  %110 = vmatprep.subr.bf16.mxu0 0
  %111 = vmatpush1.bf16.msra.mxu0 0
  %112 = vmatprep.mubr.bf16.mxu0 0
  %113 = vmatmul.mubr.bf16.gmra.mrb[0].mxu0 %v69
  %v114 = vpop.f32.mrb[0].mxu0
  %v115 = vadd.f32 0.0, %v114
  %v116 = vpop.f32.mrb[0].mxu0
  %v117 = vpop.f32.mrb[0].mxu0
  %v118 = vadd.f32 0.0, %v117
  %v119 = vpop.f32.mrb[0].mxu0
  %120 = vmatprep.mubr.bf16.mxu0 0
  %121 = vmatmul.mubr.bf16.gmra.mrb[0].mxu0 %v72
  %v122 = vpop.f32.mrb[0].mxu0
  %v123 = vadd.f32 0.0, %v122
  %v124 = vpop.f32.mrb[0].mxu0
  %v125 = vpop.f32.mrb[0].mxu0
  %v126 = vadd.f32 0.0, %v125
  %v127 = vpop.f32.mrb[0].mxu0
  %128 = vmatprep.mubr.bf16.mxu0 0
  %129 = vmatmul.mubr.bf16.gmra.mrb[0].mxu0 %v75
  %v130 = vpop.f32.mrb[0].mxu0
  %v131 = vadd.f32 0.0, %v130
  %v132 = vpop.f32.mrb[0].mxu0
  %v133 = vpop.f32.mrb[0].mxu0
  %v134 = vadd.f32 0.0, %v133
  %v135 = vpop.f32.mrb[0].mxu0
  %136 = vmatprep.mubr.bf16.mxu0 0
  %137 = vmatmul.mubr.bf16.gmra.mrb[0].mxu0 %v78
  %v138 = vpop.f32.mrb[0].mxu0
  %v139 = vadd.f32 0.0, %v138
  %v140 = vpop.f32.mrb[0].mxu0
  %v141 = vpop.f32.mrb[0].mxu0
  %v142 = vadd.f32 0.0, %v141
  %v143 = vpop.f32.mrb[0].mxu0
  %144 = vdwg.mxu0
  %v146 = vlaneseq
  %v147 = vshrl.u32 %v146, 7
  %v148 = vsub.s32 0, %v147
  %v149 = vrot.slane %v21, %v148
  %v151 = vadd.f32 %v149, %v115
  %v152 = vadd.f32 %v149, %v118
  %v153 = vadd.f32 %v149, %v123
  %v154 = vadd.f32 %v149, %v126
  %v155 = vadd.f32 %v149, %v131
  %v156 = vadd.f32 %v149, %v134
  %v157 = vadd.f32 %v149, %v139
  %v158 = vadd.f32 %v149, %v142
  %v159 = vld [vmem:[%s2] sm:$0xf]
  %v160 = vld [vmem:[%s2 + $0x4] sm:$0xf]
  %v161 = vld [vmem:[%s2 + $0x8] sm:$0xf]
  %v162 = vld [vmem:[%s2 + $0xc] sm:$0xf]
  %v167 = vunpack.c.l.b16 %v159
  %v168 = vunpack.c.l.b16 %v160
  %v169 = vunpack.c.l.b16 %v161
  %v170 = vunpack.c.l.b16 %v162
  %v171 = vpack.c.b16 %v168, %v167
  %v172 = vpack.c.b16 %v170, %v169
  %175 = vmatprep.subr.bf16.mxu0 0
  %176 = vmatpush1.bf16.msra.mxu0 %v171
  %177 = vmatprep.subr.bf16.mxu0 0
  %178 = vmatpush1.bf16.msra.mxu0 %v172
  %179 = vmatprep.subr.bf16.mxu0 0
  %180 = vmatpush1.bf16.msra.mxu0 0
  %181 = vmatprep.subr.bf16.mxu0 0
  %182 = vmatpush1.bf16.msra.mxu0 0
  %183 = vmatprep.subr.bf16.mxu0 0
  %184 = vmatpush1.bf16.msra.mxu0 0
  %185 = vmatprep.subr.bf16.mxu0 0
  %186 = vmatpush1.bf16.msra.mxu0 0
  %187 = vmatprep.subr.bf16.mxu0 0
  %188 = vmatpush1.bf16.msra.mxu0 0
  %189 = vmatprep.subr.bf16.mxu0 0
  %190 = vmatpush1.bf16.msra.mxu0 0
  %191 = vmatprep.subr.bf16.mxu0 0
  %192 = vmatpush1.bf16.msra.mxu0 0
  %193 = vmatprep.subr.bf16.mxu0 0
  %194 = vmatpush1.bf16.msra.mxu0 0
  %195 = vmatprep.subr.bf16.mxu0 0
  %196 = vmatpush1.bf16.msra.mxu0 0
  %197 = vmatprep.subr.bf16.mxu0 0
  %198 = vmatpush1.bf16.msra.mxu0 0
  %199 = vmatprep.subr.bf16.mxu0 0
  %200 = vmatpush1.bf16.msra.mxu0 0
  %201 = vmatprep.subr.bf16.mxu0 0
  %202 = vmatpush1.bf16.msra.mxu0 0
  %203 = vmatprep.subr.bf16.mxu0 0
  %204 = vmatpush1.bf16.msra.mxu0 0
  %205 = vmatprep.subr.bf16.mxu0 0
  %206 = vmatpush1.bf16.msra.mxu0 0
  %207 = vmatprep.mubr.bf16.mxu0 0
  %208 = vmatmul.mubr.bf16.gmra.mrb[0].mxu0 %v69
  %v209 = vpop.f32.mrb[0].mxu0
  %v210 = vadd.f32 0.0, %v209
  %v211 = vpop.f32.mrb[0].mxu0
  %v212 = vpop.f32.mrb[0].mxu0
  %v213 = vadd.f32 0.0, %v212
  %v214 = vpop.f32.mrb[0].mxu0
  %215 = vmatprep.mubr.bf16.mxu0 0
  %216 = vmatmul.mubr.bf16.gmra.mrb[0].mxu0 %v72
  %v217 = vpop.f32.mrb[0].mxu0
  %v218 = vadd.f32 0.0, %v217
  %v219 = vpop.f32.mrb[0].mxu0
  %v220 = vpop.f32.mrb[0].mxu0
  %v221 = vadd.f32 0.0, %v220
  %v222 = vpop.f32.mrb[0].mxu0
  %223 = vmatprep.mubr.bf16.mxu0 0
  %224 = vmatmul.mubr.bf16.gmra.mrb[0].mxu0 %v75
  %v225 = vpop.f32.mrb[0].mxu0
  %v226 = vadd.f32 0.0, %v225
  %v227 = vpop.f32.mrb[0].mxu0
  %v228 = vpop.f32.mrb[0].mxu0
  %v229 = vadd.f32 0.0, %v228
  %v230 = vpop.f32.mrb[0].mxu0
  %231 = vmatprep.mubr.bf16.mxu0 0
  %232 = vmatmul.mubr.bf16.gmra.mrb[0].mxu0 %v78
  %v233 = vpop.f32.mrb[0].mxu0
  %v234 = vadd.f32 0.0, %v233
  %v235 = vpop.f32.mrb[0].mxu0
  %v236 = vpop.f32.mrb[0].mxu0
  %v237 = vadd.f32 0.0, %v236
  %v238 = vpop.f32.mrb[0].mxu0
  %239 = vdwg.mxu0
  %v241 = vlaneseq
  %v242 = vshrl.u32 %v241, 7
  %v243 = vsub.s32 0, %v242
  %v244 = vrot.slane %v22, %v243
  %v246 = vadd.f32 %v244, %v210
  %v247 = vadd.f32 %v244, %v213
  %v248 = vadd.f32 %v244, %v218
  %v249 = vadd.f32 %v244, %v221
  %v250 = vadd.f32 %v244, %v226
  %v251 = vadd.f32 %v244, %v229
  %v252 = vadd.f32 %v244, %v234
  %v253 = vadd.f32 %v244, %v237
  %v254 = vpack.c.bf16 %v152, %v151
  %v255 = vpack.c.bf16 %v154, %v153
  %v256 = vpack.c.bf16 %v156, %v155
  %v257 = vpack.c.bf16 %v158, %v157
  %v262 = vunpack.c.l.b16 %v254
  %v263 = vunpack.c.h.b16 %v254
  %v264 = vunpack.c.l.b16 %v255
  %v265 = vunpack.c.h.b16 %v255
  %v266 = vunpack.c.l.b16 %v256
  %v267 = vunpack.c.h.b16 %v256
  %v268 = vunpack.c.l.b16 %v257
  %v269 = vunpack.c.h.b16 %v257
  %v270 = vpack.c.b16 %v262, %v262
  %v271 = vpack.c.b16 %v263, %v263
  %v272 = vpack.c.b16 %v264, %v264
  %v273 = vpack.c.b16 %v265, %v265
  %v274 = vpack.c.b16 %v266, %v266
  %v275 = vpack.c.b16 %v267, %v267
  %v276 = vpack.c.b16 %v268, %v268
  %v277 = vpack.c.b16 %v269, %v269
  %vm286 = vcmask 257024
  %287 = vst.msk [vmem:[%s5] sm:$0xf] %vm286, %v270
  %288 = vst.msk [vmem:[%s5 + $0x4] sm:$0xf] %vm286, %v271
  %289 = vst.msk [vmem:[%s5 + $0x8] sm:$0xf] %vm286, %v272
  %290 = vst.msk [vmem:[%s5 + $0xc] sm:$0xf] %vm286, %v273
  %291 = vst.msk [vmem:[%s5 + $0x10] sm:$0xf] %vm286, %v274
  %292 = vst.msk [vmem:[%s5 + $0x14] sm:$0xf] %vm286, %v275
  %293 = vst.msk [vmem:[%s5 + $0x18] sm:$0xf] %vm286, %v276
  %294 = vst.msk [vmem:[%s5 + $0x1c] sm:$0xf] %vm286, %v277
  %v295 = vpack.c.bf16 %v247, %v246
  %v296 = vpack.c.bf16 %v249, %v248
  %v297 = vpack.c.bf16 %v251, %v250
  %v298 = vpack.c.bf16 %v253, %v252
  %v303 = vunpack.c.l.b16 %v295
  %v304 = vunpack.c.h.b16 %v295
  %v305 = vunpack.c.l.b16 %v296
  %v306 = vunpack.c.h.b16 %v296
  %v307 = vunpack.c.l.b16 %v297
  %v308 = vunpack.c.h.b16 %v297
  %v309 = vunpack.c.l.b16 %v298
  %v310 = vunpack.c.h.b16 %v298
  %v311 = vpack.c.b16 %v303, %v303
  %v312 = vpack.c.b16 %v304, %v304
  %v313 = vpack.c.b16 %v305, %v305
  %v314 = vpack.c.b16 %v306, %v306
  %v315 = vpack.c.b16 %v307, %v307
  %v316 = vpack.c.b16 %v308, %v308
  %v317 = vpack.c.b16 %v309, %v309
  %v318 = vpack.c.b16 %v310, %v310
  %s327 = scalar_lea.vmem %s5, 32
  %328 = vst.msk [vmem:[%s327] sm:$0xf] %vm286, %v311
  %329 = vst.msk [vmem:[%s327 + $0x4] sm:$0xf] %vm286, %v312
  %330 = vst.msk [vmem:[%s327 + $0x8] sm:$0xf] %vm286, %v313
  %331 = vst.msk [vmem:[%s327 + $0xc] sm:$0xf] %vm286, %v314
  %332 = vst.msk [vmem:[%s327 + $0x10] sm:$0xf] %vm286, %v315
  %333 = vst.msk [vmem:[%s327 + $0x14] sm:$0xf] %vm286, %v316
  %334 = vst.msk [vmem:[%s327 + $0x18] sm:$0xf] %vm286, %v317
  %335 = vst.msk [vmem:[%s327 + $0x1c] sm:$0xf] %vm286, %v318
  // Predicated region
  $region22: #{deepspeech_forward.9} parent=0 // pred_check
    _
  $region23: #{deepspeech_forward.9} parent=0 // pred_check_branch
    %337 = sbr.rel (0) target = $region25
  $region24: #{deepspeech_forward.9} parent=0 // pred_region
    _
  $region25: #{deepspeech_forward.9} parent=0 // pred_fallthru
    _
  // Predicated region
  $region26: #{deepspeech_forward.9} parent=0 // pred_check
    _
  $region27: #{deepspeech_forward.9} parent=0 // pred_check_branch
    %339 = sbr.rel (0) target = $region29
  $region28: #{deepspeech_forward.9} parent=0 // pred_region
    _
  $region29: #{deepspeech_forward.9} parent=0 // pred_fallthru
    _

// kernel: deepspeech_forward.8
$region0: #{deepspeech_forward.8}
  #allocation0 [shape = 'u32[]', space=smem, size = 0x4, offset = 0x4, fixed_abs, tag = 'smem constant byte address 0x4 - core index']
  #allocation1 [shape = 'u32[144,128]{1,0:T(1,128)}', space=vmem, size = 0x12000, scoped, tag = 'internal scratch']
  %s0 = inlined_call_operand.vmem [shape: bf16[64,72], index: 0, kind: input, shape index: {}]
  %s1 = inlined_call_operand.vmem [shape: bf16[72,32], index: 1, kind: input, shape index: {}]
  %s2 = inlined_call_operand.vmem [shape: bf16[32,32], index: 2, kind: input, shape index: {}]
  %s3 = inlined_call_operand.vmem [shape: bf16[32,32], index: 3, kind: input, shape index: {}]
  %s4 = inlined_call_operand.vmem [shape: f32[1,32], index: 4, kind: input, shape index: {}]
  %s5 = inlined_call_operand.vmem [shape: f32[1,32], index: 5, kind: input, shape index: {}]
  %s6 = inlined_call_operand.vmem [shape: f32[1,32], index: 6, kind: input, shape index: {}]
  %s7 = inlined_call_operand.vmem [shape: bf16[64,32], index: 7, kind: output, shape index: {}]
  %s8 = sld [smem:[#allocation0]]
  $region38: #{deepspeech_forward.8} parent=0
    _
  %s10 = ssub.s32 1, %s8
  %s11 = scalar_select 0, %s10, %s8
  // Predicated region
  $region2: #{deepspeech_forward.8} parent=0 // pred_check
    _
  $region3: #{deepspeech_forward.8} parent=0 // pred_check_branch
    %13 = sbr.rel (0) target = $region5
  $region4: #{deepspeech_forward.8} parent=0 // pred_region
    _
  $region5: #{deepspeech_forward.8} parent=0 // pred_fallthru
    _
  // Predicated region
  $region6: #{deepspeech_forward.8} parent=0 // pred_check
    _
  $region7: #{deepspeech_forward.8} parent=0 // pred_check_branch
    %15 = sbr.rel (0) target = $region9
  $region8: #{deepspeech_forward.8} parent=0 // pred_region
    _
  $region9: #{deepspeech_forward.8} parent=0 // pred_fallthru
    _
  // Predicated region
  $region10: #{deepspeech_forward.8} parent=0 // pred_check
    _
  $region11: #{deepspeech_forward.8} parent=0 // pred_check_branch
    %17 = sbr.rel (0) target = $region13
  $region12: #{deepspeech_forward.8} parent=0 // pred_region
    _
  $region13: #{deepspeech_forward.8} parent=0 // pred_fallthru
    _
  // Predicated region
  $region14: #{deepspeech_forward.8} parent=0 // pred_check
    _
  $region15: #{deepspeech_forward.8} parent=0 // pred_check_branch
    %19 = sbr.rel (0) target = $region17
  $region16: #{deepspeech_forward.8} parent=0 // pred_region
    _
  $region17: #{deepspeech_forward.8} parent=0 // pred_fallthru
    _
  // Predicated region
  $region18: #{deepspeech_forward.8} parent=0 // pred_check
    _
  $region19: #{deepspeech_forward.8} parent=0 // pred_check_branch
    %21 = sbr.rel (0) target = $region21
  $region20: #{deepspeech_forward.8} parent=0 // pred_region
    _
  $region21: #{deepspeech_forward.8} parent=0 // pred_fallthru
    _
  // Predicated region
  $region22: #{deepspeech_forward.8} parent=0 // pred_check
    _
  $region23: #{deepspeech_forward.8} parent=0 // pred_check_branch
    %23 = sbr.rel (0) target = $region25
  $region24: #{deepspeech_forward.8} parent=0 // pred_region
    _
  $region25: #{deepspeech_forward.8} parent=0 // pred_fallthru
    _
  // Predicated region
  $region26: #{deepspeech_forward.8} parent=0 // pred_check
    _
  $region27: #{deepspeech_forward.8} parent=0 // pred_check_branch
    %25 = sbr.rel (0) target = $region29
  $region28: #{deepspeech_forward.8} parent=0 // pred_region
    _
  $region29: #{deepspeech_forward.8} parent=0 // pred_fallthru
    _
  %v27 = vld [vmem:[%s0] sm:$0xf]
  %v28 = vld [vmem:[%s0 + $0x4] sm:$0xf]
  %v29 = vld [vmem:[%s0 + $0x8] sm:$0xf]
  %v30 = vld [vmem:[%s0 + $0xc] sm:$0xf]
  %v31 = vld [vmem:[%s0 + $0x10] sm:$0xf]
  %v32 = vld [vmem:[%s0 + $0x14] sm:$0xf]
  %v33 = vld [vmem:[%s0 + $0x18] sm:$0xf]
  %v34 = vld [vmem:[%s0 + $0x1c] sm:$0xf]
  %v35 = vld [vmem:[%s1] sm:$0xf]
  %v36 = vld [vmem:[%s1 + $0x4] sm:$0xf]
  %v37 = vld [vmem:[%s1 + $0x8] sm:$0xf]
  %v38 = vld [vmem:[%s1 + $0xc] sm:$0xf]
  %v39 = vld [vmem:[%s1 + $0x10] sm:$0xf]
  %v40 = vld [vmem:[%s1 + $0x14] sm:$0xf]
  %v41 = vld [vmem:[%s1 + $0x18] sm:$0xf]
  %v42 = vld [vmem:[%s1 + $0x1c] sm:$0xf]
  %v43 = vld [vmem:[%s1 + $0x20] sm:$0xf]
  %v44 = vld [vmem:[%s4] sm:$0x1]
  %v46 = vlaneseq
  %v47 = vshrl.u32 %v46, 7
  %v48 = vsub.s32 0, %v47
  %v49 = vrot.slane %v44, %v48
  %v59 = vunpack.c.l.b16 %v27
  %v60 = vunpack.c.l.b16 %v28
  %v61 = vunpack.c.l.b16 %v29
  %v62 = vunpack.c.l.b16 %v30
  %v63 = vunpack.c.l.b16 %v31
  %v64 = vunpack.c.l.b16 %v32
  %v65 = vunpack.c.l.b16 %v33
  %v66 = vunpack.c.l.b16 %v34
  %v67 = vpack.c.b16 %v60, %v59
  %v68 = vpack.c.b16 %v62, %v61
  %v69 = vpack.c.b16 %v64, %v63
  %v70 = vpack.c.b16 %v66, %v65
  %v80 = vunpack.c.l.b16 %v35
  %v81 = vunpack.c.l.b16 %v36
  %v82 = vunpack.c.l.b16 %v37
  %v83 = vunpack.c.l.b16 %v38
  %v84 = vunpack.c.l.b16 %v39
  %v85 = vunpack.c.l.b16 %v40
  %v86 = vunpack.c.l.b16 %v41
  %v87 = vunpack.c.l.b16 %v42
  %v88 = vunpack.c.l.b16 %v43
  %v89 = vpack.c.b16 %v81, %v80
  %v90 = vpack.c.b16 %v83, %v82
  %v91 = vpack.c.b16 %v85, %v84
  %v92 = vpack.c.b16 %v87, %v86
  %v93 = vpack.c.b16 %v88, %v88
  %vm98 = vcmask 588800
  %v100 = vsel %vm98, %v67, 0
  %v103 = vsel %vm98, %v68, 0
  %v106 = vsel %vm98, %v69, 0
  %v109 = vsel %vm98, %v70, 0
  %vm111 = vcmask 1043456
  %v113 = vsel %vm111, %v93, 0
  %115 = vmatprep.subr.bf16.mxu0 0
  %116 = vmatpush1.bf16.msra.mxu0 %v89
  %117 = vmatprep.subr.bf16.mxu0 0
  %118 = vmatpush1.bf16.msra.mxu0 %v90
  %119 = vmatprep.subr.bf16.mxu0 0
  %120 = vmatpush1.bf16.msra.mxu0 %v91
  %121 = vmatprep.subr.bf16.mxu0 0
  %122 = vmatpush1.bf16.msra.mxu0 %v92
  %123 = vmatprep.subr.bf16.mxu0 0
  %124 = vmatpush1.bf16.msra.mxu0 %v113
  %125 = vmatprep.subr.bf16.mxu0 0
  %126 = vmatpush1.bf16.msra.mxu0 0
  %127 = vmatprep.subr.bf16.mxu0 0
  %128 = vmatpush1.bf16.msra.mxu0 0
  %129 = vmatprep.subr.bf16.mxu0 0
  %130 = vmatpush1.bf16.msra.mxu0 0
  %131 = vmatprep.subr.bf16.mxu0 0
  %132 = vmatpush1.bf16.msra.mxu0 0
  %133 = vmatprep.subr.bf16.mxu0 0
  %134 = vmatpush1.bf16.msra.mxu0 0
  %135 = vmatprep.subr.bf16.mxu0 0
  %136 = vmatpush1.bf16.msra.mxu0 0
  %137 = vmatprep.subr.bf16.mxu0 0
  %138 = vmatpush1.bf16.msra.mxu0 0
  %139 = vmatprep.subr.bf16.mxu0 0
  %140 = vmatpush1.bf16.msra.mxu0 0
  %141 = vmatprep.subr.bf16.mxu0 0
  %142 = vmatpush1.bf16.msra.mxu0 0
  %143 = vmatprep.subr.bf16.mxu0 0
  %144 = vmatpush1.bf16.msra.mxu0 0
  %145 = vmatprep.subr.bf16.mxu0 0
  %146 = vmatpush1.bf16.msra.mxu0 0
  %147 = vmatprep.mubr.bf16.mxu0 0
  %148 = vmatmul.mubr.bf16.gmra.mrb[0].mxu0 %v100
  %v149 = vpop.f32.mrb[0].mxu0
  %v150 = vadd.f32 %v49, %v149
  %v151 = vpop.f32.mrb[0].mxu0
  %v152 = vpop.f32.mrb[0].mxu0
  %v153 = vadd.f32 %v49, %v152
  %v154 = vpop.f32.mrb[0].mxu0
  %155 = vmatprep.mubr.bf16.mxu0 0
  %156 = vmatmul.mubr.bf16.gmra.mrb[0].mxu0 %v103
  %v157 = vpop.f32.mrb[0].mxu0
  %v158 = vadd.f32 %v49, %v157
  %v159 = vpop.f32.mrb[0].mxu0
  %v160 = vpop.f32.mrb[0].mxu0
  %v161 = vadd.f32 %v49, %v160
  %v162 = vpop.f32.mrb[0].mxu0
  %163 = vmatprep.mubr.bf16.mxu0 0
  %164 = vmatmul.mubr.bf16.gmra.mrb[0].mxu0 %v106
  %v165 = vpop.f32.mrb[0].mxu0
  %v166 = vadd.f32 %v49, %v165
  %v167 = vpop.f32.mrb[0].mxu0
  %v168 = vpop.f32.mrb[0].mxu0
  %v169 = vadd.f32 %v49, %v168
  %v170 = vpop.f32.mrb[0].mxu0
  %171 = vmatprep.mubr.bf16.mxu0 0
  %172 = vmatmul.mubr.bf16.gmra.mrb[0].mxu0 %v109
  %v173 = vpop.f32.mrb[0].mxu0
  %v174 = vadd.f32 %v49, %v173
  %v175 = vpop.f32.mrb[0].mxu0
  %v176 = vpop.f32.mrb[0].mxu0
  %v177 = vadd.f32 %v49, %v176
  %v178 = vpop.f32.mrb[0].mxu0
  %179 = vdwg.mxu0
  %v180 = vmax.f32 %v150, 0.0
  %v181 = vmax.f32 %v153, 0.0
  %v182 = vmax.f32 %v158, 0.0
  %v183 = vmax.f32 %v161, 0.0
  %v184 = vmax.f32 %v166, 0.0
  %v185 = vmax.f32 %v169, 0.0
  %v186 = vmax.f32 %v174, 0.0
  %v187 = vmax.f32 %v177, 0.0
  %v188 = vmin.f32 %v180, 20.0
  %v189 = vmin.f32 %v181, 20.0
  %v190 = vmin.f32 %v182, 20.0
  %v191 = vmin.f32 %v183, 20.0
  %v192 = vmin.f32 %v184, 20.0
  %v193 = vmin.f32 %v185, 20.0
  %v194 = vmin.f32 %v186, 20.0
  %v195 = vmin.f32 %v187, 20.0
  %v196 = vpack.c.bf16 %v189, %v188
  %v197 = vpack.c.bf16 %v191, %v190
  %v198 = vpack.c.bf16 %v193, %v192
  %v199 = vpack.c.bf16 %v195, %v194
  %v200 = vld [vmem:[%s2] sm:$0xf]
  %v201 = vld [vmem:[%s2 + $0x4] sm:$0xf]
  %v202 = vld [vmem:[%s2 + $0x8] sm:$0xf]
  %v203 = vld [vmem:[%s2 + $0xc] sm:$0xf]
  %v204 = vld [vmem:[%s5] sm:$0x1]
  %v206 = vlaneseq
  %v207 = vshrl.u32 %v206, 7
  %v208 = vsub.s32 0, %v207
  %v209 = vrot.slane %v204, %v208
  %v215 = vunpack.c.l.b16 %v200
  %v216 = vunpack.c.l.b16 %v201
  %v217 = vunpack.c.l.b16 %v202
  %v218 = vunpack.c.l.b16 %v203
  %v219 = vpack.c.b16 %v216, %v215
  %v220 = vpack.c.b16 %v218, %v217
  %vm223 = vcmask 261120
  %v225 = vsel %vm223, %v196, 0
  %v228 = vsel %vm223, %v197, 0
  %v231 = vsel %vm223, %v198, 0
  %v234 = vsel %vm223, %v199, 0
  %236 = vmatprep.subr.bf16.mxu0 0
  %237 = vmatpush1.bf16.msra.mxu0 %v219
  %238 = vmatprep.subr.bf16.mxu0 0
  %239 = vmatpush1.bf16.msra.mxu0 %v220
  %240 = vmatprep.subr.bf16.mxu0 0
  %241 = vmatpush1.bf16.msra.mxu0 0
  %242 = vmatprep.subr.bf16.mxu0 0
  %243 = vmatpush1.bf16.msra.mxu0 0
  %244 = vmatprep.subr.bf16.mxu0 0
  %245 = vmatpush1.bf16.msra.mxu0 0
  %246 = vmatprep.subr.bf16.mxu0 0
  %247 = vmatpush1.bf16.msra.mxu0 0
  %248 = vmatprep.subr.bf16.mxu0 0
  %249 = vmatpush1.bf16.msra.mxu0 0
  %250 = vmatprep.subr.bf16.mxu0 0
  %251 = vmatpush1.bf16.msra.mxu0 0
  %252 = vmatprep.subr.bf16.mxu0 0
  %253 = vmatpush1.bf16.msra.mxu0 0
  %254 = vmatprep.subr.bf16.mxu0 0
  %255 = vmatpush1.bf16.msra.mxu0 0
  %256 = vmatprep.subr.bf16.mxu0 0
  %257 = vmatpush1.bf16.msra.mxu0 0
  %258 = vmatprep.subr.bf16.mxu0 0
  %259 = vmatpush1.bf16.msra.mxu0 0
  %260 = vmatprep.subr.bf16.mxu0 0
  %261 = vmatpush1.bf16.msra.mxu0 0
  %262 = vmatprep.subr.bf16.mxu0 0
  %263 = vmatpush1.bf16.msra.mxu0 0
  %264 = vmatprep.subr.bf16.mxu0 0
  %265 = vmatpush1.bf16.msra.mxu0 0
  %266 = vmatprep.subr.bf16.mxu0 0
  %267 = vmatpush1.bf16.msra.mxu0 0
  %268 = vmatprep.mubr.bf16.mxu0 0
  %269 = vmatmul.mubr.bf16.gmra.mrb[0].mxu0 %v225
  %v270 = vpop.f32.mrb[0].mxu0
  %v271 = vadd.f32 %v209, %v270
  %v272 = vpop.f32.mrb[0].mxu0
  %v273 = vpop.f32.mrb[0].mxu0
  %v274 = vadd.f32 %v209, %v273
  %v275 = vpop.f32.mrb[0].mxu0
  %276 = vmatprep.mubr.bf16.mxu0 0
  %277 = vmatmul.mubr.bf16.gmra.mrb[0].mxu0 %v228
  %v278 = vpop.f32.mrb[0].mxu0
  %v279 = vadd.f32 %v209, %v278
  %v280 = vpop.f32.mrb[0].mxu0
  %v281 = vpop.f32.mrb[0].mxu0
  %v282 = vadd.f32 %v209, %v281
  %v283 = vpop.f32.mrb[0].mxu0
  %284 = vmatprep.mubr.bf16.mxu0 0
  %285 = vmatmul.mubr.bf16.gmra.mrb[0].mxu0 %v231
  %v286 = vpop.f32.mrb[0].mxu0
  %v287 = vadd.f32 %v209, %v286
  %v288 = vpop.f32.mrb[0].mxu0
  %v289 = vpop.f32.mrb[0].mxu0
  %v290 = vadd.f32 %v209, %v289
  %v291 = vpop.f32.mrb[0].mxu0
  %292 = vmatprep.mubr.bf16.mxu0 0
  %293 = vmatmul.mubr.bf16.gmra.mrb[0].mxu0 %v234
  %v294 = vpop.f32.mrb[0].mxu0
  %v295 = vadd.f32 %v209, %v294
  %v296 = vpop.f32.mrb[0].mxu0
  %v297 = vpop.f32.mrb[0].mxu0
  %v298 = vadd.f32 %v209, %v297
  %v299 = vpop.f32.mrb[0].mxu0
  %300 = vdwg.mxu0
  %v301 = vmax.f32 %v271, 0.0
  %v302 = vmax.f32 %v274, 0.0
  %v303 = vmax.f32 %v279, 0.0
  %v304 = vmax.f32 %v282, 0.0
  %v305 = vmax.f32 %v287, 0.0
  %v306 = vmax.f32 %v290, 0.0
  %v307 = vmax.f32 %v295, 0.0
  %v308 = vmax.f32 %v298, 0.0
  %v309 = vmin.f32 %v301, 20.0
  %v310 = vmin.f32 %v302, 20.0
  %v311 = vmin.f32 %v303, 20.0
  %v312 = vmin.f32 %v304, 20.0
  %v313 = vmin.f32 %v305, 20.0
  %v314 = vmin.f32 %v306, 20.0
  %v315 = vmin.f32 %v307, 20.0
  %v316 = vmin.f32 %v308, 20.0
  %v317 = vpack.c.bf16 %v310, %v309
  %v318 = vpack.c.bf16 %v312, %v311
  %v319 = vpack.c.bf16 %v314, %v313
  %v320 = vpack.c.bf16 %v316, %v315
  %v321 = vld [vmem:[%s3] sm:$0xf]
  %v322 = vld [vmem:[%s3 + $0x4] sm:$0xf]
  %v323 = vld [vmem:[%s3 + $0x8] sm:$0xf]
  %v324 = vld [vmem:[%s3 + $0xc] sm:$0xf]
  %v325 = vld [vmem:[%s6] sm:$0x1]
  %v327 = vlaneseq
  %v328 = vshrl.u32 %v327, 7
  %v329 = vsub.s32 0, %v328
  %v330 = vrot.slane %v325, %v329
  %v336 = vunpack.c.l.b16 %v321
  %v337 = vunpack.c.l.b16 %v322
  %v338 = vunpack.c.l.b16 %v323
  %v339 = vunpack.c.l.b16 %v324
  %v340 = vpack.c.b16 %v337, %v336
  %v341 = vpack.c.b16 %v339, %v338
  %v345 = vsel %vm223, %v317, 0
  %v348 = vsel %vm223, %v318, 0
  %v351 = vsel %vm223, %v319, 0
  %v354 = vsel %vm223, %v320, 0
  %356 = vmatprep.subr.bf16.mxu0 0
  %357 = vmatpush1.bf16.msra.mxu0 %v340
  %358 = vmatprep.subr.bf16.mxu0 0
  %359 = vmatpush1.bf16.msra.mxu0 %v341
  %360 = vmatprep.subr.bf16.mxu0 0
  %361 = vmatpush1.bf16.msra.mxu0 0
  %362 = vmatprep.subr.bf16.mxu0 0
  %363 = vmatpush1.bf16.msra.mxu0 0
  %364 = vmatprep.subr.bf16.mxu0 0
  %365 = vmatpush1.bf16.msra.mxu0 0
  %366 = vmatprep.subr.bf16.mxu0 0
  %367 = vmatpush1.bf16.msra.mxu0 0
  %368 = vmatprep.subr.bf16.mxu0 0
  %369 = vmatpush1.bf16.msra.mxu0 0
  %370 = vmatprep.subr.bf16.mxu0 0
  %371 = vmatpush1.bf16.msra.mxu0 0
  %372 = vmatprep.subr.bf16.mxu0 0
  %373 = vmatpush1.bf16.msra.mxu0 0
  %374 = vmatprep.subr.bf16.mxu0 0
  %375 = vmatpush1.bf16.msra.mxu0 0
  %376 = vmatprep.subr.bf16.mxu0 0
  %377 = vmatpush1.bf16.msra.mxu0 0
  %378 = vmatprep.subr.bf16.mxu0 0
  %379 = vmatpush1.bf16.msra.mxu0 0
  %380 = vmatprep.subr.bf16.mxu0 0
  %381 = vmatpush1.bf16.msra.mxu0 0
  %382 = vmatprep.subr.bf16.mxu0 0
  %383 = vmatpush1.bf16.msra.mxu0 0
  %384 = vmatprep.subr.bf16.mxu0 0
  %385 = vmatpush1.bf16.msra.mxu0 0
  %386 = vmatprep.subr.bf16.mxu0 0
  %387 = vmatpush1.bf16.msra.mxu0 0
  %388 = vmatprep.mubr.bf16.mxu0 0
  %389 = vmatmul.mubr.bf16.gmra.mrb[0].mxu0 %v345
  %v390 = vpop.f32.mrb[0].mxu0
  %v391 = vadd.f32 %v330, %v390
  %v392 = vpop.f32.mrb[0].mxu0
  %v393 = vpop.f32.mrb[0].mxu0
  %v394 = vadd.f32 %v330, %v393
  %v395 = vpop.f32.mrb[0].mxu0
  %396 = vmatprep.mubr.bf16.mxu0 0
  %397 = vmatmul.mubr.bf16.gmra.mrb[0].mxu0 %v348
  %v398 = vpop.f32.mrb[0].mxu0
  %v399 = vadd.f32 %v330, %v398
  %v400 = vpop.f32.mrb[0].mxu0
  %v401 = vpop.f32.mrb[0].mxu0
  %v402 = vadd.f32 %v330, %v401
  %v403 = vpop.f32.mrb[0].mxu0
  %404 = vmatprep.mubr.bf16.mxu0 0
  %405 = vmatmul.mubr.bf16.gmra.mrb[0].mxu0 %v351
  %v406 = vpop.f32.mrb[0].mxu0
  %v407 = vadd.f32 %v330, %v406
  %v408 = vpop.f32.mrb[0].mxu0
  %v409 = vpop.f32.mrb[0].mxu0
  %v410 = vadd.f32 %v330, %v409
  %v411 = vpop.f32.mrb[0].mxu0
  %412 = vmatprep.mubr.bf16.mxu0 0
  %413 = vmatmul.mubr.bf16.gmra.mrb[0].mxu0 %v354
  %v414 = vpop.f32.mrb[0].mxu0
  %v415 = vadd.f32 %v330, %v414
  %v416 = vpop.f32.mrb[0].mxu0
  %v417 = vpop.f32.mrb[0].mxu0
  %v418 = vadd.f32 %v330, %v417
  %v419 = vpop.f32.mrb[0].mxu0
  %420 = vdwg.mxu0
  %v421 = vmax.f32 %v391, 0.0
  %v422 = vmax.f32 %v394, 0.0
  %v423 = vmax.f32 %v399, 0.0
  %v424 = vmax.f32 %v402, 0.0
  %v425 = vmax.f32 %v407, 0.0
  %v426 = vmax.f32 %v410, 0.0
  %v427 = vmax.f32 %v415, 0.0
  %v428 = vmax.f32 %v418, 0.0
  %v429 = vmin.f32 %v421, 20.0
  %v430 = vmin.f32 %v422, 20.0
  %v431 = vmin.f32 %v423, 20.0
  %v432 = vmin.f32 %v424, 20.0
  %v433 = vmin.f32 %v425, 20.0
  %v434 = vmin.f32 %v426, 20.0
  %v435 = vmin.f32 %v427, 20.0
  %v436 = vmin.f32 %v428, 20.0
  %v437 = vpack.c.bf16 %v430, %v429
  %v438 = vpack.c.bf16 %v432, %v431
  %v439 = vpack.c.bf16 %v434, %v433
  %v440 = vpack.c.bf16 %v436, %v435
  %v445 = vunpack.c.l.b16 %v437
  %v446 = vunpack.c.h.b16 %v437
  %v447 = vunpack.c.l.b16 %v438
  %v448 = vunpack.c.h.b16 %v438
  %v449 = vunpack.c.l.b16 %v439
  %v450 = vunpack.c.h.b16 %v439
  %v451 = vunpack.c.l.b16 %v440
  %v452 = vunpack.c.h.b16 %v440
  %v453 = vpack.c.b16 %v445, %v445
  %v454 = vpack.c.b16 %v446, %v446
  %v455 = vpack.c.b16 %v447, %v447
  %v456 = vpack.c.b16 %v448, %v448
  %v457 = vpack.c.b16 %v449, %v449
  %v458 = vpack.c.b16 %v450, %v450
  %v459 = vpack.c.b16 %v451, %v451
  %v460 = vpack.c.b16 %v452, %v452
  %vm469 = vcmask 257024
  %470 = vst.msk [vmem:[%s7] sm:$0xf] %vm469, %v453
  %471 = vst.msk [vmem:[%s7 + $0x4] sm:$0xf] %vm469, %v454
  %472 = vst.msk [vmem:[%s7 + $0x8] sm:$0xf] %vm469, %v455
  %473 = vst.msk [vmem:[%s7 + $0xc] sm:$0xf] %vm469, %v456
  %474 = vst.msk [vmem:[%s7 + $0x10] sm:$0xf] %vm469, %v457
  %475 = vst.msk [vmem:[%s7 + $0x14] sm:$0xf] %vm469, %v458
  %476 = vst.msk [vmem:[%s7 + $0x18] sm:$0xf] %vm469, %v459
  %477 = vst.msk [vmem:[%s7 + $0x1c] sm:$0xf] %vm469, %v460
  // Predicated region
  $region30: #{deepspeech_forward.8} parent=0 // pred_check
    _
  $region31: #{deepspeech_forward.8} parent=0 // pred_check_branch
    %479 = sbr.rel (0) target = $region33
  $region32: #{deepspeech_forward.8} parent=0 // pred_region
    _
  $region33: #{deepspeech_forward.8} parent=0 // pred_fallthru
    _
  // Predicated region
  $region34: #{deepspeech_forward.8} parent=0 // pred_check
    _
  $region35: #{deepspeech_forward.8} parent=0 // pred_check_branch
    %481 = sbr.rel (0) target = $region37
  $region36: #{deepspeech_forward.8} parent=0 // pred_region
    _
  $region37: #{deepspeech_forward.8} parent=0 // pred_fallthru
    _

// kernel: deepspeech_forward.10
$region0: #{deepspeech_forward.10}
  #allocation0 [shape = 'u32[]', space=smem, size = 0x4, offset = 0x4, fixed_abs, tag = 'smem constant byte address 0x4 - core index']
  #allocation1 [shape = 'u32[144,128]{1,0:T(1,128)}', space=vmem, size = 0x12000, scoped, tag = 'internal scratch']
  #allocation2 [shape = 'f32[8,32]{1,0:T(8,128)}', space=vmem, size = 0x1000, scoped, tag = 'scratch operand']
  %s0 = inlined_call_operand.vmem [shape: bf16[2,8,8,32], index: 0, kind: input, shape index: {}]
  %s1 = inlined_call_operand.vmem [shape: bf16[2,32,32], index: 1, kind: input, shape index: {}]
  %s2 = inlined_call_operand.vmem [shape: bf16[2,8,8,32], index: 2, kind: output, shape index: {}]
  %s3 = sld [smem:[#allocation0]]
  $region45: #{deepspeech_forward.10} parent=0
    _
  %s5 = ssub.s32 1, %s3
  %s6 = scalar_select 0, %s5, %s3
  loop: start=0, step=1, limit=4
  $region2: #{deepspeech_forward.10} parent=0 // loop_pre_header
    _
  $region3: #{deepspeech_forward.10} parent=0 // loop_header
    %s8 = sphi 0, %s12
    %p9 = scmp.ge.s32.totalorder %s8, 4
    %s15 = sphi 0, %s27
    %s16 = sphi 0, %s23
    %s17 = sphi 0, %s15
    %s18 = sphi 0, %s16
    %s19 = sphi 0, %s17
    %s20 = sphi 0, %s18
    %s40 = sphi 0, %s42
    %s43 = sphi 0, %s40
    %s44 = sphi 0, %s43
    %s60 = sphi 0, %s44
    %s66 = sphi 0, %s68
    %s69 = sphi 0, %s66
    %s70 = sphi 0, %s69
    %s86 = sphi 0, %s70
    %s102 = sphi 0, %s104
    %s105 = sphi 0, %s102
    %s106 = sphi 0, %s105
    %s122 = sphi 0, %s106
  $region4: #{deepspeech_forward.10} parent=0 // loop_header_branch
    %11 = sbr.rel (%p9) target = $region8
  $region5: #{deepspeech_forward.10} parent=0 // loop_body
    %s13 = ssub.s32 %s8, 1
    %s14 = ssub.s32 %s8, 2
    %s21 = sadd.s32 1, %s16
    %p22 = scmp.ge.s32.totalorder %s21, 1
    %s23 = scalar_select %p22, 0, %s21
    %s24 = sadd.s32 1, %s15
    %s25 = scalar_select %p22, %s24, %s15
    %p26 = scmp.ge.s32.totalorder %s25, 2
    %s27 = scalar_select %p26, 0, %s25
    %s28 = smul.u32 %s16, 2
    %s29 = ssub.s32 0, %s28
    %s30 = smul.u32 %s15, %s29
    %s31 = sadd.s32 %s16, %s30
    %s32 = smul.u32 %s23, 2
    %s33 = ssub.s32 0, %s32
    %s34 = smul.u32 %s27, %s33
    %s35 = sadd.s32 %s23, %s34
    %s36 = ssub.s32 %s15, %s27
    %s37 = ssub.s32 %s31, %s35
    %s38 = sor.u32 %s36, %s37
    %p39 = scmp.eq.s32.totalorder %s38, 0
    %s41 = sadd.s32 %s40, 1
    %s42 = scalar_select %p39, %s40, %s41
    %p45 = pneg %p39
    %p46 = scmp.eq.s32.totalorder %s8, 1
    %p47 = por %p45, %p46
    %p48 = scmp.ne.s32.totalorder %s40, %s43
    %p49 = scmp.eq.s32.totalorder %s8, 0
    %p50 = por %p48, %p49
    %p51 = scmp.ne.s32.totalorder %s40, %s43
    %p52 = scmp.eq.s32.totalorder %s13, 1
    %p53 = por %p51, %p52
    %p54 = scmp.ne.s32.totalorder %s43, %s44
    %p55 = scmp.eq.s32.totalorder %s13, 0
    %p56 = por %p54, %p55
    %p57 = scmp.ne.s32.totalorder %s43, %s44
    %p58 = scmp.eq.s32.totalorder %s14, 1
    %p59 = por %p57, %p58
    %p61 = scmp.ne.s32.totalorder %s44, %s60
    %p62 = scmp.eq.s32.totalorder %s14, 0
    %p63 = por %p61, %p62
    %s64 = ssub.s32 %s15, %s27
    %p65 = scmp.eq.s32.totalorder %s64, 0
    %s67 = sadd.s32 %s66, 1
    %s68 = scalar_select %p65, %s66, %s67
    %p71 = pneg %p65
    %p72 = scmp.eq.s32.totalorder %s8, 1
    %p73 = por %p71, %p72
    %p74 = scmp.ne.s32.totalorder %s66, %s69
    %p75 = scmp.eq.s32.totalorder %s8, 0
    %p76 = por %p74, %p75
    %p77 = scmp.ne.s32.totalorder %s66, %s69
    %p78 = scmp.eq.s32.totalorder %s13, 1
    %p79 = por %p77, %p78
    %p80 = scmp.ne.s32.totalorder %s69, %s70
    %p81 = scmp.eq.s32.totalorder %s13, 0
    %p82 = por %p80, %p81
    %p83 = scmp.ne.s32.totalorder %s69, %s70
    %p84 = scmp.eq.s32.totalorder %s14, 1
    %p85 = por %p83, %p84
    %p87 = scmp.ne.s32.totalorder %s70, %s86
    %p88 = scmp.eq.s32.totalorder %s14, 0
    %p89 = por %p87, %p88
    %s90 = smul.u32 %s16, 2
    %s91 = ssub.s32 0, %s90
    %s92 = smul.u32 %s15, %s91
    %s93 = sadd.s32 %s16, %s92
    %s94 = smul.u32 %s23, 2
    %s95 = ssub.s32 0, %s94
    %s96 = smul.u32 %s27, %s95
    %s97 = sadd.s32 %s23, %s96
    %s98 = ssub.s32 %s15, %s27
    %s99 = ssub.s32 %s93, %s97
    %s100 = sor.u32 %s98, %s99
    %p101 = scmp.eq.s32.totalorder %s100, 0
    %s103 = sadd.s32 %s102, 1
    %s104 = scalar_select %p101, %s102, %s103
    %p107 = pneg %p101
    %p108 = scmp.eq.s32.totalorder %s8, 1
    %p109 = por %p107, %p108
    %p110 = scmp.ne.s32.totalorder %s102, %s105
    %p111 = scmp.eq.s32.totalorder %s8, 0
    %p112 = por %p110, %p111
    %p113 = scmp.ne.s32.totalorder %s102, %s105
    %p114 = scmp.eq.s32.totalorder %s13, 1
    %p115 = por %p113, %p114
    %p116 = scmp.ne.s32.totalorder %s105, %s106
    %p117 = scmp.eq.s32.totalorder %s13, 0
    %p118 = por %p116, %p117
    %p119 = scmp.ne.s32.totalorder %s105, %s106
    %p120 = scmp.eq.s32.totalorder %s14, 1
    %p121 = por %p119, %p120
    %p123 = scmp.ne.s32.totalorder %s106, %s122
    %p124 = scmp.eq.s32.totalorder %s14, 0
    %p125 = por %p123, %p124
    %p126 = scmp.le.s32.totalorder 1, %s8
    %p127 = scmp.lt.s32.totalorder %s8, 3
    %p128 = pnand %p126, %p127
    %p129 = pneg %p128
    // Predicated region
    $region9: #{deepspeech_forward.10} parent=5 // pred_check
      _
    $region10: #{deepspeech_forward.10} parent=5 // pred_check_branch
      %131 = sbr.rel (%p128) target = $region12
    $region11: #{deepspeech_forward.10} parent=5 // pred_region
      %s132 = ssub.s32 %s8, 1
    $region12: #{deepspeech_forward.10} parent=5 // pred_fallthru
      _
    %p133 = scmp.lt.s32.totalorder %s8, 2
    // Predicated region
    $region13: #{deepspeech_forward.10} parent=5 // pred_check
      %p134 = pneg %p133
    $region14: #{deepspeech_forward.10} parent=5 // pred_check_branch
      %136 = sbr.rel (%p134) target = $region16
    $region15: #{deepspeech_forward.10} parent=5 // pred_region
      // Predicated region
      $region17: #{deepspeech_forward.10} parent=15 // pred_check
        %p137 = pneg %p50
      $region18: #{deepspeech_forward.10} parent=15 // pred_check_branch
        %139 = sbr.rel (%p137) target = $region20
      $region19: #{deepspeech_forward.10} parent=15 // pred_region
        %s140 = smul.u32 %s16, 2
        %s141 = ssub.s32 0, %s140
        %s142 = smul.u32 %s15, %s141
        %s143 = sadd.s32 %s16, %s142
        %s144 = smul.u32 8, %s143
        %p145 = scmp.lt.s32.totalorder %s15, 1
        %s146 = scalar_select %p145, %s15, 1
        %p147 = scmp.lt.s32.totalorder %s144, 7
        %s148 = scalar_select %p147, %s144, 7
        %s149 = smul.addr %s146, 8
        %s150 = sadd.s32 %s148, %s149
        %s151 = smul.addr %s150, 4
        %s152 = scalar_lea.vmem %s0, %s151
        %s153 = smul.u32 %s16, 2
        %s154 = ssub.s32 0, %s153
        %s155 = smul.u32 %s15, %s154
        %s156 = sadd.s32 %s16, %s155
        %s157 = smul.u32 8, %s156
      $region20: #{deepspeech_forward.10} parent=15 // pred_fallthru
        _
      // Predicated region
      $region21: #{deepspeech_forward.10} parent=15 // pred_check
        %p158 = pneg %p76
      $region22: #{deepspeech_forward.10} parent=15 // pred_check_branch
        %160 = sbr.rel (%p158) target = $region24
      $region23: #{deepspeech_forward.10} parent=15 // pred_region
        %p161 = scmp.lt.s32.totalorder %s15, 1
        %s162 = scalar_select %p161, %s15, 1
        %s163 = smul.addr %s162, 4
        %s164 = smul.addr %s163, 4
        %s165 = scalar_lea.vmem %s1, %s164
      $region24: #{deepspeech_forward.10} parent=15 // pred_fallthru
        _
    $region16: #{deepspeech_forward.10} parent=5 // pred_fallthru
      _
    %p166 = scmp.le.s32.totalorder 1, %s8
    %p167 = scmp.lt.s32.totalorder %s8, 3
    %p168 = pnand %p166, %p167
    %p169 = pneg %p168
    // Predicated region
    $region25: #{deepspeech_forward.10} parent=5 // pred_check
      _
    $region26: #{deepspeech_forward.10} parent=5 // pred_check_branch
      %171 = sbr.rel (%p168) target = $region28
    $region27: #{deepspeech_forward.10} parent=5 // pred_region
      %s172 = ssub.s32 %s8, 1
      %s173 = smul.u32 %s18, 2
      %s174 = ssub.s32 0, %s173
      %s175 = smul.u32 %s17, %s174
      %s176 = sadd.s32 %s18, %s175
      %s177 = smul.u32 8, %s176
      %p178 = scmp.lt.s32.totalorder %s17, 1
      %s179 = scalar_select %p178, %s17, 1
      %p180 = scmp.lt.s32.totalorder %s177, 7
      %s181 = scalar_select %p180, %s177, 7
      %s182 = smul.addr %s179, 8
      %s183 = sadd.s32 %s181, %s182
      %s184 = smul.addr %s183, 4
      %s185 = scalar_lea.vmem %s0, %s184
      %p186 = pneg %p56
      %p187 = pneg %p53
      %p188 = scmp.lt.s32.totalorder %s17, 1
      %s189 = scalar_select %p188, %s17, 1
      %s190 = smul.addr %s189, 4
      %s191 = smul.addr %s190, 4
      %s192 = scalar_lea.vmem %s1, %s191
      %p193 = pneg %p82
      %p194 = pneg %p79
      %p195 = pneg %p118
      %p196 = pneg %p115
      %s197 = smul.u32 %s18, 2
      %s198 = ssub.s32 0, %s197
      %s199 = smul.u32 %s17, %s198
      %s200 = sadd.s32 %s18, %s199
      %s201 = smul.u32 8, %s200
      %p202 = scmp.lt.s32.totalorder %s17, 1
      %s203 = scalar_select %p202, %s17, 1
      %p204 = scmp.lt.s32.totalorder %s201, 7
      %s205 = scalar_select %p204, %s201, 7
      %s206 = smul.addr %s203, 8
      %s207 = sadd.s32 %s205, %s206
      %s208 = smul.addr %s207, 4
      %s209 = scalar_lea.vmem %s2, %s208
      %s210 = smul.u32 %s18, 2
      %s211 = ssub.s32 0, %s210
      %s212 = smul.u32 %s17, %s211
      %s213 = sadd.s32 %s18, %s212
      %s214 = smul.u32 8, %s213
      %p215 = scmp.lt.s32.totalorder %s17, 1
      %s216 = scalar_select %p215, %s17, 1
      %p217 = scmp.lt.s32.totalorder %s214, 7
      %s218 = scalar_select %p217, %s214, 7
      %s219 = smul.addr %s216, 8
      %s220 = sadd.s32 %s218, %s219
      %s221 = smul.addr %s220, 4
      %s222 = scalar_lea.vmem %s0, %s221
      %s223 = smul.u32 %s18, 2
      %s224 = ssub.s32 0, %s223
      %s225 = smul.u32 %s17, %s224
      %s226 = sadd.s32 %s18, %s225
      %s227 = smul.u32 8, %s226
      %p228 = scmp.lt.s32.totalorder %s17, 1
      %s229 = scalar_select %p228, %s17, 1
      %s230 = smul.addr %s229, 4
      %s231 = smul.addr %s230, 4
      %s232 = scalar_lea.vmem %s1, %s231
      %s233 = smul.u32 %s18, 2
      %s234 = ssub.s32 0, %s233
      %s235 = smul.u32 %s17, %s234
      %s236 = sadd.s32 %s18, %s235
      %s237 = smul.u32 8, %s236
      %p238 = scmp.lt.s32.totalorder %s17, 1
      %s239 = scalar_select %p238, %s17, 1
      %p240 = scmp.lt.s32.totalorder %s237, 7
      %s241 = scalar_select %p240, %s237, 7
      %s242 = smul.addr %s239, 8
      %s243 = sadd.s32 %s241, %s242
      %s244 = smul.addr %s243, 4
      %s245 = scalar_lea.vmem %s2, %s244
      %s246 = smul.u32 %s18, 2
      %s247 = ssub.s32 0, %s246
      %s248 = smul.u32 %s17, %s247
      %s249 = sadd.s32 %s18, %s248
      %s250 = smul.u32 8, %s249
      %p252 = scmp.eq.s32.totalorder %s18, 0
      // Predicated region
      $region29: #{deepspeech_forward.10} parent=27 // pred_check
        %p253 = pneg %p252
      $region30: #{deepspeech_forward.10} parent=27 // pred_check_branch
        %255 = sbr.rel (%p253) target = $region32
      $region31: #{deepspeech_forward.10} parent=27 // pred_region
        %vm256 = vcmask 261120
        %257 = vst.msk [vmem:[#allocation2] sm:$0xff] %vm256, 0.0
      $region32: #{deepspeech_forward.10} parent=27 // pred_fallthru
        _
      %v258 = vld [vmem:[#allocation2] sm:$0xff]
      %s259 = smul.u32 %s17, 7
      %s260 = smul.addr %s259, 4
      %s261 = scalar_lea.vmem %s222, %s260
      %v262 = vld [vmem:[%s261] sm:$0xf]
      %v263 = vunpack.c.l.bf16 %v262
      %v264 = vpack.c.bf16 %v258, %v258
      %v265 = vld [vmem:[%s232] sm:$0xf]
      %v266 = vld [vmem:[%s232 + $0x4] sm:$0xf]
      %v267 = vld [vmem:[%s232 + $0x8] sm:$0xf]
      %v268 = vld [vmem:[%s232 + $0xc] sm:$0xf]
      %v273 = vunpack.c.l.b16 %v265
      %v274 = vunpack.c.l.b16 %v266
      %v275 = vunpack.c.l.b16 %v267
      %v276 = vunpack.c.l.b16 %v268
      %v277 = vpack.c.b16 %v274, %v273
      %v278 = vpack.c.b16 %v276, %v275
      %vm281 = vcmask 261120
      %v283 = vsel %vm281, %v264, 0
      %285 = vmatprep.subr.bf16.mxu0 0
      %286 = vmatpush1.bf16.msra.mxu0 %v277
      %287 = vmatprep.subr.bf16.mxu0 0
      %288 = vmatpush1.bf16.msra.mxu0 %v278
      %289 = vmatprep.subr.bf16.mxu0 0
      %290 = vmatpush1.bf16.msra.mxu0 0
      %291 = vmatprep.subr.bf16.mxu0 0
      %292 = vmatpush1.bf16.msra.mxu0 0
      %293 = vmatprep.subr.bf16.mxu0 0
      %294 = vmatpush1.bf16.msra.mxu0 0
      %295 = vmatprep.subr.bf16.mxu0 0
      %296 = vmatpush1.bf16.msra.mxu0 0
      %297 = vmatprep.subr.bf16.mxu0 0
      %298 = vmatpush1.bf16.msra.mxu0 0
      %299 = vmatprep.subr.bf16.mxu0 0
      %300 = vmatpush1.bf16.msra.mxu0 0
      %301 = vmatprep.subr.bf16.mxu0 0
      %302 = vmatpush1.bf16.msra.mxu0 0
      %303 = vmatprep.subr.bf16.mxu0 0
      %304 = vmatpush1.bf16.msra.mxu0 0
      %305 = vmatprep.subr.bf16.mxu0 0
      %306 = vmatpush1.bf16.msra.mxu0 0
      %307 = vmatprep.subr.bf16.mxu0 0
      %308 = vmatpush1.bf16.msra.mxu0 0
      %309 = vmatprep.subr.bf16.mxu0 0
      %310 = vmatpush1.bf16.msra.mxu0 0
      %311 = vmatprep.subr.bf16.mxu0 0
      %312 = vmatpush1.bf16.msra.mxu0 0
      %313 = vmatprep.subr.bf16.mxu0 0
      %314 = vmatpush1.bf16.msra.mxu0 0
      %315 = vmatprep.subr.bf16.mxu0 0
      %316 = vmatpush1.bf16.msra.mxu0 0
      %317 = vmatprep.mubr.bf16.mxu0 0
      %318 = vmatmul.mubr.bf16.gmra.mrb[0].mxu0 %v283
      %v319 = vpop.f32.mrb[0].mxu0
      %v320 = vadd.f32 0.0, %v319
      %v321 = vpop.f32.mrb[0].mxu0
      %v322 = vpop.f32.mrb[0].mxu0
      %v323 = vpop.f32.mrb[0].mxu0
      %324 = vdwg.mxu0
      %v325 = vadd.f32 %v263, %v320
      %v326 = vtanh.pop %v325
      %v327 = vpack.c.bf16 %v326, %v326
      %s328 = smul.addr %s259, 4
      %s329 = scalar_lea.vmem %s245, %s328
      %vm330 = vcmask 257024
      %331 = vst.msk [vmem:[%s329] sm:$0xf] %vm330, %v327
      %s332 = smul.u32 %s17, 5
      %s333 = sadd.s32 %s332, 1
      %s334 = smul.addr %s333, 4
      %s335 = scalar_lea.vmem %s222, %s334
      %v336 = vld [vmem:[%s335] sm:$0xf]
      %v337 = vunpack.c.l.bf16 %v336
      %v338 = vld [vmem:[%s232] sm:$0xf]
      %v339 = vld [vmem:[%s232 + $0x4] sm:$0xf]
      %v340 = vld [vmem:[%s232 + $0x8] sm:$0xf]
      %v341 = vld [vmem:[%s232 + $0xc] sm:$0xf]
      %v346 = vunpack.c.l.b16 %v338
      %v347 = vunpack.c.l.b16 %v339
      %v348 = vunpack.c.l.b16 %v340
      %v349 = vunpack.c.l.b16 %v341
      %v350 = vpack.c.b16 %v347, %v346
      %v351 = vpack.c.b16 %v349, %v348
      %v355 = vsel %vm281, %v327, 0
      %357 = vmatprep.subr.bf16.mxu0 0
      %358 = vmatpush1.bf16.msra.mxu0 %v350
      %359 = vmatprep.subr.bf16.mxu0 0
      %360 = vmatpush1.bf16.msra.mxu0 %v351
      %361 = vmatprep.subr.bf16.mxu0 0
      %362 = vmatpush1.bf16.msra.mxu0 0
      %363 = vmatprep.subr.bf16.mxu0 0
      %364 = vmatpush1.bf16.msra.mxu0 0
      %365 = vmatprep.subr.bf16.mxu0 0
      %366 = vmatpush1.bf16.msra.mxu0 0
      %367 = vmatprep.subr.bf16.mxu0 0
      %368 = vmatpush1.bf16.msra.mxu0 0
      %369 = vmatprep.subr.bf16.mxu0 0
      %370 = vmatpush1.bf16.msra.mxu0 0
      %371 = vmatprep.subr.bf16.mxu0 0
      %372 = vmatpush1.bf16.msra.mxu0 0
      %373 = vmatprep.subr.bf16.mxu0 0
      %374 = vmatpush1.bf16.msra.mxu0 0
      %375 = vmatprep.subr.bf16.mxu0 0
      %376 = vmatpush1.bf16.msra.mxu0 0
      %377 = vmatprep.subr.bf16.mxu0 0
      %378 = vmatpush1.bf16.msra.mxu0 0
      %379 = vmatprep.subr.bf16.mxu0 0
      %380 = vmatpush1.bf16.msra.mxu0 0
      %381 = vmatprep.subr.bf16.mxu0 0
      %382 = vmatpush1.bf16.msra.mxu0 0
      %383 = vmatprep.subr.bf16.mxu0 0
      %384 = vmatpush1.bf16.msra.mxu0 0
      %385 = vmatprep.subr.bf16.mxu0 0
      %386 = vmatpush1.bf16.msra.mxu0 0
      %387 = vmatprep.subr.bf16.mxu0 0
      %388 = vmatpush1.bf16.msra.mxu0 0
      %389 = vmatprep.mubr.bf16.mxu0 0
      %390 = vmatmul.mubr.bf16.gmra.mrb[0].mxu0 %v355
      %v391 = vpop.f32.mrb[0].mxu0
      %v392 = vadd.f32 0.0, %v391
      %v393 = vpop.f32.mrb[0].mxu0
      %v394 = vpop.f32.mrb[0].mxu0
      %v395 = vpop.f32.mrb[0].mxu0
      %396 = vdwg.mxu0
      %v397 = vadd.f32 %v337, %v392
      %v398 = vtanh.pop %v397
      %v399 = vpack.c.bf16 %v398, %v398
      %s400 = smul.addr %s333, 4
      %s401 = scalar_lea.vmem %s245, %s400
      %402 = vst.msk [vmem:[%s401] sm:$0xf] %vm330, %v399
      %s403 = smul.u32 %s17, 3
      %s404 = sadd.s32 %s403, 2
      %s405 = smul.addr %s404, 4
      %s406 = scalar_lea.vmem %s222, %s405
      %v407 = vld [vmem:[%s406] sm:$0xf]
      %v408 = vunpack.c.l.bf16 %v407
      %v409 = vld [vmem:[%s232] sm:$0xf]
      %v410 = vld [vmem:[%s232 + $0x4] sm:$0xf]
      %v411 = vld [vmem:[%s232 + $0x8] sm:$0xf]
      %v412 = vld [vmem:[%s232 + $0xc] sm:$0xf]
      %v417 = vunpack.c.l.b16 %v409
      %v418 = vunpack.c.l.b16 %v410
      %v419 = vunpack.c.l.b16 %v411
      %v420 = vunpack.c.l.b16 %v412
      %v421 = vpack.c.b16 %v418, %v417
      %v422 = vpack.c.b16 %v420, %v419
      %v426 = vsel %vm281, %v399, 0
      %428 = vmatprep.subr.bf16.mxu0 0
      %429 = vmatpush1.bf16.msra.mxu0 %v421
      %430 = vmatprep.subr.bf16.mxu0 0
      %431 = vmatpush1.bf16.msra.mxu0 %v422
      %432 = vmatprep.subr.bf16.mxu0 0
      %433 = vmatpush1.bf16.msra.mxu0 0
      %434 = vmatprep.subr.bf16.mxu0 0
      %435 = vmatpush1.bf16.msra.mxu0 0
      %436 = vmatprep.subr.bf16.mxu0 0
      %437 = vmatpush1.bf16.msra.mxu0 0
      %438 = vmatprep.subr.bf16.mxu0 0
      %439 = vmatpush1.bf16.msra.mxu0 0
      %440 = vmatprep.subr.bf16.mxu0 0
      %441 = vmatpush1.bf16.msra.mxu0 0
      %442 = vmatprep.subr.bf16.mxu0 0
      %443 = vmatpush1.bf16.msra.mxu0 0
      %444 = vmatprep.subr.bf16.mxu0 0
      %445 = vmatpush1.bf16.msra.mxu0 0
      %446 = vmatprep.subr.bf16.mxu0 0
      %447 = vmatpush1.bf16.msra.mxu0 0
      %448 = vmatprep.subr.bf16.mxu0 0
      %449 = vmatpush1.bf16.msra.mxu0 0
      %450 = vmatprep.subr.bf16.mxu0 0
      %451 = vmatpush1.bf16.msra.mxu0 0
      %452 = vmatprep.subr.bf16.mxu0 0
      %453 = vmatpush1.bf16.msra.mxu0 0
      %454 = vmatprep.subr.bf16.mxu0 0
      %455 = vmatpush1.bf16.msra.mxu0 0
      %456 = vmatprep.subr.bf16.mxu0 0
      %457 = vmatpush1.bf16.msra.mxu0 0
      %458 = vmatprep.subr.bf16.mxu0 0
      %459 = vmatpush1.bf16.msra.mxu0 0
      %460 = vmatprep.mubr.bf16.mxu0 0
      %461 = vmatmul.mubr.bf16.gmra.mrb[0].mxu0 %v426
      %v462 = vpop.f32.mrb[0].mxu0
      %v463 = vadd.f32 0.0, %v462
      %v464 = vpop.f32.mrb[0].mxu0
      %v465 = vpop.f32.mrb[0].mxu0
      %v466 = vpop.f32.mrb[0].mxu0
      %467 = vdwg.mxu0
      %v468 = vadd.f32 %v408, %v463
      %v469 = vtanh.pop %v468
      %v470 = vpack.c.bf16 %v469, %v469
      %s471 = smul.addr %s404, 4
      %s472 = scalar_lea.vmem %s245, %s471
      %473 = vst.msk [vmem:[%s472] sm:$0xf] %vm330, %v470
      %s474 = sadd.s32 %s17, 3
      %s475 = smul.addr %s474, 4
      %s476 = scalar_lea.vmem %s222, %s475
      %v477 = vld [vmem:[%s476] sm:$0xf]
      %v478 = vunpack.c.l.bf16 %v477
      %v479 = vld [vmem:[%s232] sm:$0xf]
      %v480 = vld [vmem:[%s232 + $0x4] sm:$0xf]
      %v481 = vld [vmem:[%s232 + $0x8] sm:$0xf]
      %v482 = vld [vmem:[%s232 + $0xc] sm:$0xf]
      %v487 = vunpack.c.l.b16 %v479
      %v488 = vunpack.c.l.b16 %v480
      %v489 = vunpack.c.l.b16 %v481
      %v490 = vunpack.c.l.b16 %v482
      %v491 = vpack.c.b16 %v488, %v487
      %v492 = vpack.c.b16 %v490, %v489
      %v496 = vsel %vm281, %v470, 0
      %498 = vmatprep.subr.bf16.mxu0 0
      %499 = vmatpush1.bf16.msra.mxu0 %v491
      %500 = vmatprep.subr.bf16.mxu0 0
      %501 = vmatpush1.bf16.msra.mxu0 %v492
      %502 = vmatprep.subr.bf16.mxu0 0
      %503 = vmatpush1.bf16.msra.mxu0 0
      %504 = vmatprep.subr.bf16.mxu0 0
      %505 = vmatpush1.bf16.msra.mxu0 0
      %506 = vmatprep.subr.bf16.mxu0 0
      %507 = vmatpush1.bf16.msra.mxu0 0
      %508 = vmatprep.subr.bf16.mxu0 0
      %509 = vmatpush1.bf16.msra.mxu0 0
      %510 = vmatprep.subr.bf16.mxu0 0
      %511 = vmatpush1.bf16.msra.mxu0 0
      %512 = vmatprep.subr.bf16.mxu0 0
      %513 = vmatpush1.bf16.msra.mxu0 0
      %514 = vmatprep.subr.bf16.mxu0 0
      %515 = vmatpush1.bf16.msra.mxu0 0
      %516 = vmatprep.subr.bf16.mxu0 0
      %517 = vmatpush1.bf16.msra.mxu0 0
      %518 = vmatprep.subr.bf16.mxu0 0
      %519 = vmatpush1.bf16.msra.mxu0 0
      %520 = vmatprep.subr.bf16.mxu0 0
      %521 = vmatpush1.bf16.msra.mxu0 0
      %522 = vmatprep.subr.bf16.mxu0 0
      %523 = vmatpush1.bf16.msra.mxu0 0
      %524 = vmatprep.subr.bf16.mxu0 0
      %525 = vmatpush1.bf16.msra.mxu0 0
      %526 = vmatprep.subr.bf16.mxu0 0
      %527 = vmatpush1.bf16.msra.mxu0 0
      %528 = vmatprep.subr.bf16.mxu0 0
      %529 = vmatpush1.bf16.msra.mxu0 0
      %530 = vmatprep.mubr.bf16.mxu0 0
      %531 = vmatmul.mubr.bf16.gmra.mrb[0].mxu0 %v496
      %v532 = vpop.f32.mrb[0].mxu0
      %v533 = vadd.f32 0.0, %v532
      %v534 = vpop.f32.mrb[0].mxu0
      %v535 = vpop.f32.mrb[0].mxu0
      %v536 = vpop.f32.mrb[0].mxu0
      %537 = vdwg.mxu0
      %v538 = vadd.f32 %v478, %v533
      %v539 = vtanh.pop %v538
      %v540 = vpack.c.bf16 %v539, %v539
      %s541 = smul.addr %s474, 4
      %s542 = scalar_lea.vmem %s245, %s541
      %543 = vst.msk [vmem:[%s542] sm:$0xf] %vm330, %v540
      %s544 = ssub.s32 4, %s17
      %s545 = smul.addr %s544, 4
      %s546 = scalar_lea.vmem %s222, %s545
      %v547 = vld [vmem:[%s546] sm:$0xf]
      %v548 = vunpack.c.l.bf16 %v547
      %v549 = vld [vmem:[%s232] sm:$0xf]
      %v550 = vld [vmem:[%s232 + $0x4] sm:$0xf]
      %v551 = vld [vmem:[%s232 + $0x8] sm:$0xf]
      %v552 = vld [vmem:[%s232 + $0xc] sm:$0xf]
      %v557 = vunpack.c.l.b16 %v549
      %v558 = vunpack.c.l.b16 %v550
      %v559 = vunpack.c.l.b16 %v551
      %v560 = vunpack.c.l.b16 %v552
      %v561 = vpack.c.b16 %v558, %v557
      %v562 = vpack.c.b16 %v560, %v559
      %v566 = vsel %vm281, %v540, 0
      %568 = vmatprep.subr.bf16.mxu0 0
      %569 = vmatpush1.bf16.msra.mxu0 %v561
      %570 = vmatprep.subr.bf16.mxu0 0
      %571 = vmatpush1.bf16.msra.mxu0 %v562
      %572 = vmatprep.subr.bf16.mxu0 0
      %573 = vmatpush1.bf16.msra.mxu0 0
      %574 = vmatprep.subr.bf16.mxu0 0
      %575 = vmatpush1.bf16.msra.mxu0 0
      %576 = vmatprep.subr.bf16.mxu0 0
      %577 = vmatpush1.bf16.msra.mxu0 0
      %578 = vmatprep.subr.bf16.mxu0 0
      %579 = vmatpush1.bf16.msra.mxu0 0
      %580 = vmatprep.subr.bf16.mxu0 0
      %581 = vmatpush1.bf16.msra.mxu0 0
      %582 = vmatprep.subr.bf16.mxu0 0
      %583 = vmatpush1.bf16.msra.mxu0 0
      %584 = vmatprep.subr.bf16.mxu0 0
      %585 = vmatpush1.bf16.msra.mxu0 0
      %586 = vmatprep.subr.bf16.mxu0 0
      %587 = vmatpush1.bf16.msra.mxu0 0
      %588 = vmatprep.subr.bf16.mxu0 0
      %589 = vmatpush1.bf16.msra.mxu0 0
      %590 = vmatprep.subr.bf16.mxu0 0
      %591 = vmatpush1.bf16.msra.mxu0 0
      %592 = vmatprep.subr.bf16.mxu0 0
      %593 = vmatpush1.bf16.msra.mxu0 0
      %594 = vmatprep.subr.bf16.mxu0 0
      %595 = vmatpush1.bf16.msra.mxu0 0
      %596 = vmatprep.subr.bf16.mxu0 0
      %597 = vmatpush1.bf16.msra.mxu0 0
      %598 = vmatprep.subr.bf16.mxu0 0
      %599 = vmatpush1.bf16.msra.mxu0 0
      %600 = vmatprep.mubr.bf16.mxu0 0
      %601 = vmatmul.mubr.bf16.gmra.mrb[0].mxu0 %v566
      %v602 = vpop.f32.mrb[0].mxu0
      %v603 = vadd.f32 0.0, %v602
      %v604 = vpop.f32.mrb[0].mxu0
      %v605 = vpop.f32.mrb[0].mxu0
      %v606 = vpop.f32.mrb[0].mxu0
      %607 = vdwg.mxu0
      %v608 = vadd.f32 %v548, %v603
      %v609 = vtanh.pop %v608
      %v610 = vpack.c.bf16 %v609, %v609
      %s611 = smul.addr %s544, 4
      %s612 = scalar_lea.vmem %s245, %s611
      %613 = vst.msk [vmem:[%s612] sm:$0xf] %vm330, %v610
      %s614 = smul.u32 %s17, 4294967293
      %s615 = sadd.s32 %s614, 5
      %s616 = smul.addr %s615, 4
      %s617 = scalar_lea.vmem %s222, %s616
      %v618 = vld [vmem:[%s617] sm:$0xf]
      %v619 = vunpack.c.l.bf16 %v618
      %v620 = vld [vmem:[%s232] sm:$0xf]
      %v621 = vld [vmem:[%s232 + $0x4] sm:$0xf]
      %v622 = vld [vmem:[%s232 + $0x8] sm:$0xf]
      %v623 = vld [vmem:[%s232 + $0xc] sm:$0xf]
      %v628 = vunpack.c.l.b16 %v620
      %v629 = vunpack.c.l.b16 %v621
      %v630 = vunpack.c.l.b16 %v622
      %v631 = vunpack.c.l.b16 %v623
      %v632 = vpack.c.b16 %v629, %v628
      %v633 = vpack.c.b16 %v631, %v630
      %v637 = vsel %vm281, %v610, 0
      %639 = vmatprep.subr.bf16.mxu0 0
      %640 = vmatpush1.bf16.msra.mxu0 %v632
      %641 = vmatprep.subr.bf16.mxu0 0
      %642 = vmatpush1.bf16.msra.mxu0 %v633
      %643 = vmatprep.subr.bf16.mxu0 0
      %644 = vmatpush1.bf16.msra.mxu0 0
      %645 = vmatprep.subr.bf16.mxu0 0
      %646 = vmatpush1.bf16.msra.mxu0 0
      %647 = vmatprep.subr.bf16.mxu0 0
      %648 = vmatpush1.bf16.msra.mxu0 0
      %649 = vmatprep.subr.bf16.mxu0 0
      %650 = vmatpush1.bf16.msra.mxu0 0
      %651 = vmatprep.subr.bf16.mxu0 0
      %652 = vmatpush1.bf16.msra.mxu0 0
      %653 = vmatprep.subr.bf16.mxu0 0
      %654 = vmatpush1.bf16.msra.mxu0 0
      %655 = vmatprep.subr.bf16.mxu0 0
      %656 = vmatpush1.bf16.msra.mxu0 0
      %657 = vmatprep.subr.bf16.mxu0 0
      %658 = vmatpush1.bf16.msra.mxu0 0
      %659 = vmatprep.subr.bf16.mxu0 0
      %660 = vmatpush1.bf16.msra.mxu0 0
      %661 = vmatprep.subr.bf16.mxu0 0
      %662 = vmatpush1.bf16.msra.mxu0 0
      %663 = vmatprep.subr.bf16.mxu0 0
      %664 = vmatpush1.bf16.msra.mxu0 0
      %665 = vmatprep.subr.bf16.mxu0 0
      %666 = vmatpush1.bf16.msra.mxu0 0
      %667 = vmatprep.subr.bf16.mxu0 0
      %668 = vmatpush1.bf16.msra.mxu0 0
      %669 = vmatprep.subr.bf16.mxu0 0
      %670 = vmatpush1.bf16.msra.mxu0 0
      %671 = vmatprep.mubr.bf16.mxu0 0
      %672 = vmatmul.mubr.bf16.gmra.mrb[0].mxu0 %v637
      %v673 = vpop.f32.mrb[0].mxu0
      %v674 = vadd.f32 0.0, %v673
      %v675 = vpop.f32.mrb[0].mxu0
      %v676 = vpop.f32.mrb[0].mxu0
      %v677 = vpop.f32.mrb[0].mxu0
      %678 = vdwg.mxu0
      %v679 = vadd.f32 %v619, %v674
      %v680 = vtanh.pop %v679
      %v681 = vpack.c.bf16 %v680, %v680
      %s682 = smul.addr %s615, 4
      %s683 = scalar_lea.vmem %s245, %s682
      %684 = vst.msk [vmem:[%s683] sm:$0xf] %vm330, %v681
      %s685 = smul.u32 %s17, 4294967291
      %s686 = sadd.s32 %s685, 6
      %s687 = smul.addr %s686, 4
      %s688 = scalar_lea.vmem %s222, %s687
      %v689 = vld [vmem:[%s688] sm:$0xf]
      %v690 = vunpack.c.l.bf16 %v689
      %v691 = vld [vmem:[%s232] sm:$0xf]
      %v692 = vld [vmem:[%s232 + $0x4] sm:$0xf]
      %v693 = vld [vmem:[%s232 + $0x8] sm:$0xf]
      %v694 = vld [vmem:[%s232 + $0xc] sm:$0xf]
      %v699 = vunpack.c.l.b16 %v691
      %v700 = vunpack.c.l.b16 %v692
      %v701 = vunpack.c.l.b16 %v693
      %v702 = vunpack.c.l.b16 %v694
      %v703 = vpack.c.b16 %v700, %v699
      %v704 = vpack.c.b16 %v702, %v701
      %v708 = vsel %vm281, %v681, 0
      %710 = vmatprep.subr.bf16.mxu0 0
      %711 = vmatpush1.bf16.msra.mxu0 %v703
      %712 = vmatprep.subr.bf16.mxu0 0
      %713 = vmatpush1.bf16.msra.mxu0 %v704
      %714 = vmatprep.subr.bf16.mxu0 0
      %715 = vmatpush1.bf16.msra.mxu0 0
      %716 = vmatprep.subr.bf16.mxu0 0
      %717 = vmatpush1.bf16.msra.mxu0 0
      %718 = vmatprep.subr.bf16.mxu0 0
      %719 = vmatpush1.bf16.msra.mxu0 0
      %720 = vmatprep.subr.bf16.mxu0 0
      %721 = vmatpush1.bf16.msra.mxu0 0
      %722 = vmatprep.subr.bf16.mxu0 0
      %723 = vmatpush1.bf16.msra.mxu0 0
      %724 = vmatprep.subr.bf16.mxu0 0
      %725 = vmatpush1.bf16.msra.mxu0 0
      %726 = vmatprep.subr.bf16.mxu0 0
      %727 = vmatpush1.bf16.msra.mxu0 0
      %728 = vmatprep.subr.bf16.mxu0 0
      %729 = vmatpush1.bf16.msra.mxu0 0
      %730 = vmatprep.subr.bf16.mxu0 0
      %731 = vmatpush1.bf16.msra.mxu0 0
      %732 = vmatprep.subr.bf16.mxu0 0
      %733 = vmatpush1.bf16.msra.mxu0 0
      %734 = vmatprep.subr.bf16.mxu0 0
      %735 = vmatpush1.bf16.msra.mxu0 0
      %736 = vmatprep.subr.bf16.mxu0 0
      %737 = vmatpush1.bf16.msra.mxu0 0
      %738 = vmatprep.subr.bf16.mxu0 0
      %739 = vmatpush1.bf16.msra.mxu0 0
      %740 = vmatprep.subr.bf16.mxu0 0
      %741 = vmatpush1.bf16.msra.mxu0 0
      %742 = vmatprep.mubr.bf16.mxu0 0
      %743 = vmatmul.mubr.bf16.gmra.mrb[0].mxu0 %v708
      %v744 = vpop.f32.mrb[0].mxu0
      %v745 = vadd.f32 0.0, %v744
      %v746 = vpop.f32.mrb[0].mxu0
      %v747 = vpop.f32.mrb[0].mxu0
      %v748 = vpop.f32.mrb[0].mxu0
      %749 = vdwg.mxu0
      %v750 = vadd.f32 %v690, %v745
      %v751 = vtanh.pop %v750
      %v752 = vpack.c.bf16 %v751, %v751
      %s753 = smul.addr %s686, 4
      %s754 = scalar_lea.vmem %s245, %s753
      %755 = vst.msk [vmem:[%s754] sm:$0xf] %vm330, %v752
      %s756 = smul.u32 %s17, 4294967289
      %s757 = sadd.s32 %s756, 7
      %s758 = smul.addr %s757, 4
      %s759 = scalar_lea.vmem %s222, %s758
      %v760 = vld [vmem:[%s759] sm:$0xf]
      %v761 = vunpack.c.l.bf16 %v760
      %v762 = vld [vmem:[%s232] sm:$0xf]
      %v763 = vld [vmem:[%s232 + $0x4] sm:$0xf]
      %v764 = vld [vmem:[%s232 + $0x8] sm:$0xf]
      %v765 = vld [vmem:[%s232 + $0xc] sm:$0xf]
      %v770 = vunpack.c.l.b16 %v762
      %v771 = vunpack.c.l.b16 %v763
      %v772 = vunpack.c.l.b16 %v764
      %v773 = vunpack.c.l.b16 %v765
      %v774 = vpack.c.b16 %v771, %v770
      %v775 = vpack.c.b16 %v773, %v772
      %v779 = vsel %vm281, %v752, 0
      %781 = vmatprep.subr.bf16.mxu0 0
      %782 = vmatpush1.bf16.msra.mxu0 %v774
      %783 = vmatprep.subr.bf16.mxu0 0
      %784 = vmatpush1.bf16.msra.mxu0 %v775
      %785 = vmatprep.subr.bf16.mxu0 0
      %786 = vmatpush1.bf16.msra.mxu0 0
      %787 = vmatprep.subr.bf16.mxu0 0
      %788 = vmatpush1.bf16.msra.mxu0 0
      %789 = vmatprep.subr.bf16.mxu0 0
      %790 = vmatpush1.bf16.msra.mxu0 0
      %791 = vmatprep.subr.bf16.mxu0 0
      %792 = vmatpush1.bf16.msra.mxu0 0
      %793 = vmatprep.subr.bf16.mxu0 0
      %794 = vmatpush1.bf16.msra.mxu0 0
      %795 = vmatprep.subr.bf16.mxu0 0
      %796 = vmatpush1.bf16.msra.mxu0 0
      %797 = vmatprep.subr.bf16.mxu0 0
      %798 = vmatpush1.bf16.msra.mxu0 0
      %799 = vmatprep.subr.bf16.mxu0 0
      %800 = vmatpush1.bf16.msra.mxu0 0
      %801 = vmatprep.subr.bf16.mxu0 0
      %802 = vmatpush1.bf16.msra.mxu0 0
      %803 = vmatprep.subr.bf16.mxu0 0
      %804 = vmatpush1.bf16.msra.mxu0 0
      %805 = vmatprep.subr.bf16.mxu0 0
      %806 = vmatpush1.bf16.msra.mxu0 0
      %807 = vmatprep.subr.bf16.mxu0 0
      %808 = vmatpush1.bf16.msra.mxu0 0
      %809 = vmatprep.subr.bf16.mxu0 0
      %810 = vmatpush1.bf16.msra.mxu0 0
      %811 = vmatprep.subr.bf16.mxu0 0
      %812 = vmatpush1.bf16.msra.mxu0 0
      %813 = vmatprep.mubr.bf16.mxu0 0
      %814 = vmatmul.mubr.bf16.gmra.mrb[0].mxu0 %v779
      %v815 = vpop.f32.mrb[0].mxu0
      %v816 = vadd.f32 0.0, %v815
      %v817 = vpop.f32.mrb[0].mxu0
      %v818 = vpop.f32.mrb[0].mxu0
      %v819 = vpop.f32.mrb[0].mxu0
      %820 = vdwg.mxu0
      %v821 = vadd.f32 %v761, %v816
      %v822 = vtanh.pop %v821
      %v823 = vpack.c.bf16 %v822, %v822
      %s824 = smul.addr %s757, 4
      %s825 = scalar_lea.vmem %s245, %s824
      %826 = vst.msk [vmem:[%s825] sm:$0xf] %vm330, %v823
      %827 = vst.msk [vmem:[#allocation2] sm:$0xff] %vm281, %v822
      %s828 = smul.u32 %s18, 2
      %s829 = ssub.s32 0, %s828
      %s830 = smul.u32 %s17, %s829
      %s831 = sadd.s32 %s18, %s830
      %s832 = smul.u32 8, %s831
      %p833 = scmp.lt.s32.totalorder %s17, 1
      %s834 = scalar_select %p833, %s17, 1
      %p835 = scmp.lt.s32.totalorder %s832, 7
      %s836 = scalar_select %p835, %s832, 7
      %s837 = smul.addr %s834, 8
      %s838 = sadd.s32 %s836, %s837
      %s839 = smul.addr %s838, 4
      %s840 = scalar_lea.vmem %s2, %s839
      // Predicated region
      $region33: #{deepspeech_forward.10} parent=27 // pred_check
        %p841 = pneg %p115
      $region34: #{deepspeech_forward.10} parent=27 // pred_check_branch
        %843 = sbr.rel (%p841) target = $region36
      $region35: #{deepspeech_forward.10} parent=27 // pred_region
        %s844 = smul.u32 %s18, 2
        %s845 = ssub.s32 0, %s844
        %s846 = smul.u32 %s17, %s845
        %s847 = sadd.s32 %s18, %s846
        %s848 = smul.u32 8, %s847
      $region36: #{deepspeech_forward.10} parent=27 // pred_fallthru
        _
    $region28: #{deepspeech_forward.10} parent=5 // pred_fallthru
      _
    %p849 = scmp.le.s32.totalorder 2, %s8
    // Predicated region
    $region37: #{deepspeech_forward.10} parent=5 // pred_check
      %p850 = pneg %p849
    $region38: #{deepspeech_forward.10} parent=5 // pred_check_branch
      %852 = sbr.rel (%p850) target = $region40
    $region39: #{deepspeech_forward.10} parent=5 // pred_region
      %s853 = ssub.s32 %s8, 2
      // Predicated region
      $region41: #{deepspeech_forward.10} parent=39 // pred_check
        %p854 = pneg %p121
      $region42: #{deepspeech_forward.10} parent=39 // pred_check_branch
        %856 = sbr.rel (%p854) target = $region44
      $region43: #{deepspeech_forward.10} parent=39 // pred_region
        %s857 = smul.u32 %s20, 2
        %s858 = ssub.s32 0, %s857
        %s859 = smul.u32 %s19, %s858
        %s860 = sadd.s32 %s20, %s859
        %s861 = smul.u32 8, %s860
        %p862 = scmp.lt.s32.totalorder %s19, 1
        %s863 = scalar_select %p862, %s19, 1
        %p864 = scmp.lt.s32.totalorder %s861, 7
        %s865 = scalar_select %p864, %s861, 7
        %s866 = smul.addr %s863, 8
        %s867 = sadd.s32 %s865, %s866
        %s868 = smul.addr %s867, 4
        %s869 = scalar_lea.vmem %s2, %s868
      $region44: #{deepspeech_forward.10} parent=39 // pred_fallthru
        _
    $region40: #{deepspeech_forward.10} parent=5 // pred_fallthru
      _
  $region6: #{deepspeech_forward.10} parent=0 // loop_footer
    %s12 = sadd.s32 1, %s8
  $region7: #{deepspeech_forward.10} parent=0 // loop_footer_branch
    %7 = sbr.rel target = $region3
  $region8: #{deepspeech_forward.10} parent=0 // loop_exit
    _

// kernel: deepspeech_forward.11
$region0: #{deepspeech_forward.11}
  #allocation0 [shape = 'u32[]', space=smem, size = 0x4, offset = 0x4, fixed_abs, tag = 'smem constant byte address 0x4 - core index']
  #allocation1 [shape = 'u32[144,128]{1,0:T(1,128)}', space=vmem, size = 0x12000, scoped, tag = 'internal scratch']
  %s0 = inlined_call_operand.vmem [shape: bf16[2,64,32], index: 0, kind: input, shape index: {}]
  %s1 = inlined_call_operand.vmem [shape: bf16[2,32,32], index: 1, kind: input, shape index: {}]
  %s2 = inlined_call_operand.vmem [shape: bf16[2,32,32], index: 2, kind: input, shape index: {}]
  %s3 = inlined_call_operand.vmem [shape: f32[1,32], index: 3, kind: input, shape index: {}]
  %s4 = inlined_call_operand.vmem [shape: f32[1,32], index: 4, kind: input, shape index: {}]
  %s5 = inlined_call_operand.vmem [shape: bf16[2,64,32], index: 5, kind: output, shape index: {}]
  %s6 = sld [smem:[#allocation0]]
  $region30: #{deepspeech_forward.11} parent=0
    _
  %s8 = ssub.s32 1, %s6
  %s9 = scalar_select 0, %s8, %s6
  // Predicated region
  $region2: #{deepspeech_forward.11} parent=0 // pred_check
    _
  $region3: #{deepspeech_forward.11} parent=0 // pred_check_branch
    %11 = sbr.rel (0) target = $region5
  $region4: #{deepspeech_forward.11} parent=0 // pred_region
    _
  $region5: #{deepspeech_forward.11} parent=0 // pred_fallthru
    _
  // Predicated region
  $region6: #{deepspeech_forward.11} parent=0 // pred_check
    _
  $region7: #{deepspeech_forward.11} parent=0 // pred_check_branch
    %13 = sbr.rel (0) target = $region9
  $region8: #{deepspeech_forward.11} parent=0 // pred_region
    _
  $region9: #{deepspeech_forward.11} parent=0 // pred_fallthru
    _
  // Predicated region
  $region10: #{deepspeech_forward.11} parent=0 // pred_check
    _
  $region11: #{deepspeech_forward.11} parent=0 // pred_check_branch
    %15 = sbr.rel (0) target = $region13
  $region12: #{deepspeech_forward.11} parent=0 // pred_region
    _
  $region13: #{deepspeech_forward.11} parent=0 // pred_fallthru
    _
  // Predicated region
  $region14: #{deepspeech_forward.11} parent=0 // pred_check
    _
  $region15: #{deepspeech_forward.11} parent=0 // pred_check_branch
    %17 = sbr.rel (0) target = $region17
  $region16: #{deepspeech_forward.11} parent=0 // pred_region
    _
  $region17: #{deepspeech_forward.11} parent=0 // pred_fallthru
    _
  // Predicated region
  $region18: #{deepspeech_forward.11} parent=0 // pred_check
    _
  $region19: #{deepspeech_forward.11} parent=0 // pred_check_branch
    %19 = sbr.rel (0) target = $region21
  $region20: #{deepspeech_forward.11} parent=0 // pred_region
    _
  $region21: #{deepspeech_forward.11} parent=0 // pred_fallthru
    _
  %v21 = vld [vmem:[%s3] sm:$0x1]
  %v22 = vld [vmem:[%s4] sm:$0x1]
  %v23 = vld [vmem:[%s0] sm:$0xf]
  %v24 = vld [vmem:[%s0 + $0x4] sm:$0xf]
  %v25 = vld [vmem:[%s0 + $0x8] sm:$0xf]
  %v26 = vld [vmem:[%s0 + $0xc] sm:$0xf]
  %v27 = vld [vmem:[%s0 + $0x10] sm:$0xf]
  %v28 = vld [vmem:[%s0 + $0x14] sm:$0xf]
  %v29 = vld [vmem:[%s0 + $0x18] sm:$0xf]
  %v30 = vld [vmem:[%s0 + $0x1c] sm:$0xf]
  %v31 = vld [vmem:[%s1] sm:$0xf]
  %v32 = vld [vmem:[%s1 + $0x4] sm:$0xf]
  %v33 = vld [vmem:[%s1 + $0x8] sm:$0xf]
  %v34 = vld [vmem:[%s1 + $0xc] sm:$0xf]
  %v43 = vunpack.c.l.b16 %v23
  %v44 = vunpack.c.l.b16 %v24
  %v45 = vunpack.c.l.b16 %v25
  %v46 = vunpack.c.l.b16 %v26
  %v47 = vunpack.c.l.b16 %v27
  %v48 = vunpack.c.l.b16 %v28
  %v49 = vunpack.c.l.b16 %v29
  %v50 = vunpack.c.l.b16 %v30
  %v51 = vpack.c.b16 %v44, %v43
  %v52 = vpack.c.b16 %v46, %v45
  %v53 = vpack.c.b16 %v48, %v47
  %v54 = vpack.c.b16 %v50, %v49
  %v59 = vunpack.c.l.b16 %v31
  %v60 = vunpack.c.l.b16 %v32
  %v61 = vunpack.c.l.b16 %v33
  %v62 = vunpack.c.l.b16 %v34
  %v63 = vpack.c.b16 %v60, %v59
  %v64 = vpack.c.b16 %v62, %v61
  %vm67 = vcmask 261120
  %v69 = vsel %vm67, %v51, 0
  %v72 = vsel %vm67, %v52, 0
  %v75 = vsel %vm67, %v53, 0
  %v78 = vsel %vm67, %v54, 0
  %80 = vmatprep.subr.bf16.mxu0 0
  %81 = vmatpush1.bf16.msra.mxu0 %v63
  %82 = vmatprep.subr.bf16.mxu0 0
  %83 = vmatpush1.bf16.msra.mxu0 %v64
  %84 = vmatprep.subr.bf16.mxu0 0
  %85 = vmatpush1.bf16.msra.mxu0 0
  %86 = vmatprep.subr.bf16.mxu0 0
  %87 = vmatpush1.bf16.msra.mxu0 0
  %88 = vmatprep.subr.bf16.mxu0 0
  %89 = vmatpush1.bf16.msra.mxu0 0
  %90 = vmatprep.subr.bf16.mxu0 0
  %91 = vmatpush1.bf16.msra.mxu0 0
  %92 = vmatprep.subr.bf16.mxu0 0
  %93 = vmatpush1.bf16.msra.mxu0 0
  %94 = vmatprep.subr.bf16.mxu0 0
  %95 = vmatpush1.bf16.msra.mxu0 0
  %96 = vmatprep.subr.bf16.mxu0 0
  %97 = vmatpush1.bf16.msra.mxu0 0
  %98 = vmatprep.subr.bf16.mxu0 0
  %99 = vmatpush1.bf16.msra.mxu0 0
  %100 = vmatprep.subr.bf16.mxu0 0
  %101 = vmatpush1.bf16.msra.mxu0 0
  %102 = vmatprep.subr.bf16.mxu0 0
  %103 = vmatpush1.bf16.msra.mxu0 0
  %104 = vmatprep.subr.bf16.mxu0 0
  %105 = vmatpush1.bf16.msra.mxu0 0
  %106 = vmatprep.subr.bf16.mxu0 0
  %107 = vmatpush1.bf16.msra.mxu0 0
  %108 = vmatprep.subr.bf16.mxu0 0
  %109 = vmatpush1.bf16.msra.mxu0 0
  %110 = vmatprep.subr.bf16.mxu0 0
  %111 = vmatpush1.bf16.msra.mxu0 0
  %112 = vmatprep.mubr.bf16.mxu0 0
  %113 = vmatmul.mubr.bf16.gmra.mrb[0].mxu0 %v69
  %v114 = vpop.f32.mrb[0].mxu0
  %v115 = vadd.f32 0.0, %v114
  %v116 = vpop.f32.mrb[0].mxu0
  %v117 = vpop.f32.mrb[0].mxu0
  %v118 = vadd.f32 0.0, %v117
  %v119 = vpop.f32.mrb[0].mxu0
  %120 = vmatprep.mubr.bf16.mxu0 0
  %121 = vmatmul.mubr.bf16.gmra.mrb[0].mxu0 %v72
  %v122 = vpop.f32.mrb[0].mxu0
  %v123 = vadd.f32 0.0, %v122
  %v124 = vpop.f32.mrb[0].mxu0
  %v125 = vpop.f32.mrb[0].mxu0
  %v126 = vadd.f32 0.0, %v125
  %v127 = vpop.f32.mrb[0].mxu0
  %128 = vmatprep.mubr.bf16.mxu0 0
  %129 = vmatmul.mubr.bf16.gmra.mrb[0].mxu0 %v75
  %v130 = vpop.f32.mrb[0].mxu0
  %v131 = vadd.f32 0.0, %v130
  %v132 = vpop.f32.mrb[0].mxu0
  %v133 = vpop.f32.mrb[0].mxu0
  %v134 = vadd.f32 0.0, %v133
  %v135 = vpop.f32.mrb[0].mxu0
  %136 = vmatprep.mubr.bf16.mxu0 0
  %137 = vmatmul.mubr.bf16.gmra.mrb[0].mxu0 %v78
  %v138 = vpop.f32.mrb[0].mxu0
  %v139 = vadd.f32 0.0, %v138
  %v140 = vpop.f32.mrb[0].mxu0
  %v141 = vpop.f32.mrb[0].mxu0
  %v142 = vadd.f32 0.0, %v141
  %v143 = vpop.f32.mrb[0].mxu0
  %144 = vdwg.mxu0
  %v146 = vlaneseq
  %v147 = vshrl.u32 %v146, 7
  %v148 = vsub.s32 0, %v147
  %v149 = vrot.slane %v21, %v148
  %v151 = vadd.f32 %v149, %v115
  %v152 = vadd.f32 %v149, %v118
  %v153 = vadd.f32 %v149, %v123
  %v154 = vadd.f32 %v149, %v126
  %v155 = vadd.f32 %v149, %v131
  %v156 = vadd.f32 %v149, %v134
  %v157 = vadd.f32 %v149, %v139
  %v158 = vadd.f32 %v149, %v142
  %v159 = vld [vmem:[%s2] sm:$0xf]
  %v160 = vld [vmem:[%s2 + $0x4] sm:$0xf]
  %v161 = vld [vmem:[%s2 + $0x8] sm:$0xf]
  %v162 = vld [vmem:[%s2 + $0xc] sm:$0xf]
  %v167 = vunpack.c.l.b16 %v159
  %v168 = vunpack.c.l.b16 %v160
  %v169 = vunpack.c.l.b16 %v161
  %v170 = vunpack.c.l.b16 %v162
  %v171 = vpack.c.b16 %v168, %v167
  %v172 = vpack.c.b16 %v170, %v169
  %175 = vmatprep.subr.bf16.mxu0 0
  %176 = vmatpush1.bf16.msra.mxu0 %v171
  %177 = vmatprep.subr.bf16.mxu0 0
  %178 = vmatpush1.bf16.msra.mxu0 %v172
  %179 = vmatprep.subr.bf16.mxu0 0
  %180 = vmatpush1.bf16.msra.mxu0 0
  %181 = vmatprep.subr.bf16.mxu0 0
  %182 = vmatpush1.bf16.msra.mxu0 0
  %183 = vmatprep.subr.bf16.mxu0 0
  %184 = vmatpush1.bf16.msra.mxu0 0
  %185 = vmatprep.subr.bf16.mxu0 0
  %186 = vmatpush1.bf16.msra.mxu0 0
  %187 = vmatprep.subr.bf16.mxu0 0
  %188 = vmatpush1.bf16.msra.mxu0 0
  %189 = vmatprep.subr.bf16.mxu0 0
  %190 = vmatpush1.bf16.msra.mxu0 0
  %191 = vmatprep.subr.bf16.mxu0 0
  %192 = vmatpush1.bf16.msra.mxu0 0
  %193 = vmatprep.subr.bf16.mxu0 0
  %194 = vmatpush1.bf16.msra.mxu0 0
  %195 = vmatprep.subr.bf16.mxu0 0
  %196 = vmatpush1.bf16.msra.mxu0 0
  %197 = vmatprep.subr.bf16.mxu0 0
  %198 = vmatpush1.bf16.msra.mxu0 0
  %199 = vmatprep.subr.bf16.mxu0 0
  %200 = vmatpush1.bf16.msra.mxu0 0
  %201 = vmatprep.subr.bf16.mxu0 0
  %202 = vmatpush1.bf16.msra.mxu0 0
  %203 = vmatprep.subr.bf16.mxu0 0
  %204 = vmatpush1.bf16.msra.mxu0 0
  %205 = vmatprep.subr.bf16.mxu0 0
  %206 = vmatpush1.bf16.msra.mxu0 0
  %207 = vmatprep.mubr.bf16.mxu0 0
  %208 = vmatmul.mubr.bf16.gmra.mrb[0].mxu0 %v69
  %v209 = vpop.f32.mrb[0].mxu0
  %v210 = vadd.f32 0.0, %v209
  %v211 = vpop.f32.mrb[0].mxu0
  %v212 = vpop.f32.mrb[0].mxu0
  %v213 = vadd.f32 0.0, %v212
  %v214 = vpop.f32.mrb[0].mxu0
  %215 = vmatprep.mubr.bf16.mxu0 0
  %216 = vmatmul.mubr.bf16.gmra.mrb[0].mxu0 %v72
  %v217 = vpop.f32.mrb[0].mxu0
  %v218 = vadd.f32 0.0, %v217
  %v219 = vpop.f32.mrb[0].mxu0
  %v220 = vpop.f32.mrb[0].mxu0
  %v221 = vadd.f32 0.0, %v220
  %v222 = vpop.f32.mrb[0].mxu0
  %223 = vmatprep.mubr.bf16.mxu0 0
  %224 = vmatmul.mubr.bf16.gmra.mrb[0].mxu0 %v75
  %v225 = vpop.f32.mrb[0].mxu0
  %v226 = vadd.f32 0.0, %v225
  %v227 = vpop.f32.mrb[0].mxu0
  %v228 = vpop.f32.mrb[0].mxu0
  %v229 = vadd.f32 0.0, %v228
  %v230 = vpop.f32.mrb[0].mxu0
  %231 = vmatprep.mubr.bf16.mxu0 0
  %232 = vmatmul.mubr.bf16.gmra.mrb[0].mxu0 %v78
  %v233 = vpop.f32.mrb[0].mxu0
  %v234 = vadd.f32 0.0, %v233
  %v235 = vpop.f32.mrb[0].mxu0
  %v236 = vpop.f32.mrb[0].mxu0
  %v237 = vadd.f32 0.0, %v236
  %v238 = vpop.f32.mrb[0].mxu0
  %239 = vdwg.mxu0
  %v241 = vlaneseq
  %v242 = vshrl.u32 %v241, 7
  %v243 = vsub.s32 0, %v242
  %v244 = vrot.slane %v22, %v243
  %v246 = vadd.f32 %v244, %v210
  %v247 = vadd.f32 %v244, %v213
  %v248 = vadd.f32 %v244, %v218
  %v249 = vadd.f32 %v244, %v221
  %v250 = vadd.f32 %v244, %v226
  %v251 = vadd.f32 %v244, %v229
  %v252 = vadd.f32 %v244, %v234
  %v253 = vadd.f32 %v244, %v237
  %s254 = scalar_lea.vmem %s0, 32
  %v255 = vld [vmem:[%s254] sm:$0xf]
  %v256 = vld [vmem:[%s254 + $0x4] sm:$0xf]
  %v257 = vld [vmem:[%s254 + $0x8] sm:$0xf]
  %v258 = vld [vmem:[%s254 + $0xc] sm:$0xf]
  %v259 = vld [vmem:[%s254 + $0x10] sm:$0xf]
  %v260 = vld [vmem:[%s254 + $0x14] sm:$0xf]
  %v261 = vld [vmem:[%s254 + $0x18] sm:$0xf]
  %v262 = vld [vmem:[%s254 + $0x1c] sm:$0xf]
  %s263 = scalar_lea.vmem %s1, 16
  %v264 = vld [vmem:[%s263] sm:$0xf]
  %v265 = vld [vmem:[%s263 + $0x4] sm:$0xf]
  %v266 = vld [vmem:[%s263 + $0x8] sm:$0xf]
  %v267 = vld [vmem:[%s263 + $0xc] sm:$0xf]
  %v276 = vunpack.c.l.b16 %v255
  %v277 = vunpack.c.l.b16 %v256
  %v278 = vunpack.c.l.b16 %v257
  %v279 = vunpack.c.l.b16 %v258
  %v280 = vunpack.c.l.b16 %v259
  %v281 = vunpack.c.l.b16 %v260
  %v282 = vunpack.c.l.b16 %v261
  %v283 = vunpack.c.l.b16 %v262
  %v284 = vpack.c.b16 %v277, %v276
  %v285 = vpack.c.b16 %v279, %v278
  %v286 = vpack.c.b16 %v281, %v280
  %v287 = vpack.c.b16 %v283, %v282
  %v292 = vunpack.c.l.b16 %v264
  %v293 = vunpack.c.l.b16 %v265
  %v294 = vunpack.c.l.b16 %v266
  %v295 = vunpack.c.l.b16 %v267
  %v296 = vpack.c.b16 %v293, %v292
  %v297 = vpack.c.b16 %v295, %v294
  %v301 = vsel %vm67, %v284, 0
  %v304 = vsel %vm67, %v285, 0
  %v307 = vsel %vm67, %v286, 0
  %v310 = vsel %vm67, %v287, 0
  %312 = vmatprep.subr.bf16.mxu0 0
  %313 = vmatpush1.bf16.msra.mxu0 %v296
  %314 = vmatprep.subr.bf16.mxu0 0
  %315 = vmatpush1.bf16.msra.mxu0 %v297
  %316 = vmatprep.subr.bf16.mxu0 0
  %317 = vmatpush1.bf16.msra.mxu0 0
  %318 = vmatprep.subr.bf16.mxu0 0
  %319 = vmatpush1.bf16.msra.mxu0 0
  %320 = vmatprep.subr.bf16.mxu0 0
  %321 = vmatpush1.bf16.msra.mxu0 0
  %322 = vmatprep.subr.bf16.mxu0 0
  %323 = vmatpush1.bf16.msra.mxu0 0
  %324 = vmatprep.subr.bf16.mxu0 0
  %325 = vmatpush1.bf16.msra.mxu0 0
  %326 = vmatprep.subr.bf16.mxu0 0
  %327 = vmatpush1.bf16.msra.mxu0 0
  %328 = vmatprep.subr.bf16.mxu0 0
  %329 = vmatpush1.bf16.msra.mxu0 0
  %330 = vmatprep.subr.bf16.mxu0 0
  %331 = vmatpush1.bf16.msra.mxu0 0
  %332 = vmatprep.subr.bf16.mxu0 0
  %333 = vmatpush1.bf16.msra.mxu0 0
  %334 = vmatprep.subr.bf16.mxu0 0
  %335 = vmatpush1.bf16.msra.mxu0 0
  %336 = vmatprep.subr.bf16.mxu0 0
  %337 = vmatpush1.bf16.msra.mxu0 0
  %338 = vmatprep.subr.bf16.mxu0 0
  %339 = vmatpush1.bf16.msra.mxu0 0
  %340 = vmatprep.subr.bf16.mxu0 0
  %341 = vmatpush1.bf16.msra.mxu0 0
  %342 = vmatprep.subr.bf16.mxu0 0
  %343 = vmatpush1.bf16.msra.mxu0 0
  %344 = vmatprep.mubr.bf16.mxu0 0
  %345 = vmatmul.mubr.bf16.gmra.mrb[0].mxu0 %v301
  %v346 = vpop.f32.mrb[0].mxu0
  %v347 = vadd.f32 0.0, %v346
  %v348 = vpop.f32.mrb[0].mxu0
  %v349 = vpop.f32.mrb[0].mxu0
  %v350 = vadd.f32 0.0, %v349
  %v351 = vpop.f32.mrb[0].mxu0
  %352 = vmatprep.mubr.bf16.mxu0 0
  %353 = vmatmul.mubr.bf16.gmra.mrb[0].mxu0 %v304
  %v354 = vpop.f32.mrb[0].mxu0
  %v355 = vadd.f32 0.0, %v354
  %v356 = vpop.f32.mrb[0].mxu0
  %v357 = vpop.f32.mrb[0].mxu0
  %v358 = vadd.f32 0.0, %v357
  %v359 = vpop.f32.mrb[0].mxu0
  %360 = vmatprep.mubr.bf16.mxu0 0
  %361 = vmatmul.mubr.bf16.gmra.mrb[0].mxu0 %v307
  %v362 = vpop.f32.mrb[0].mxu0
  %v363 = vadd.f32 0.0, %v362
  %v364 = vpop.f32.mrb[0].mxu0
  %v365 = vpop.f32.mrb[0].mxu0
  %v366 = vadd.f32 0.0, %v365
  %v367 = vpop.f32.mrb[0].mxu0
  %368 = vmatprep.mubr.bf16.mxu0 0
  %369 = vmatmul.mubr.bf16.gmra.mrb[0].mxu0 %v310
  %v370 = vpop.f32.mrb[0].mxu0
  %v371 = vadd.f32 0.0, %v370
  %v372 = vpop.f32.mrb[0].mxu0
  %v373 = vpop.f32.mrb[0].mxu0
  %v374 = vadd.f32 0.0, %v373
  %v375 = vpop.f32.mrb[0].mxu0
  %376 = vdwg.mxu0
  %v377 = vadd.f32 %v151, %v347
  %v378 = vadd.f32 %v152, %v350
  %v379 = vadd.f32 %v153, %v355
  %v380 = vadd.f32 %v154, %v358
  %v381 = vadd.f32 %v155, %v363
  %v382 = vadd.f32 %v156, %v366
  %v383 = vadd.f32 %v157, %v371
  %v384 = vadd.f32 %v158, %v374
  %s385 = scalar_lea.vmem %s2, 16
  %v386 = vld [vmem:[%s385] sm:$0xf]
  %v387 = vld [vmem:[%s385 + $0x4] sm:$0xf]
  %v388 = vld [vmem:[%s385 + $0x8] sm:$0xf]
  %v389 = vld [vmem:[%s385 + $0xc] sm:$0xf]
  %v394 = vunpack.c.l.b16 %v386
  %v395 = vunpack.c.l.b16 %v387
  %v396 = vunpack.c.l.b16 %v388
  %v397 = vunpack.c.l.b16 %v389
  %v398 = vpack.c.b16 %v395, %v394
  %v399 = vpack.c.b16 %v397, %v396
  %402 = vmatprep.subr.bf16.mxu0 0
  %403 = vmatpush1.bf16.msra.mxu0 %v398
  %404 = vmatprep.subr.bf16.mxu0 0
  %405 = vmatpush1.bf16.msra.mxu0 %v399
  %406 = vmatprep.subr.bf16.mxu0 0
  %407 = vmatpush1.bf16.msra.mxu0 0
  %408 = vmatprep.subr.bf16.mxu0 0
  %409 = vmatpush1.bf16.msra.mxu0 0
  %410 = vmatprep.subr.bf16.mxu0 0
  %411 = vmatpush1.bf16.msra.mxu0 0
  %412 = vmatprep.subr.bf16.mxu0 0
  %413 = vmatpush1.bf16.msra.mxu0 0
  %414 = vmatprep.subr.bf16.mxu0 0
  %415 = vmatpush1.bf16.msra.mxu0 0
  %416 = vmatprep.subr.bf16.mxu0 0
  %417 = vmatpush1.bf16.msra.mxu0 0
  %418 = vmatprep.subr.bf16.mxu0 0
  %419 = vmatpush1.bf16.msra.mxu0 0
  %420 = vmatprep.subr.bf16.mxu0 0
  %421 = vmatpush1.bf16.msra.mxu0 0
  %422 = vmatprep.subr.bf16.mxu0 0
  %423 = vmatpush1.bf16.msra.mxu0 0
  %424 = vmatprep.subr.bf16.mxu0 0
  %425 = vmatpush1.bf16.msra.mxu0 0
  %426 = vmatprep.subr.bf16.mxu0 0
  %427 = vmatpush1.bf16.msra.mxu0 0
  %428 = vmatprep.subr.bf16.mxu0 0
  %429 = vmatpush1.bf16.msra.mxu0 0
  %430 = vmatprep.subr.bf16.mxu0 0
  %431 = vmatpush1.bf16.msra.mxu0 0
  %432 = vmatprep.subr.bf16.mxu0 0
  %433 = vmatpush1.bf16.msra.mxu0 0
  %434 = vmatprep.mubr.bf16.mxu0 0
  %435 = vmatmul.mubr.bf16.gmra.mrb[0].mxu0 %v301
  %v436 = vpop.f32.mrb[0].mxu0
  %v437 = vadd.f32 0.0, %v436
  %v438 = vpop.f32.mrb[0].mxu0
  %v439 = vpop.f32.mrb[0].mxu0
  %v440 = vadd.f32 0.0, %v439
  %v441 = vpop.f32.mrb[0].mxu0
  %442 = vmatprep.mubr.bf16.mxu0 0
  %443 = vmatmul.mubr.bf16.gmra.mrb[0].mxu0 %v304
  %v444 = vpop.f32.mrb[0].mxu0
  %v445 = vadd.f32 0.0, %v444
  %v446 = vpop.f32.mrb[0].mxu0
  %v447 = vpop.f32.mrb[0].mxu0
  %v448 = vadd.f32 0.0, %v447
  %v449 = vpop.f32.mrb[0].mxu0
  %450 = vmatprep.mubr.bf16.mxu0 0
  %451 = vmatmul.mubr.bf16.gmra.mrb[0].mxu0 %v307
  %v452 = vpop.f32.mrb[0].mxu0
  %v453 = vadd.f32 0.0, %v452
  %v454 = vpop.f32.mrb[0].mxu0
  %v455 = vpop.f32.mrb[0].mxu0
  %v456 = vadd.f32 0.0, %v455
  %v457 = vpop.f32.mrb[0].mxu0
  %458 = vmatprep.mubr.bf16.mxu0 0
  %459 = vmatmul.mubr.bf16.gmra.mrb[0].mxu0 %v310
  %v460 = vpop.f32.mrb[0].mxu0
  %v461 = vadd.f32 0.0, %v460
  %v462 = vpop.f32.mrb[0].mxu0
  %v463 = vpop.f32.mrb[0].mxu0
  %v464 = vadd.f32 0.0, %v463
  %v465 = vpop.f32.mrb[0].mxu0
  %466 = vdwg.mxu0
  %v467 = vadd.f32 %v246, %v437
  %v468 = vadd.f32 %v247, %v440
  %v469 = vadd.f32 %v248, %v445
  %v470 = vadd.f32 %v249, %v448
  %v471 = vadd.f32 %v250, %v453
  %v472 = vadd.f32 %v251, %v456
  %v473 = vadd.f32 %v252, %v461
  %v474 = vadd.f32 %v253, %v464
  %v475 = vpack.c.bf16 %v378, %v377
  %v476 = vpack.c.bf16 %v380, %v379
  %v477 = vpack.c.bf16 %v382, %v381
  %v478 = vpack.c.bf16 %v384, %v383
  %v483 = vunpack.c.l.b16 %v475
  %v484 = vunpack.c.h.b16 %v475
  %v485 = vunpack.c.l.b16 %v476
  %v486 = vunpack.c.h.b16 %v476
  %v487 = vunpack.c.l.b16 %v477
  %v488 = vunpack.c.h.b16 %v477
  %v489 = vunpack.c.l.b16 %v478
  %v490 = vunpack.c.h.b16 %v478
  %v491 = vpack.c.b16 %v483, %v483
  %v492 = vpack.c.b16 %v484, %v484
  %v493 = vpack.c.b16 %v485, %v485
  %v494 = vpack.c.b16 %v486, %v486
  %v495 = vpack.c.b16 %v487, %v487
  %v496 = vpack.c.b16 %v488, %v488
  %v497 = vpack.c.b16 %v489, %v489
  %v498 = vpack.c.b16 %v490, %v490
  %vm507 = vcmask 257024
  %508 = vst.msk [vmem:[%s5] sm:$0xf] %vm507, %v491
  %509 = vst.msk [vmem:[%s5 + $0x4] sm:$0xf] %vm507, %v492
  %510 = vst.msk [vmem:[%s5 + $0x8] sm:$0xf] %vm507, %v493
  %511 = vst.msk [vmem:[%s5 + $0xc] sm:$0xf] %vm507, %v494
  %512 = vst.msk [vmem:[%s5 + $0x10] sm:$0xf] %vm507, %v495
  %513 = vst.msk [vmem:[%s5 + $0x14] sm:$0xf] %vm507, %v496
  %514 = vst.msk [vmem:[%s5 + $0x18] sm:$0xf] %vm507, %v497
  %515 = vst.msk [vmem:[%s5 + $0x1c] sm:$0xf] %vm507, %v498
  %v516 = vpack.c.bf16 %v468, %v467
  %v517 = vpack.c.bf16 %v470, %v469
  %v518 = vpack.c.bf16 %v472, %v471
  %v519 = vpack.c.bf16 %v474, %v473
  %v524 = vunpack.c.l.b16 %v516
  %v525 = vunpack.c.h.b16 %v516
  %v526 = vunpack.c.l.b16 %v517
  %v527 = vunpack.c.h.b16 %v517
  %v528 = vunpack.c.l.b16 %v518
  %v529 = vunpack.c.h.b16 %v518
  %v530 = vunpack.c.l.b16 %v519
  %v531 = vunpack.c.h.b16 %v519
  %v532 = vpack.c.b16 %v524, %v524
  %v533 = vpack.c.b16 %v525, %v525
  %v534 = vpack.c.b16 %v526, %v526
  %v535 = vpack.c.b16 %v527, %v527
  %v536 = vpack.c.b16 %v528, %v528
  %v537 = vpack.c.b16 %v529, %v529
  %v538 = vpack.c.b16 %v530, %v530
  %v539 = vpack.c.b16 %v531, %v531
  %s548 = scalar_lea.vmem %s5, 32
  %549 = vst.msk [vmem:[%s548] sm:$0xf] %vm507, %v532
  %550 = vst.msk [vmem:[%s548 + $0x4] sm:$0xf] %vm507, %v533
  %551 = vst.msk [vmem:[%s548 + $0x8] sm:$0xf] %vm507, %v534
  %552 = vst.msk [vmem:[%s548 + $0xc] sm:$0xf] %vm507, %v535
  %553 = vst.msk [vmem:[%s548 + $0x10] sm:$0xf] %vm507, %v536
  %554 = vst.msk [vmem:[%s548 + $0x14] sm:$0xf] %vm507, %v537
  %555 = vst.msk [vmem:[%s548 + $0x18] sm:$0xf] %vm507, %v538
  %556 = vst.msk [vmem:[%s548 + $0x1c] sm:$0xf] %vm507, %v539
  // Predicated region
  $region22: #{deepspeech_forward.11} parent=0 // pred_check
    _
  $region23: #{deepspeech_forward.11} parent=0 // pred_check_branch
    %558 = sbr.rel (0) target = $region25
  $region24: #{deepspeech_forward.11} parent=0 // pred_region
    _
  $region25: #{deepspeech_forward.11} parent=0 // pred_fallthru
    _
  // Predicated region
  $region26: #{deepspeech_forward.11} parent=0 // pred_check
    _
  $region27: #{deepspeech_forward.11} parent=0 // pred_check_branch
    %560 = sbr.rel (0) target = $region29
  $region28: #{deepspeech_forward.11} parent=0 // pred_region
    _
  $region29: #{deepspeech_forward.11} parent=0 // pred_fallthru
    _

// kernel: deepspeech_forward.15
$region0: #{deepspeech_forward.15}
  #allocation0 [shape = 'u32[]', space=smem, size = 0x4, offset = 0x4, fixed_abs, tag = 'smem constant byte address 0x4 - core index']
  #allocation1 [shape = 'u32[144,128]{1,0:T(1,128)}', space=vmem, size = 0x12000, scoped, tag = 'internal scratch']
  %s0 = inlined_call_operand.vmem [shape: bf16[2,64,32], index: 0, kind: input, shape index: {}]
  %s1 = inlined_call_operand.vmem [shape: bf16[2,32,128], index: 1, kind: input, shape index: {}]
  %s2 = inlined_call_operand.vmem [shape: f32[1,128], index: 2, kind: input, shape index: {}]
  %s3 = inlined_call_operand.vmem [shape: f32[64,128], index: 3, kind: output, shape index: {}]
  %s4 = sld [smem:[#allocation0]]
  $region22: #{deepspeech_forward.15} parent=0
    _
  %s6 = ssub.s32 1, %s4
  %s7 = scalar_select 0, %s6, %s4
  // Predicated region
  $region2: #{deepspeech_forward.15} parent=0 // pred_check
    _
  $region3: #{deepspeech_forward.15} parent=0 // pred_check_branch
    %9 = sbr.rel (0) target = $region5
  $region4: #{deepspeech_forward.15} parent=0 // pred_region
    _
  $region5: #{deepspeech_forward.15} parent=0 // pred_fallthru
    _
  // Predicated region
  $region6: #{deepspeech_forward.15} parent=0 // pred_check
    _
  $region7: #{deepspeech_forward.15} parent=0 // pred_check_branch
    %11 = sbr.rel (0) target = $region9
  $region8: #{deepspeech_forward.15} parent=0 // pred_region
    _
  $region9: #{deepspeech_forward.15} parent=0 // pred_fallthru
    _
  // Predicated region
  $region10: #{deepspeech_forward.15} parent=0 // pred_check
    _
  $region11: #{deepspeech_forward.15} parent=0 // pred_check_branch
    %13 = sbr.rel (0) target = $region13
  $region12: #{deepspeech_forward.15} parent=0 // pred_region
    _
  $region13: #{deepspeech_forward.15} parent=0 // pred_fallthru
    _
  %v15 = vld [vmem:[%s2] sm:$0x1]
  %v16 = vld [vmem:[%s0] sm:$0xf]
  %v17 = vld [vmem:[%s0 + $0x4] sm:$0xf]
  %v18 = vld [vmem:[%s0 + $0x8] sm:$0xf]
  %v19 = vld [vmem:[%s0 + $0xc] sm:$0xf]
  %v20 = vld [vmem:[%s0 + $0x10] sm:$0xf]
  %v21 = vld [vmem:[%s0 + $0x14] sm:$0xf]
  %v22 = vld [vmem:[%s0 + $0x18] sm:$0xf]
  %v23 = vld [vmem:[%s0 + $0x1c] sm:$0xf]
  %v24 = vld [vmem:[%s1] sm:$0xf]
  %v25 = vld [vmem:[%s1 + $0x4] sm:$0xf]
  %v26 = vld [vmem:[%s1 + $0x8] sm:$0xf]
  %v27 = vld [vmem:[%s1 + $0xc] sm:$0xf]
  %v36 = vunpack.c.l.b16 %v16
  %v37 = vunpack.c.l.b16 %v17
  %v38 = vunpack.c.l.b16 %v18
  %v39 = vunpack.c.l.b16 %v19
  %v40 = vunpack.c.l.b16 %v20
  %v41 = vunpack.c.l.b16 %v21
  %v42 = vunpack.c.l.b16 %v22
  %v43 = vunpack.c.l.b16 %v23
  %v44 = vpack.c.b16 %v37, %v36
  %v45 = vpack.c.b16 %v39, %v38
  %v46 = vpack.c.b16 %v41, %v40
  %v47 = vpack.c.b16 %v43, %v42
  %v52 = vunpack.c.l.b16 %v24
  %v53 = vunpack.c.l.b16 %v25
  %v54 = vunpack.c.l.b16 %v26
  %v55 = vunpack.c.l.b16 %v27
  %v56 = vpack.c.b16 %v53, %v52
  %v57 = vpack.c.b16 %v55, %v54
  %vm60 = vcmask 261120
  %v62 = vsel %vm60, %v44, 0
  %v65 = vsel %vm60, %v45, 0
  %v68 = vsel %vm60, %v46, 0
  %v71 = vsel %vm60, %v47, 0
  %73 = vmatprep.subr.bf16.mxu0 0
  %74 = vmatpush1.bf16.msra.mxu0 %v56
  %75 = vmatprep.subr.bf16.mxu0 0
  %76 = vmatpush1.bf16.msra.mxu0 %v57
  %77 = vmatprep.subr.bf16.mxu0 0
  %78 = vmatpush1.bf16.msra.mxu0 0
  %79 = vmatprep.subr.bf16.mxu0 0
  %80 = vmatpush1.bf16.msra.mxu0 0
  %81 = vmatprep.subr.bf16.mxu0 0
  %82 = vmatpush1.bf16.msra.mxu0 0
  %83 = vmatprep.subr.bf16.mxu0 0
  %84 = vmatpush1.bf16.msra.mxu0 0
  %85 = vmatprep.subr.bf16.mxu0 0
  %86 = vmatpush1.bf16.msra.mxu0 0
  %87 = vmatprep.subr.bf16.mxu0 0
  %88 = vmatpush1.bf16.msra.mxu0 0
  %89 = vmatprep.subr.bf16.mxu0 0
  %90 = vmatpush1.bf16.msra.mxu0 0
  %91 = vmatprep.subr.bf16.mxu0 0
  %92 = vmatpush1.bf16.msra.mxu0 0
  %93 = vmatprep.subr.bf16.mxu0 0
  %94 = vmatpush1.bf16.msra.mxu0 0
  %95 = vmatprep.subr.bf16.mxu0 0
  %96 = vmatpush1.bf16.msra.mxu0 0
  %97 = vmatprep.subr.bf16.mxu0 0
  %98 = vmatpush1.bf16.msra.mxu0 0
  %99 = vmatprep.subr.bf16.mxu0 0
  %100 = vmatpush1.bf16.msra.mxu0 0
  %101 = vmatprep.subr.bf16.mxu0 0
  %102 = vmatpush1.bf16.msra.mxu0 0
  %103 = vmatprep.subr.bf16.mxu0 0
  %104 = vmatpush1.bf16.msra.mxu0 0
  %105 = vmatprep.mubr.bf16.mxu0 0
  %106 = vmatmul.mubr.bf16.gmra.mrb[0].mxu0 %v62
  %v107 = vpop.f32.mrb[0].mxu0
  %v108 = vadd.f32 0.0, %v107
  %v109 = vpop.f32.mrb[0].mxu0
  %v110 = vpop.f32.mrb[0].mxu0
  %v111 = vadd.f32 0.0, %v110
  %v112 = vpop.f32.mrb[0].mxu0
  %113 = vmatprep.mubr.bf16.mxu0 0
  %114 = vmatmul.mubr.bf16.gmra.mrb[0].mxu0 %v65
  %v115 = vpop.f32.mrb[0].mxu0
  %v116 = vadd.f32 0.0, %v115
  %v117 = vpop.f32.mrb[0].mxu0
  %v118 = vpop.f32.mrb[0].mxu0
  %v119 = vadd.f32 0.0, %v118
  %v120 = vpop.f32.mrb[0].mxu0
  %121 = vmatprep.mubr.bf16.mxu0 0
  %122 = vmatmul.mubr.bf16.gmra.mrb[0].mxu0 %v68
  %v123 = vpop.f32.mrb[0].mxu0
  %v124 = vadd.f32 0.0, %v123
  %v125 = vpop.f32.mrb[0].mxu0
  %v126 = vpop.f32.mrb[0].mxu0
  %v127 = vadd.f32 0.0, %v126
  %v128 = vpop.f32.mrb[0].mxu0
  %129 = vmatprep.mubr.bf16.mxu0 0
  %130 = vmatmul.mubr.bf16.gmra.mrb[0].mxu0 %v71
  %v131 = vpop.f32.mrb[0].mxu0
  %v132 = vadd.f32 0.0, %v131
  %v133 = vpop.f32.mrb[0].mxu0
  %v134 = vpop.f32.mrb[0].mxu0
  %v135 = vadd.f32 0.0, %v134
  %v136 = vpop.f32.mrb[0].mxu0
  %137 = vdwg.mxu0
  %v139 = vlaneseq
  %v140 = vshrl.u32 %v139, 7
  %v141 = vsub.s32 0, %v140
  %v142 = vrot.slane %v15, %v141
  %v144 = vadd.f32 %v142, %v108
  %v145 = vadd.f32 %v142, %v111
  %v146 = vadd.f32 %v142, %v116
  %v147 = vadd.f32 %v142, %v119
  %v148 = vadd.f32 %v142, %v124
  %v149 = vadd.f32 %v142, %v127
  %v150 = vadd.f32 %v142, %v132
  %v151 = vadd.f32 %v142, %v135
  %s152 = scalar_lea.vmem %s0, 32
  %v153 = vld [vmem:[%s152] sm:$0xf]
  %v154 = vld [vmem:[%s152 + $0x4] sm:$0xf]
  %v155 = vld [vmem:[%s152 + $0x8] sm:$0xf]
  %v156 = vld [vmem:[%s152 + $0xc] sm:$0xf]
  %v157 = vld [vmem:[%s152 + $0x10] sm:$0xf]
  %v158 = vld [vmem:[%s152 + $0x14] sm:$0xf]
  %v159 = vld [vmem:[%s152 + $0x18] sm:$0xf]
  %v160 = vld [vmem:[%s152 + $0x1c] sm:$0xf]
  %s161 = scalar_lea.vmem %s1, 16
  %v162 = vld [vmem:[%s161] sm:$0xf]
  %v163 = vld [vmem:[%s161 + $0x4] sm:$0xf]
  %v164 = vld [vmem:[%s161 + $0x8] sm:$0xf]
  %v165 = vld [vmem:[%s161 + $0xc] sm:$0xf]
  %v174 = vunpack.c.l.b16 %v153
  %v175 = vunpack.c.l.b16 %v154
  %v176 = vunpack.c.l.b16 %v155
  %v177 = vunpack.c.l.b16 %v156
  %v178 = vunpack.c.l.b16 %v157
  %v179 = vunpack.c.l.b16 %v158
  %v180 = vunpack.c.l.b16 %v159
  %v181 = vunpack.c.l.b16 %v160
  %v182 = vpack.c.b16 %v175, %v174
  %v183 = vpack.c.b16 %v177, %v176
  %v184 = vpack.c.b16 %v179, %v178
  %v185 = vpack.c.b16 %v181, %v180
  %v190 = vunpack.c.l.b16 %v162
  %v191 = vunpack.c.l.b16 %v163
  %v192 = vunpack.c.l.b16 %v164
  %v193 = vunpack.c.l.b16 %v165
  %v194 = vpack.c.b16 %v191, %v190
  %v195 = vpack.c.b16 %v193, %v192
  %v199 = vsel %vm60, %v182, 0
  %v202 = vsel %vm60, %v183, 0
  %v205 = vsel %vm60, %v184, 0
  %v208 = vsel %vm60, %v185, 0
  %210 = vmatprep.subr.bf16.mxu0 0
  %211 = vmatpush1.bf16.msra.mxu0 %v194
  %212 = vmatprep.subr.bf16.mxu0 0
  %213 = vmatpush1.bf16.msra.mxu0 %v195
  %214 = vmatprep.subr.bf16.mxu0 0
  %215 = vmatpush1.bf16.msra.mxu0 0
  %216 = vmatprep.subr.bf16.mxu0 0
  %217 = vmatpush1.bf16.msra.mxu0 0
  %218 = vmatprep.subr.bf16.mxu0 0
  %219 = vmatpush1.bf16.msra.mxu0 0
  %220 = vmatprep.subr.bf16.mxu0 0
  %221 = vmatpush1.bf16.msra.mxu0 0
  %222 = vmatprep.subr.bf16.mxu0 0
  %223 = vmatpush1.bf16.msra.mxu0 0
  %224 = vmatprep.subr.bf16.mxu0 0
  %225 = vmatpush1.bf16.msra.mxu0 0
  %226 = vmatprep.subr.bf16.mxu0 0
  %227 = vmatpush1.bf16.msra.mxu0 0
  %228 = vmatprep.subr.bf16.mxu0 0
  %229 = vmatpush1.bf16.msra.mxu0 0
  %230 = vmatprep.subr.bf16.mxu0 0
  %231 = vmatpush1.bf16.msra.mxu0 0
  %232 = vmatprep.subr.bf16.mxu0 0
  %233 = vmatpush1.bf16.msra.mxu0 0
  %234 = vmatprep.subr.bf16.mxu0 0
  %235 = vmatpush1.bf16.msra.mxu0 0
  %236 = vmatprep.subr.bf16.mxu0 0
  %237 = vmatpush1.bf16.msra.mxu0 0
  %238 = vmatprep.subr.bf16.mxu0 0
  %239 = vmatpush1.bf16.msra.mxu0 0
  %240 = vmatprep.subr.bf16.mxu0 0
  %241 = vmatpush1.bf16.msra.mxu0 0
  %242 = vmatprep.mubr.bf16.mxu0 0
  %243 = vmatmul.mubr.bf16.gmra.mrb[0].mxu0 %v199
  %v244 = vpop.f32.mrb[0].mxu0
  %v245 = vadd.f32 0.0, %v244
  %v246 = vpop.f32.mrb[0].mxu0
  %v247 = vpop.f32.mrb[0].mxu0
  %v248 = vadd.f32 0.0, %v247
  %v249 = vpop.f32.mrb[0].mxu0
  %250 = vmatprep.mubr.bf16.mxu0 0
  %251 = vmatmul.mubr.bf16.gmra.mrb[0].mxu0 %v202
  %v252 = vpop.f32.mrb[0].mxu0
  %v253 = vadd.f32 0.0, %v252
  %v254 = vpop.f32.mrb[0].mxu0
  %v255 = vpop.f32.mrb[0].mxu0
  %v256 = vadd.f32 0.0, %v255
  %v257 = vpop.f32.mrb[0].mxu0
  %258 = vmatprep.mubr.bf16.mxu0 0
  %259 = vmatmul.mubr.bf16.gmra.mrb[0].mxu0 %v205
  %v260 = vpop.f32.mrb[0].mxu0
  %v261 = vadd.f32 0.0, %v260
  %v262 = vpop.f32.mrb[0].mxu0
  %v263 = vpop.f32.mrb[0].mxu0
  %v264 = vadd.f32 0.0, %v263
  %v265 = vpop.f32.mrb[0].mxu0
  %266 = vmatprep.mubr.bf16.mxu0 0
  %267 = vmatmul.mubr.bf16.gmra.mrb[0].mxu0 %v208
  %v268 = vpop.f32.mrb[0].mxu0
  %v269 = vadd.f32 0.0, %v268
  %v270 = vpop.f32.mrb[0].mxu0
  %v271 = vpop.f32.mrb[0].mxu0
  %v272 = vadd.f32 0.0, %v271
  %v273 = vpop.f32.mrb[0].mxu0
  %274 = vdwg.mxu0
  %v275 = vadd.f32 %v144, %v245
  %v276 = vadd.f32 %v145, %v248
  %v277 = vadd.f32 %v146, %v253
  %v278 = vadd.f32 %v147, %v256
  %v279 = vadd.f32 %v148, %v261
  %v280 = vadd.f32 %v149, %v264
  %v281 = vadd.f32 %v150, %v269
  %v282 = vadd.f32 %v151, %v272
  %283 = vmax.xlane.f32.xlu0 %v275
  %v284 = vpop.xlane.xlu0 %283
  %285 = vmax.xlane.f32.xlu0 %v276
  %v286 = vpop.xlane.xlu0 %285
  %287 = vmax.xlane.f32.xlu0 %v277
  %v288 = vpop.xlane.xlu0 %287
  %289 = vmax.xlane.f32.xlu0 %v278
  %v290 = vpop.xlane.xlu0 %289
  %291 = vmax.xlane.f32.xlu0 %v279
  %v292 = vpop.xlane.xlu0 %291
  %293 = vmax.xlane.f32.xlu0 %v280
  %v294 = vpop.xlane.xlu0 %293
  %295 = vmax.xlane.f32.xlu0 %v281
  %v296 = vpop.xlane.xlu0 %295
  %297 = vmax.xlane.f32.xlu0 %v282
  %v298 = vpop.xlane.xlu0 %297
  %v299 = vsub.f32 %v275, %v284
  %v300 = vsub.f32 %v276, %v286
  %v301 = vsub.f32 %v277, %v288
  %v302 = vsub.f32 %v278, %v290
  %v303 = vsub.f32 %v279, %v292
  %v304 = vsub.f32 %v280, %v294
  %v305 = vsub.f32 %v281, %v296
  %v306 = vsub.f32 %v282, %v298
  %v307 = vmul.f32 %v299, 1.442695
  %v308 = vpow.pop %v307
  %v309 = vmul.f32 %v300, 1.442695
  %v310 = vpow.pop %v309
  %v311 = vmul.f32 %v301, 1.442695
  %v312 = vpow.pop %v311
  %v313 = vmul.f32 %v302, 1.442695
  %v314 = vpow.pop %v313
  %v315 = vmul.f32 %v303, 1.442695
  %v316 = vpow.pop %v315
  %v317 = vmul.f32 %v304, 1.442695
  %v318 = vpow.pop %v317
  %v319 = vmul.f32 %v305, 1.442695
  %v320 = vpow.pop %v319
  %v321 = vmul.f32 %v306, 1.442695
  %v322 = vpow.pop %v321
  %323 = vadd.xlane.f32.xlu0 %v308
  %v324 = vpop.xlane.xlu0 %323
  %325 = vadd.xlane.f32.xlu0 %v310
  %v326 = vpop.xlane.xlu0 %325
  %327 = vadd.xlane.f32.xlu0 %v312
  %v328 = vpop.xlane.xlu0 %327
  %329 = vadd.xlane.f32.xlu0 %v314
  %v330 = vpop.xlane.xlu0 %329
  %331 = vadd.xlane.f32.xlu0 %v316
  %v332 = vpop.xlane.xlu0 %331
  %333 = vadd.xlane.f32.xlu0 %v318
  %v334 = vpop.xlane.xlu0 %333
  %335 = vadd.xlane.f32.xlu0 %v320
  %v336 = vpop.xlane.xlu0 %335
  %337 = vadd.xlane.f32.xlu0 %v322
  %v338 = vpop.xlane.xlu0 %337
  %v339 = vlog2.pop %v324
  %v340 = vmul.f32 %v339, 0.6931472
  %v341 = vlog2.pop %v326
  %v342 = vmul.f32 %v341, 0.6931472
  %v343 = vlog2.pop %v328
  %v344 = vmul.f32 %v343, 0.6931472
  %v345 = vlog2.pop %v330
  %v346 = vmul.f32 %v345, 0.6931472
  %v347 = vlog2.pop %v332
  %v348 = vmul.f32 %v347, 0.6931472
  %v349 = vlog2.pop %v334
  %v350 = vmul.f32 %v349, 0.6931472
  %v351 = vlog2.pop %v336
  %v352 = vmul.f32 %v351, 0.6931472
  %v353 = vlog2.pop %v338
  %v354 = vmul.f32 %v353, 0.6931472
  %v355 = vsub.f32 %v299, %v340
  %v356 = vsub.f32 %v300, %v342
  %v357 = vsub.f32 %v301, %v344
  %v358 = vsub.f32 %v302, %v346
  %v359 = vsub.f32 %v303, %v348
  %v360 = vsub.f32 %v304, %v350
  %v361 = vsub.f32 %v305, %v352
  %v362 = vsub.f32 %v306, %v354
  %363 = vst [vmem:[%s3] sm:$0xff] %v355
  %364 = vst [vmem:[%s3 + $0x8] sm:$0xff] %v356
  %365 = vst [vmem:[%s3 + $0x10] sm:$0xff] %v357
  %366 = vst [vmem:[%s3 + $0x18] sm:$0xff] %v358
  %367 = vst [vmem:[%s3 + $0x20] sm:$0xff] %v359
  %368 = vst [vmem:[%s3 + $0x28] sm:$0xff] %v360
  %369 = vst [vmem:[%s3 + $0x30] sm:$0xff] %v361
  %370 = vst [vmem:[%s3 + $0x38] sm:$0xff] %v362
  // Predicated region
  $region14: #{deepspeech_forward.15} parent=0 // pred_check
    _
  $region15: #{deepspeech_forward.15} parent=0 // pred_check_branch
    %372 = sbr.rel (0) target = $region17
  $region16: #{deepspeech_forward.15} parent=0 // pred_region
    _
  $region17: #{deepspeech_forward.15} parent=0 // pred_fallthru
    _
  // Predicated region
  $region18: #{deepspeech_forward.15} parent=0 // pred_check
    _
  $region19: #{deepspeech_forward.15} parent=0 // pred_check_branch
    %374 = sbr.rel (0) target = $region21
  $region20: #{deepspeech_forward.15} parent=0 // pred_region
    _
  $region21: #{deepspeech_forward.15} parent=0 // pred_fallthru
    _

</llo_original>
